<compile_context>
chip_gen: v6e
topology: v6e:2x2x1
jax: 0.10.0
libtpu: 0.0.40
codegen_flags: <defaults>
</compile_context>

<pallas_src>
import functools

import jax
import jax.numpy as jnp
import numpy as np
from jax.experimental import pallas as pl
from jax.experimental.pallas import tpu as pltpu  # noqa: F401  (TPU backend)

GATE_BLK = 128                       # one full lane group per gate block
_GATE_PERM = (0, 1, 3, 2)            # fused block order [i, f, o, g] <- raw (i, f, g, o)


# --------------------------------------------------------------------------
# The single fused kernel: char CNN -> concat -> stacked biLSTM -> h_n
# --------------------------------------------------------------------------
def _fused_forward_kernel(*refs, T, Bp, H, pool_k, n_layers):
    G = GATE_BLK
    GW = 4 * G
    TB = T * Bp
    f32 = jnp.float32

    xconv_ref, wconv_ref, bconv_ref, wemb_ref = refs[0:4]
    layer_refs = refs[4:4 + 3 * n_layers]
    wi_ref, hn_ref = refs[4 + 3 * n_layers:6 + 3 * n_layers]

    # ---- char CNN: Conv1d (im2col matmul) -> MaxPool1d(pool_k) -> tanh ------
    # Conv weights live in lanes [Dw:Dw+F] of a 128-wide block, so the pooled
    # tanh result is already positioned for the word/char "concat" below.
    y = jnp.dot(xconv_ref[...], wconv_ref[...],
                preferred_element_type=f32) + bconv_ref[...]      # (pool_k*TB, G)
    cf = y[0:TB, :]
    for pk in range(1, pool_k):                                   # static unroll
        cf = jnp.maximum(cf, y[pk * TB:(pk + 1) * TB, :])
    cf = jnp.tanh(cf)                                             # (TB, G)

    # ---- words_input: lanes [0:Dw] word emb, [Dw:Dw+F] char feature ---------
    wi = wemb_ref[...] + cf                  # disjoint lanes -> add == concat
    wi_ref[...] = wi                         # single lane-dense store

    gate_col = jax.lax.broadcasted_iota(jnp.int32, (1, GW), 1) % G
    fwd_gate = gate_col < H                  # fwd-direction half of each gate block
    state_col = jax.lax.broadcasted_iota(jnp.int32, (1, G), 1)
    fwd_state = state_col < H                # fwd half of the [h_fwd|h_bwd|pad] state

    def bilstm(x_in, wih_ref, whh_ref, b_ref, need_seq):
        # Hoisted input projection (+ folded bias) for BOTH directions.
        gx = jnp.dot(x_in, wih_ref[...], preferred_element_type=f32) + b_ref[...]
        # Hoisted direction/time select: fwd lanes use time t, bwd lanes T-1-t.
        gsel = jnp.concatenate(
            [jnp.where(fwd_gate,
                       gx[t * Bp:(t + 1) * Bp, :],
                       gx[(T - 1 - t) * Bp:(T - t) * Bp, :]) for t in range(T)],
            axis=0)                                               # (TB, GW)
        w_hh = whh_ref[...]                                       # (G, GW) block-diag
        h = jnp.zeros((Bp, G), f32)
        c = jnp.zeros((Bp, G), f32)
        hs = []
        for t in range(T):                   # fully unrolled; T small & static
            gates = gsel[t * Bp:(t + 1) * Bp, :] + jnp.dot(
                h, w_hh, preferred_element_type=f32)              # (Bp, GW)
            sig = jax.nn.sigmoid(gates[:, 0:3 * G])               # [i|f|o] in one pass
            g_t = jnp.tanh(gates[:, 3 * G:4 * G])
            c = sig[:, G:2 * G] * c + sig[:, 0:G] * g_t
            h = sig[:, 2 * G:3 * G] * jnp.tanh(c)
            hs.append(h)
        if not need_seq:
            return h                         # [h_fwd final | h_bwd final | 0 pad]
        # Assemble bidirectional output sequence in registers -> one dense block.
        return jnp.concatenate(
            [jnp.where(fwd_state, hs[t], hs[T - 1 - t]) for t in range(T)], axis=0)

    x = wi
    for li in range(n_layers):
        wih_r, whh_r, b_r = layer_refs[3 * li:3 * li + 3]
        x = bilstm(x, wih_r, whh_r, b_r, need_seq=(li < n_layers - 1))
    hn_ref[...] = x                          # (Bp, G) single dense store


# --------------------------------------------------------------------------
# Parameter init (raw, PyTorch-layout) + one-time fusion/padding
# --------------------------------------------------------------------------
def init_params(key, cfg):
    ks = jax.random.split(key, 5)
    H = cfg["hidden"]
    p = {}
    p["word_emb"] = 0.1 * jax.random.normal(
        ks[0], (cfg["word_vocab"], cfg["word_dim"]), jnp.float32)
    char_emb = 0.1 * jax.random.normal(
        ks[1], (cfg["char_vocab"], cfg["char_dim"]), jnp.float32)
    p["char_emb"] = char_emb.at[0].set(0.0)                    # padding_idx=0
    p["conv_w"] = 0.1 * jax.random.normal(
        ks[2], (cfg["char_feat"], cfg["char_dim"], cfg["K"]), jnp.float32)  # (F, C, K)
    p["conv_b"] = 0.1 * jax.random.normal(ks[3], (cfg["char_feat"],), jnp.float32)
    p["lstm"] = []
    in_dim = cfg["word_dim"] + cfg["char_feat"]
    lk = ks[4]
    for layer_idx in range(cfg["layers"]):
        d_in = in_dim if layer_idx == 0 else 2 * H
        layer = {}
        for dname in ("fwd", "bwd"):
            lk, k0, k1, k2 = jax.random.split(lk, 4)
            layer[dname] = {
                "w_ih": 0.1 * jax.random.normal(k0, (d_in, 4 * H), jnp.float32),
                "w_hh": 0.1 * jax.random.normal(k1, (H, 4 * H), jnp.float32),
                # b = b_ih + b_hh folded into one bias (mathematically identical)
                "b": 0.1 * jax.random.normal(k2, (1, 4 * H), jnp.float32),
            }
        p["lstm"].append(layer)
    return p


def _fuse_bilstm_layer(layer, H, d_in):
    """Per-direction torch-layout params -> padded, gate-block fused weights."""
    G = GATE_BLK
    GW = 4 * G
    wih = np.zeros((G, GW), np.float32)       # rows [0:d_in] real, rest zero
    whh = np.zeros((G, GW), np.float32)       # block-diag over [h_fwd | h_bwd]
    b = np.zeros((1, GW), np.float32)
    for dname, off in (("fwd", 0), ("bwd", H)):
        w_ih = np.asarray(layer[dname]["w_ih"]).reshape(d_in, 4, H)
        w_hh = np.asarray(layer[dname]["w_hh"]).reshape(H, 4, H)
        bias = np.asarray(layer[dname]["b"]).reshape(4, H)
        for blk, g in enumerate(_GATE_PERM):
            c0 = blk * G + off
            wih[:d_in, c0:c0 + H] = w_ih[:, g, :]
            whh[off:off + H, c0:c0 + H] = w_hh[:, g, :]
            b[0, c0:c0 + H] = bias[g]
    return jnp.asarray(wih), jnp.asarray(whh), jnp.asarray(b)


def fuse_params(p, cfg):
    """Precompute all padded/fused kernel weights ONCE (outside jit)."""
    H, K, C = cfg["hidden"], cfg["K"], cfg["char_dim"]
    Dw, F, G = cfg["word_dim"], cfg["char_feat"], GATE_BLK
    assert 2 * H <= G, "fused layout assumes 2*hidden <= 128 lanes"
    assert Dw + F <= G, "fused layout assumes word_dim + char_feat <= 128 lanes"
    w2d = np.transpose(np.asarray(p["conv_w"]), (2, 1, 0)).reshape(K * C, F)
    wconv = np.zeros((K * C, G), np.float32)
    wconv[:, Dw:Dw + F] = w2d                 # conv output lands in lanes [Dw:Dw+F]
    bconv = np.zeros((1, G), np.float32)
    bconv[0, Dw:Dw + F] = np.asarray(p["conv_b"])
    layers = []
    d_in = Dw + F
    for layer in p["lstm"]:
        layers.append(_fuse_bilstm_layer(layer, H, d_in))
        d_in = 2 * H
    return {"wconv": jnp.asarray(wconv), "bconv": jnp.asarray(bconv),
            "layers": layers}


# --------------------------------------------------------------------------
# Forward wrapper (embedding gathers + layout prep in XLA, one pallas_call)
# --------------------------------------------------------------------------
def forward(p, fused, words, chars, cfg):
    H, T, pool_k, K = cfg["hidden"], cfg["seq"], cfg["pool_k"], cfg["K"]
    Dw, F, C, G = cfg["word_dim"], cfg["char_feat"], cfg["char_dim"], GATE_BLK
    B = words.shape[0]
    Bp = ((B + 7) // 8) * 8                   # pad batch to full sublane groups
    TB = T * Bp

    # Pad batch at the index level (padded rows never influence real rows).
    words_p = jnp.pad(words, ((0, Bp - B), (0, 0)))
    chars_p = jnp.pad(chars, ((0, Bp - B), (0, 0)))

    # Embedding gathers (no clean dense Pallas equivalent at these sizes).
    we = p["word_emb"][words_p]               # (Bp, T, Dw)
    ce = p["char_emb"][chars_p]               # (Bp, L_char, C); dropout = identity

    # Word embeddings, time-major rows (t*Bp + b), padded to 128 lanes.
    wemb_pad = jnp.pad(jnp.transpose(we, (1, 0, 2)).reshape(TB, Dw),
                       ((0, 0), (0, G - Dw)))                     # (TB, G)

    # im2col for the char conv, pool-offset-major rows: row = pk*TB + t*Bp + b.
    L_conv = T * pool_k
    xc = jnp.concatenate([ce[:, k:k + L_conv, :] for k in range(K)], axis=-1)
    xc = xc.reshape(Bp, T, pool_k, K * C).transpose(2, 1, 0, 3)
    xc = xc.reshape(pool_k * TB, K * C)                           # (pool_k*TB, K*C)

    n_layers = len(fused["layers"])
    layer_args = []
    for (wih, whh, b) in fused["layers"]:
        layer_args += [wih, whh, b]

    kern = functools.partial(_fused_forward_kernel, T=T, Bp=Bp, H=H,
                             pool_k=pool_k, n_layers=n_layers)
    wi_out, hn_out = pl.pallas_call(
        kern,
        out_shape=(jax.ShapeDtypeStruct((TB, G), jnp.float32),    # words_input (padded)
                   jax.ShapeDtypeStruct((Bp, G), jnp.float32)),   # h_n (padded)
    )(xc, fused["wconv"], fused["bconv"], wemb_pad, *layer_args)

    words_input = wi_out[:, :Dw + F].reshape(T, Bp, Dw + F).transpose(1, 0, 2)[:B]
    h_n = hn_out[:B, :2 * H]
    return h_n, words_input


# --------------------------------------------------------------------------
# Pure-JAX reference (for correctness check)
# --------------------------------------------------------------------------
def _ref_lstm_dir(x, w_ih, w_hh, b, H):
    B = x.shape[0]

    def step(carry, x_t):
        h, c = carry
        gates = x_t @ w_ih + h @ w_hh + b
        i = jax.nn.sigmoid(gates[:, :H])
        f = jax.nn.sigmoid(gates[:, H:2 * H])
        g = jnp.tanh(gates[:, 2 * H:3 * H])
        o = jax.nn.sigmoid(gates[:, 3 * H:])
        c = f * c + i * g
        h = o * jnp.tanh(c)
        return (h, c), h

    init = (jnp.zeros((B, H), jnp.float32), jnp.zeros((B, H), jnp.float32))
    _, hs = jax.lax.scan(step, init, jnp.transpose(x, (1, 0, 2)))
    return jnp.transpose(hs, (1, 0, 2))


def reference_forward(p, words, chars, cfg):
    H, T, pool_k = cfg["hidden"], cfg["seq"], cfg["pool_k"]
    we = p["word_emb"][words]
    ce = p["char_emb"][chars]
    x_ncw = jnp.transpose(ce, (0, 2, 1))                       # (B, C, L)
    conv = jax.lax.conv_general_dilated(
        x_ncw, p["conv_w"], (1,), "VALID",
        dimension_numbers=("NCH", "OIH", "NCH"))
    conv = conv + p["conv_b"][None, :, None]                   # (B, F, T*pool_k)
    B, F, Lc = conv.shape
    pooled = jnp.max(conv.reshape(B, F, T, pool_k), axis=-1)
    char_feature = jnp.transpose(jnp.tanh(pooled), (0, 2, 1))
    words_input = jnp.concatenate([we, char_feature], axis=-1)
    x = words_input
    for layer in p["lstm"]:
        of = _ref_lstm_dir(x, layer["fwd"]["w_ih"], layer["fwd"]["w_hh"],
                           layer["fwd"]["b"], H)
        ob = _ref_lstm_dir(x[:, ::-1, :], layer["bwd"]["w_ih"],
                           layer["bwd"]["w_hh"], layer["bwd"]["b"], H)[:, ::-1, :]
        x = jnp.concatenate([of, ob], axis=-1)
    h_n = jnp.concatenate([of[:, -1, :], ob[:, 0, :]], axis=-1)
    return h_n, words_input


# --------------------------------------------------------------------------
if __name__ == "__main__":
    cfg = dict(
        batch=2,
        seq=8,                 # max_batch_len
        max_word_len=10,
        K=3,                   # conv_filter_size
        word_vocab=50,
        word_dim=20,
        char_vocab=30,
        char_dim=8,            # char_embed_dim
        char_feat=12,          # char_feature_size
        hidden=32,
        layers=2,
    )
    cfg["pool_k"] = cfg["max_word_len"] + cfg["K"] - 1                 # 12
    # char sequence length chosen so conv output length == seq * pool_k
    cfg["L_char"] = cfg["seq"] * cfg["pool_k"] + cfg["K"] - 1          # 98

    key = jax.random.PRNGKey(0)
    kp, kw, kc = jax.random.split(key, 3)
    params = init_params(kp, cfg)
    fused = fuse_params(params, cfg)          # one-time weight fusion (outside jit)

    words = jax.random.randint(kw, (cfg["batch"], cfg["seq"]), 0, cfg["word_vocab"],
                               dtype=jnp.int32)
    chars = jax.random.randint(kc, (cfg["batch"], cfg["L_char"]), 0, cfg["char_vocab"],
                               dtype=jnp.int32)

    fwd_fn = jax.jit(lambda prm, fz, w, c: forward(prm, fz, w, c, cfg))
    h_n, words_input = fwd_fn(params, fused, words, chars)
    jax.block_until_ready((h_n, words_input))

    h_ref, wi_expected = reference_forward(params, words, chars, cfg)
    assert h_n.shape == (cfg["batch"], 2 * cfg["hidden"])
    assert words_input.shape == (cfg["batch"], cfg["seq"],
                                 cfg["word_dim"] + cfg["char_feat"])
    np.testing.assert_allclose(np.asarray(words_input), np.asarray(wi_expected),
                               rtol=3e-4, atol=5e-5)
    np.testing.assert_allclose(np.asarray(h_n), np.asarray(h_ref),
                               rtol=3e-4, atol=5e-5)
    print("KERNEL_OK")
</pallas_src>

<mosaic_0001>
module attributes {stable_mosaic.version = 11 : i64} {
  func.func @_fused_forward_kernel(%arg0: memref<768x24xf32, #tpu.memory_space<vmem>>, %arg1: memref<24x128xf32, #tpu.memory_space<vmem>>, %arg2: memref<1x128xf32, #tpu.memory_space<vmem>>, %arg3: memref<64x128xf32, #tpu.memory_space<vmem>>, %arg4: memref<128x512xf32, #tpu.memory_space<vmem>>, %arg5: memref<128x512xf32, #tpu.memory_space<vmem>>, %arg6: memref<1x512xf32, #tpu.memory_space<vmem>>, %arg7: memref<128x512xf32, #tpu.memory_space<vmem>>, %arg8: memref<128x512xf32, #tpu.memory_space<vmem>>, %arg9: memref<1x512xf32, #tpu.memory_space<vmem>>, %arg10: memref<64x128xf32, #tpu.memory_space<vmem>>, %arg11: memref<8x128xf32, #tpu.memory_space<vmem>>) attributes {dimension_semantics = [], scalar_prefetch = 0 : i64, scratch_operands = 0 : i64, tpu.core_type = #tpu.core_type<tc>} {
    %c0 = arith.constant 0 : index
    %c0_0 = arith.constant 0 : index
    %0 = vector.load %arg0[%c0, %c0_0] : memref<768x24xf32, #tpu.memory_space<vmem>>, vector<768x24xf32>
    %c0_1 = arith.constant 0 : index
    %c0_2 = arith.constant 0 : index
    %1 = vector.load %arg1[%c0_1, %c0_2] : memref<24x128xf32, #tpu.memory_space<vmem>>, vector<24x128xf32>
    %cst = arith.constant dense<0.000000e+00> : vector<768x128xf32>
    %2 = tpu.matmul %0, %1, %cst {dimension_numbers = #tpu.dot_dimension_numbers<[1], [0], [0], [1], [0, 0, 1, 1], [], []>} : vector<768x24xf32>, vector<24x128xf32>, vector<768x128xf32> -> vector<768x128xf32>
    %c0_3 = arith.constant 0 : index
    %c0_4 = arith.constant 0 : index
    %3 = vector.load %arg2[%c0_3, %c0_4] : memref<1x128xf32, #tpu.memory_space<vmem>>, vector<1x128xf32>
    %4 = vector.broadcast %3 : vector<1x128xf32> to vector<768x128xf32>
    %5 = arith.addf %2, %4 : vector<768x128xf32>
    %6 = vector.extract_strided_slice %5 {offsets = [0, 0], sizes = [64, 128], strides = [1, 1]} : vector<768x128xf32> to vector<64x128xf32>
    %7 = vector.extract_strided_slice %5 {offsets = [64, 0], sizes = [64, 128], strides = [1, 1]} : vector<768x128xf32> to vector<64x128xf32>
    %8 = arith.maximumf %6, %7 : vector<64x128xf32>
    %9 = vector.extract_strided_slice %5 {offsets = [128, 0], sizes = [64, 128], strides = [1, 1]} : vector<768x128xf32> to vector<64x128xf32>
    %10 = arith.maximumf %8, %9 : vector<64x128xf32>
    %11 = vector.extract_strided_slice %5 {offsets = [192, 0], sizes = [64, 128], strides = [1, 1]} : vector<768x128xf32> to vector<64x128xf32>
    %12 = arith.maximumf %10, %11 : vector<64x128xf32>
    %13 = vector.extract_strided_slice %5 {offsets = [256, 0], sizes = [64, 128], strides = [1, 1]} : vector<768x128xf32> to vector<64x128xf32>
    %14 = arith.maximumf %12, %13 : vector<64x128xf32>
    %15 = vector.extract_strided_slice %5 {offsets = [320, 0], sizes = [64, 128], strides = [1, 1]} : vector<768x128xf32> to vector<64x128xf32>
    %16 = arith.maximumf %14, %15 : vector<64x128xf32>
    %17 = vector.extract_strided_slice %5 {offsets = [384, 0], sizes = [64, 128], strides = [1, 1]} : vector<768x128xf32> to vector<64x128xf32>
    %18 = arith.maximumf %16, %17 : vector<64x128xf32>
    %19 = vector.extract_strided_slice %5 {offsets = [448, 0], sizes = [64, 128], strides = [1, 1]} : vector<768x128xf32> to vector<64x128xf32>
    %20 = arith.maximumf %18, %19 : vector<64x128xf32>
    %21 = vector.extract_strided_slice %5 {offsets = [512, 0], sizes = [64, 128], strides = [1, 1]} : vector<768x128xf32> to vector<64x128xf32>
    %22 = arith.maximumf %20, %21 : vector<64x128xf32>
    %23 = vector.extract_strided_slice %5 {offsets = [576, 0], sizes = [64, 128], strides = [1, 1]} : vector<768x128xf32> to vector<64x128xf32>
    %24 = arith.maximumf %22, %23 : vector<64x128xf32>
    %25 = vector.extract_strided_slice %5 {offsets = [640, 0], sizes = [64, 128], strides = [1, 1]} : vector<768x128xf32> to vector<64x128xf32>
    %26 = arith.maximumf %24, %25 : vector<64x128xf32>
    %27 = vector.extract_strided_slice %5 {offsets = [704, 0], sizes = [64, 128], strides = [1, 1]} : vector<768x128xf32> to vector<64x128xf32>
    %28 = arith.maximumf %26, %27 : vector<64x128xf32>
    %29 = math.tanh %28 : vector<64x128xf32>
    %c0_5 = arith.constant 0 : index
    %c0_6 = arith.constant 0 : index
    %30 = vector.load %arg3[%c0_5, %c0_6] : memref<64x128xf32, #tpu.memory_space<vmem>>, vector<64x128xf32>
    %31 = arith.addf %30, %29 : vector<64x128xf32>
    %c0_7 = arith.constant 0 : index
    %c0_8 = arith.constant 0 : index
    %32 = vector.load %arg10[%c0_7, %c0_8] : memref<64x128xf32, #tpu.memory_space<vmem>>, vector<64x128xf32>
    tpu.vector_store %arg10[%c0_7, %c0_8], %31 {strides = array<i32>} : memref<64x128xf32, #tpu.memory_space<vmem>>, vector<64x128xf32>,
    %33 = tpu.iota {dimensions = array<i32: 1>} : vector<1x512xi32>
    %c128_i32 = arith.constant 128 : i32
    %c0_i32 = arith.constant 0 : i32
    %34 = arith.cmpi eq, %c128_i32, %c0_i32 : i32
    %c1_i32 = arith.constant 1 : i32
    %35 = arith.select %34, %c1_i32, %c128_i32 : i32
    %36 = vector.broadcast %35 : i32 to vector<1x512xi32>
    %37 = arith.remsi %33, %36 : vector<1x512xi32>
    %c0_i32_9 = arith.constant 0 : i32
    %38 = vector.broadcast %c0_i32_9 : i32 to vector<1x512xi32>
    %39 = arith.cmpi ne, %37, %38 : vector<1x512xi32>
    %c0_i32_10 = arith.constant 0 : i32
    %40 = vector.broadcast %c0_i32_10 : i32 to vector<1x512xi32>
    %41 = arith.cmpi slt, %37, %40 : vector<1x512xi32>
    %c0_i32_11 = arith.constant 0 : i32
    %42 = arith.cmpi slt, %35, %c0_i32_11 : i32
    %43 = vector.broadcast %42 : i1 to vector<1x512xi1>
    %44 = vector.broadcast %43 : vector<1x512xi1> to vector<1x512xi1>
    %45 = arith.xori %41, %44 : vector<1x512xi1>
    %46 = arith.andi %45, %39 : vector<1x512xi1>
    %47 = vector.broadcast %35 : i32 to vector<1x512xi32>
    %48 = arith.addi %37, %47 : vector<1x512xi32>
    %49 = arith.select %46, %48, %37 : vector<1x512xi1>, vector<1x512xi32>
    %c32_i32 = arith.constant 32 : i32
    %50 = vector.broadcast %c32_i32 : i32 to vector<1x512xi32>
    %51 = arith.cmpi slt, %49, %50 : vector<1x512xi32>
    %52 = tpu.iota {dimensions = array<i32: 1>} : vector<1x128xi32>
    %c32_i32_12 = arith.constant 32 : i32
    %53 = vector.broadcast %c32_i32_12 : i32 to vector<1x128xi32>
    %54 = arith.cmpi slt, %52, %53 : vector<1x128xi32>
    %c0_13 = arith.constant 0 : index
    %c0_14 = arith.constant 0 : index
    %55 = vector.load %arg4[%c0_13, %c0_14] : memref<128x512xf32, #tpu.memory_space<vmem>>, vector<128x512xf32>
    %cst_15 = arith.constant dense<0.000000e+00> : vector<64x512xf32>
    %56 = tpu.matmul %31, %55, %cst_15 {dimension_numbers = #tpu.dot_dimension_numbers<[1], [0], [0], [1], [0, 0, 1, 1], [], []>} : vector<64x128xf32>, vector<128x512xf32>, vector<64x512xf32> -> vector<64x512xf32>
    %c0_16 = arith.constant 0 : index
    %c0_17 = arith.constant 0 : index
    %57 = vector.load %arg6[%c0_16, %c0_17] : memref<1x512xf32, #tpu.memory_space<vmem>>, vector<1x512xf32>
    %58 = vector.broadcast %57 : vector<1x512xf32> to vector<64x512xf32>
    %59 = arith.addf %56, %58 : vector<64x512xf32>
    %60 = vector.extract_strided_slice %59 {offsets = [0, 0], sizes = [8, 512], strides = [1, 1]} : vector<64x512xf32> to vector<8x512xf32>
    %61 = vector.extract_strided_slice %59 {offsets = [56, 0], sizes = [8, 512], strides = [1, 1]} : vector<64x512xf32> to vector<8x512xf32>
    %62 = vector.shape_cast %51 : vector<1x512xi1> to vector<1x512xi1>
    %63 = vector.broadcast %62 : vector<1x512xi1> to vector<8x512xi1>
    %64 = arith.select %63, %60, %61 : vector<8x512xi1>, vector<8x512xf32>
    %65 = vector.extract_strided_slice %59 {offsets = [8, 0], sizes = [8, 512], strides = [1, 1]} : vector<64x512xf32> to vector<8x512xf32>
    %66 = vector.extract_strided_slice %59 {offsets = [48, 0], sizes = [8, 512], strides = [1, 1]} : vector<64x512xf32> to vector<8x512xf32>
    %67 = vector.shape_cast %51 : vector<1x512xi1> to vector<1x512xi1>
    %68 = vector.broadcast %67 : vector<1x512xi1> to vector<8x512xi1>
    %69 = arith.select %68, %65, %66 : vector<8x512xi1>, vector<8x512xf32>
    %70 = vector.extract_strided_slice %59 {offsets = [16, 0], sizes = [8, 512], strides = [1, 1]} : vector<64x512xf32> to vector<8x512xf32>
    %71 = vector.extract_strided_slice %59 {offsets = [40, 0], sizes = [8, 512], strides = [1, 1]} : vector<64x512xf32> to vector<8x512xf32>
    %72 = vector.shape_cast %51 : vector<1x512xi1> to vector<1x512xi1>
    %73 = vector.broadcast %72 : vector<1x512xi1> to vector<8x512xi1>
    %74 = arith.select %73, %70, %71 : vector<8x512xi1>, vector<8x512xf32>
    %75 = vector.extract_strided_slice %59 {offsets = [24, 0], sizes = [8, 512], strides = [1, 1]} : vector<64x512xf32> to vector<8x512xf32>
    %76 = vector.extract_strided_slice %59 {offsets = [32, 0], sizes = [8, 512], strides = [1, 1]} : vector<64x512xf32> to vector<8x512xf32>
    %77 = vector.shape_cast %51 : vector<1x512xi1> to vector<1x512xi1>
    %78 = vector.broadcast %77 : vector<1x512xi1> to vector<8x512xi1>
    %79 = arith.select %78, %75, %76 : vector<8x512xi1>, vector<8x512xf32>
    %80 = vector.extract_strided_slice %59 {offsets = [32, 0], sizes = [8, 512], strides = [1, 1]} : vector<64x512xf32> to vector<8x512xf32>
    %81 = vector.extract_strided_slice %59 {offsets = [24, 0], sizes = [8, 512], strides = [1, 1]} : vector<64x512xf32> to vector<8x512xf32>
    %82 = vector.shape_cast %51 : vector<1x512xi1> to vector<1x512xi1>
    %83 = vector.broadcast %82 : vector<1x512xi1> to vector<8x512xi1>
    %84 = arith.select %83, %80, %81 : vector<8x512xi1>, vector<8x512xf32>
    %85 = vector.extract_strided_slice %59 {offsets = [40, 0], sizes = [8, 512], strides = [1, 1]} : vector<64x512xf32> to vector<8x512xf32>
    %86 = vector.extract_strided_slice %59 {offsets = [16, 0], sizes = [8, 512], strides = [1, 1]} : vector<64x512xf32> to vector<8x512xf32>
    %87 = vector.shape_cast %51 : vector<1x512xi1> to vector<1x512xi1>
    %88 = vector.broadcast %87 : vector<1x512xi1> to vector<8x512xi1>
    %89 = arith.select %88, %85, %86 : vector<8x512xi1>, vector<8x512xf32>
    %90 = vector.extract_strided_slice %59 {offsets = [48, 0], sizes = [8, 512], strides = [1, 1]} : vector<64x512xf32> to vector<8x512xf32>
    %91 = vector.extract_strided_slice %59 {offsets = [8, 0], sizes = [8, 512], strides = [1, 1]} : vector<64x512xf32> to vector<8x512xf32>
    %92 = vector.shape_cast %51 : vector<1x512xi1> to vector<1x512xi1>
    %93 = vector.broadcast %92 : vector<1x512xi1> to vector<8x512xi1>
    %94 = arith.select %93, %90, %91 : vector<8x512xi1>, vector<8x512xf32>
    %95 = vector.extract_strided_slice %59 {offsets = [56, 0], sizes = [8, 512], strides = [1, 1]} : vector<64x512xf32> to vector<8x512xf32>
    %96 = vector.extract_strided_slice %59 {offsets = [0, 0], sizes = [8, 512], strides = [1, 1]} : vector<64x512xf32> to vector<8x512xf32>
    %97 = vector.shape_cast %51 : vector<1x512xi1> to vector<1x512xi1>
    %98 = vector.broadcast %97 : vector<1x512xi1> to vector<8x512xi1>
    %99 = arith.select %98, %95, %96 : vector<8x512xi1>, vector<8x512xf32>
    %100 = tpu.concatenate %64, %69, %74, %79, %84, %89, %94, %99 in 0 : vector<8x512xf32>, vector<8x512xf32>, vector<8x512xf32>, vector<8x512xf32>, vector<8x512xf32>, vector<8x512xf32>, vector<8x512xf32>, vector<8x512xf32> -> vector<64x512xf32>
    %c0_18 = arith.constant 0 : index
    %c0_19 = arith.constant 0 : index
    %101 = vector.load %arg5[%c0_18, %c0_19] : memref<128x512xf32, #tpu.memory_space<vmem>>, vector<128x512xf32>
    %cst_20 = arith.constant 0.000000e+00 : f32
    %102 = vector.broadcast %cst_20 : f32 to vector<8x128xf32>
    %cst_21 = arith.constant 0.000000e+00 : f32
    %103 = vector.broadcast %cst_21 : f32 to vector<8x128xf32>
    %104 = vector.extract_strided_slice %100 {offsets = [0, 0], sizes = [8, 512], strides = [1, 1]} : vector<64x512xf32> to vector<8x512xf32>
    %cst_22 = arith.constant dense<0.000000e+00> : vector<8x512xf32>
    %105 = tpu.matmul %102, %101, %cst_22 {dimension_numbers = #tpu.dot_dimension_numbers<[1], [0], [0], [1], [0, 0, 1, 1], [], []>} : vector<8x128xf32>, vector<128x512xf32>, vector<8x512xf32> -> vector<8x512xf32>
    %106 = arith.addf %104, %105 : vector<8x512xf32>
    %107 = vector.extract_strided_slice %106 {offsets = [0, 0], sizes = [8, 384], strides = [1, 1]} : vector<8x512xf32> to vector<8x384xf32>
    %108 = arith.negf %107 : vector<8x384xf32>
    %109 = math.exp %108 : vector<8x384xf32>
    %cst_23 = arith.constant 1.000000e+00 : f32
    %110 = vector.broadcast %cst_23 : f32 to vector<8x384xf32>
    %111 = arith.addf %110, %109 : vector<8x384xf32>
    %112 = arith.divf %110, %111 : vector<8x384xf32>
    %113 = vector.extract_strided_slice %106 {offsets = [0, 384], sizes = [8, 128], strides = [1, 1]} : vector<8x512xf32> to vector<8x128xf32>
    %114 = math.tanh %113 : vector<8x128xf32>
    %115 = vector.extract_strided_slice %112 {offsets = [0, 128], sizes = [8, 128], strides = [1, 1]} : vector<8x384xf32> to vector<8x128xf32>
    %116 = arith.mulf %115, %103 : vector<8x128xf32>
    %117 = vector.extract_strided_slice %112 {offsets = [0, 0], sizes = [8, 128], strides = [1, 1]} : vector<8x384xf32> to vector<8x128xf32>
    %118 = arith.mulf %117, %114 : vector<8x128xf32>
    %119 = arith.addf %116, %118 : vector<8x128xf32>
    %120 = vector.extract_strided_slice %112 {offsets = [0, 256], sizes = [8, 128], strides = [1, 1]} : vector<8x384xf32> to vector<8x128xf32>
    %121 = math.tanh %119 : vector<8x128xf32>
    %122 = arith.mulf %120, %121 : vector<8x128xf32>
    %123 = vector.extract_strided_slice %100 {offsets = [8, 0], sizes = [8, 512], strides = [1, 1]} : vector<64x512xf32> to vector<8x512xf32>
    %cst_24 = arith.constant dense<0.000000e+00> : vector<8x512xf32>
    %124 = tpu.matmul %122, %101, %cst_24 {dimension_numbers = #tpu.dot_dimension_numbers<[1], [0], [0], [1], [0, 0, 1, 1], [], []>} : vector<8x128xf32>, vector<128x512xf32>, vector<8x512xf32> -> vector<8x512xf32>
    %125 = arith.addf %123, %124 : vector<8x512xf32>
    %126 = vector.extract_strided_slice %125 {offsets = [0, 0], sizes = [8, 384], strides = [1, 1]} : vector<8x512xf32> to vector<8x384xf32>
    %127 = arith.negf %126 : vector<8x384xf32>
    %128 = math.exp %127 : vector<8x384xf32>
    %cst_25 = arith.constant 1.000000e+00 : f32
    %129 = vector.broadcast %cst_25 : f32 to vector<8x384xf32>
    %130 = arith.addf %129, %128 : vector<8x384xf32>
    %131 = arith.divf %129, %130 : vector<8x384xf32>
    %132 = vector.extract_strided_slice %125 {offsets = [0, 384], sizes = [8, 128], strides = [1, 1]} : vector<8x512xf32> to vector<8x128xf32>
    %133 = math.tanh %132 : vector<8x128xf32>
    %134 = vector.extract_strided_slice %131 {offsets = [0, 128], sizes = [8, 128], strides = [1, 1]} : vector<8x384xf32> to vector<8x128xf32>
    %135 = arith.mulf %134, %119 : vector<8x128xf32>
    %136 = vector.extract_strided_slice %131 {offsets = [0, 0], sizes = [8, 128], strides = [1, 1]} : vector<8x384xf32> to vector<8x128xf32>
    %137 = arith.mulf %136, %133 : vector<8x128xf32>
    %138 = arith.addf %135, %137 : vector<8x128xf32>
    %139 = vector.extract_strided_slice %131 {offsets = [0, 256], sizes = [8, 128], strides = [1, 1]} : vector<8x384xf32> to vector<8x128xf32>
    %140 = math.tanh %138 : vector<8x128xf32>
    %141 = arith.mulf %139, %140 : vector<8x128xf32>
    %142 = vector.extract_strided_slice %100 {offsets = [16, 0], sizes = [8, 512], strides = [1, 1]} : vector<64x512xf32> to vector<8x512xf32>
    %cst_26 = arith.constant dense<0.000000e+00> : vector<8x512xf32>
    %143 = tpu.matmul %141, %101, %cst_26 {dimension_numbers = #tpu.dot_dimension_numbers<[1], [0], [0], [1], [0, 0, 1, 1], [], []>} : vector<8x128xf32>, vector<128x512xf32>, vector<8x512xf32> -> vector<8x512xf32>
    %144 = arith.addf %142, %143 : vector<8x512xf32>
    %145 = vector.extract_strided_slice %144 {offsets = [0, 0], sizes = [8, 384], strides = [1, 1]} : vector<8x512xf32> to vector<8x384xf32>
    %146 = arith.negf %145 : vector<8x384xf32>
    %147 = math.exp %146 : vector<8x384xf32>
    %cst_27 = arith.constant 1.000000e+00 : f32
    %148 = vector.broadcast %cst_27 : f32 to vector<8x384xf32>
    %149 = arith.addf %148, %147 : vector<8x384xf32>
    %150 = arith.divf %148, %149 : vector<8x384xf32>
    %151 = vector.extract_strided_slice %144 {offsets = [0, 384], sizes = [8, 128], strides = [1, 1]} : vector<8x512xf32> to vector<8x128xf32>
    %152 = math.tanh %151 : vector<8x128xf32>
    %153 = vector.extract_strided_slice %150 {offsets = [0, 128], sizes = [8, 128], strides = [1, 1]} : vector<8x384xf32> to vector<8x128xf32>
    %154 = arith.mulf %153, %138 : vector<8x128xf32>
    %155 = vector.extract_strided_slice %150 {offsets = [0, 0], sizes = [8, 128], strides = [1, 1]} : vector<8x384xf32> to vector<8x128xf32>
    %156 = arith.mulf %155, %152 : vector<8x128xf32>
    %157 = arith.addf %154, %156 : vector<8x128xf32>
    %158 = vector.extract_strided_slice %150 {offsets = [0, 256], sizes = [8, 128], strides = [1, 1]} : vector<8x384xf32> to vector<8x128xf32>
    %159 = math.tanh %157 : vector<8x128xf32>
    %160 = arith.mulf %158, %159 : vector<8x128xf32>
    %161 = vector.extract_strided_slice %100 {offsets = [24, 0], sizes = [8, 512], strides = [1, 1]} : vector<64x512xf32> to vector<8x512xf32>
    %cst_28 = arith.constant dense<0.000000e+00> : vector<8x512xf32>
    %162 = tpu.matmul %160, %101, %cst_28 {dimension_numbers = #tpu.dot_dimension_numbers<[1], [0], [0], [1], [0, 0, 1, 1], [], []>} : vector<8x128xf32>, vector<128x512xf32>, vector<8x512xf32> -> vector<8x512xf32>
    %163 = arith.addf %161, %162 : vector<8x512xf32>
    %164 = vector.extract_strided_slice %163 {offsets = [0, 0], sizes = [8, 384], strides = [1, 1]} : vector<8x512xf32> to vector<8x384xf32>
    %165 = arith.negf %164 : vector<8x384xf32>
    %166 = math.exp %165 : vector<8x384xf32>
    %cst_29 = arith.constant 1.000000e+00 : f32
    %167 = vector.broadcast %cst_29 : f32 to vector<8x384xf32>
    %168 = arith.addf %167, %166 : vector<8x384xf32>
    %169 = arith.divf %167, %168 : vector<8x384xf32>
    %170 = vector.extract_strided_slice %163 {offsets = [0, 384], sizes = [8, 128], strides = [1, 1]} : vector<8x512xf32> to vector<8x128xf32>
    %171 = math.tanh %170 : vector<8x128xf32>
    %172 = vector.extract_strided_slice %169 {offsets = [0, 128], sizes = [8, 128], strides = [1, 1]} : vector<8x384xf32> to vector<8x128xf32>
    %173 = arith.mulf %172, %157 : vector<8x128xf32>
    %174 = vector.extract_strided_slice %169 {offsets = [0, 0], sizes = [8, 128], strides = [1, 1]} : vector<8x384xf32> to vector<8x128xf32>
    %175 = arith.mulf %174, %171 : vector<8x128xf32>
    %176 = arith.addf %173, %175 : vector<8x128xf32>
    %177 = vector.extract_strided_slice %169 {offsets = [0, 256], sizes = [8, 128], strides = [1, 1]} : vector<8x384xf32> to vector<8x128xf32>
    %178 = math.tanh %176 : vector<8x128xf32>
    %179 = arith.mulf %177, %178 : vector<8x128xf32>
    %180 = vector.extract_strided_slice %100 {offsets = [32, 0], sizes = [8, 512], strides = [1, 1]} : vector<64x512xf32> to vector<8x512xf32>
    %cst_30 = arith.constant dense<0.000000e+00> : vector<8x512xf32>
    %181 = tpu.matmul %179, %101, %cst_30 {dimension_numbers = #tpu.dot_dimension_numbers<[1], [0], [0], [1], [0, 0, 1, 1], [], []>} : vector<8x128xf32>, vector<128x512xf32>, vector<8x512xf32> -> vector<8x512xf32>
    %182 = arith.addf %180, %181 : vector<8x512xf32>
    %183 = vector.extract_strided_slice %182 {offsets = [0, 0], sizes = [8, 384], strides = [1, 1]} : vector<8x512xf32> to vector<8x384xf32>
    %184 = arith.negf %183 : vector<8x384xf32>
    %185 = math.exp %184 : vector<8x384xf32>
    %cst_31 = arith.constant 1.000000e+00 : f32
    %186 = vector.broadcast %cst_31 : f32 to vector<8x384xf32>
    %187 = arith.addf %186, %185 : vector<8x384xf32>
    %188 = arith.divf %186, %187 : vector<8x384xf32>
    %189 = vector.extract_strided_slice %182 {offsets = [0, 384], sizes = [8, 128], strides = [1, 1]} : vector<8x512xf32> to vector<8x128xf32>
    %190 = math.tanh %189 : vector<8x128xf32>
    %191 = vector.extract_strided_slice %188 {offsets = [0, 128], sizes = [8, 128], strides = [1, 1]} : vector<8x384xf32> to vector<8x128xf32>
    %192 = arith.mulf %191, %176 : vector<8x128xf32>
    %193 = vector.extract_strided_slice %188 {offsets = [0, 0], sizes = [8, 128], strides = [1, 1]} : vector<8x384xf32> to vector<8x128xf32>
    %194 = arith.mulf %193, %190 : vector<8x128xf32>
    %195 = arith.addf %192, %194 : vector<8x128xf32>
    %196 = vector.extract_strided_slice %188 {offsets = [0, 256], sizes = [8, 128], strides = [1, 1]} : vector<8x384xf32> to vector<8x128xf32>
    %197 = math.tanh %195 : vector<8x128xf32>
    %198 = arith.mulf %196, %197 : vector<8x128xf32>
    %199 = vector.extract_strided_slice %100 {offsets = [40, 0], sizes = [8, 512], strides = [1, 1]} : vector<64x512xf32> to vector<8x512xf32>
    %cst_32 = arith.constant dense<0.000000e+00> : vector<8x512xf32>
    %200 = tpu.matmul %198, %101, %cst_32 {dimension_numbers = #tpu.dot_dimension_numbers<[1], [0], [0], [1], [0, 0, 1, 1], [], []>} : vector<8x128xf32>, vector<128x512xf32>, vector<8x512xf32> -> vector<8x512xf32>
    %201 = arith.addf %199, %200 : vector<8x512xf32>
    %202 = vector.extract_strided_slice %201 {offsets = [0, 0], sizes = [8, 384], strides = [1, 1]} : vector<8x512xf32> to vector<8x384xf32>
    %203 = arith.negf %202 : vector<8x384xf32>
    %204 = math.exp %203 : vector<8x384xf32>
    %cst_33 = arith.constant 1.000000e+00 : f32
    %205 = vector.broadcast %cst_33 : f32 to vector<8x384xf32>
    %206 = arith.addf %205, %204 : vector<8x384xf32>
    %207 = arith.divf %205, %206 : vector<8x384xf32>
    %208 = vector.extract_strided_slice %201 {offsets = [0, 384], sizes = [8, 128], strides = [1, 1]} : vector<8x512xf32> to vector<8x128xf32>
    %209 = math.tanh %208 : vector<8x128xf32>
    %210 = vector.extract_strided_slice %207 {offsets = [0, 128], sizes = [8, 128], strides = [1, 1]} : vector<8x384xf32> to vector<8x128xf32>
    %211 = arith.mulf %210, %195 : vector<8x128xf32>
    %212 = vector.extract_strided_slice %207 {offsets = [0, 0], sizes = [8, 128], strides = [1, 1]} : vector<8x384xf32> to vector<8x128xf32>
    %213 = arith.mulf %212, %209 : vector<8x128xf32>
    %214 = arith.addf %211, %213 : vector<8x128xf32>
    %215 = vector.extract_strided_slice %207 {offsets = [0, 256], sizes = [8, 128], strides = [1, 1]} : vector<8x384xf32> to vector<8x128xf32>
    %216 = math.tanh %214 : vector<8x128xf32>
    %217 = arith.mulf %215, %216 : vector<8x128xf32>
    %218 = vector.extract_strided_slice %100 {offsets = [48, 0], sizes = [8, 512], strides = [1, 1]} : vector<64x512xf32> to vector<8x512xf32>
    %cst_34 = arith.constant dense<0.000000e+00> : vector<8x512xf32>
    %219 = tpu.matmul %217, %101, %cst_34 {dimension_numbers = #tpu.dot_dimension_numbers<[1], [0], [0], [1], [0, 0, 1, 1], [], []>} : vector<8x128xf32>, vector<128x512xf32>, vector<8x512xf32> -> vector<8x512xf32>
    %220 = arith.addf %218, %219 : vector<8x512xf32>
    %221 = vector.extract_strided_slice %220 {offsets = [0, 0], sizes = [8, 384], strides = [1, 1]} : vector<8x512xf32> to vector<8x384xf32>
    %222 = arith.negf %221 : vector<8x384xf32>
    %223 = math.exp %222 : vector<8x384xf32>
    %cst_35 = arith.constant 1.000000e+00 : f32
    %224 = vector.broadcast %cst_35 : f32 to vector<8x384xf32>
    %225 = arith.addf %224, %223 : vector<8x384xf32>
    %226 = arith.divf %224, %225 : vector<8x384xf32>
    %227 = vector.extract_strided_slice %220 {offsets = [0, 384], sizes = [8, 128], strides = [1, 1]} : vector<8x512xf32> to vector<8x128xf32>
    %228 = math.tanh %227 : vector<8x128xf32>
    %229 = vector.extract_strided_slice %226 {offsets = [0, 128], sizes = [8, 128], strides = [1, 1]} : vector<8x384xf32> to vector<8x128xf32>
    %230 = arith.mulf %229, %214 : vector<8x128xf32>
    %231 = vector.extract_strided_slice %226 {offsets = [0, 0], sizes = [8, 128], strides = [1, 1]} : vector<8x384xf32> to vector<8x128xf32>
    %232 = arith.mulf %231, %228 : vector<8x128xf32>
    %233 = arith.addf %230, %232 : vector<8x128xf32>
    %234 = vector.extract_strided_slice %226 {offsets = [0, 256], sizes = [8, 128], strides = [1, 1]} : vector<8x384xf32> to vector<8x128xf32>
    %235 = math.tanh %233 : vector<8x128xf32>
    %236 = arith.mulf %234, %235 : vector<8x128xf32>
    %237 = vector.extract_strided_slice %100 {offsets = [56, 0], sizes = [8, 512], strides = [1, 1]} : vector<64x512xf32> to vector<8x512xf32>
    %cst_36 = arith.constant dense<0.000000e+00> : vector<8x512xf32>
    %238 = tpu.matmul %236, %101, %cst_36 {dimension_numbers = #tpu.dot_dimension_numbers<[1], [0], [0], [1], [0, 0, 1, 1], [], []>} : vector<8x128xf32>, vector<128x512xf32>, vector<8x512xf32> -> vector<8x512xf32>
    %239 = arith.addf %237, %238 : vector<8x512xf32>
    %240 = vector.extract_strided_slice %239 {offsets = [0, 0], sizes = [8, 384], strides = [1, 1]} : vector<8x512xf32> to vector<8x384xf32>
    %241 = arith.negf %240 : vector<8x384xf32>
    %242 = math.exp %241 : vector<8x384xf32>
    %cst_37 = arith.constant 1.000000e+00 : f32
    %243 = vector.broadcast %cst_37 : f32 to vector<8x384xf32>
    %244 = arith.addf %243, %242 : vector<8x384xf32>
    %245 = arith.divf %243, %244 : vector<8x384xf32>
    %246 = vector.extract_strided_slice %239 {offsets = [0, 384], sizes = [8, 128], strides = [1, 1]} : vector<8x512xf32> to vector<8x128xf32>
    %247 = math.tanh %246 : vector<8x128xf32>
    %248 = vector.extract_strided_slice %245 {offsets = [0, 128], sizes = [8, 128], strides = [1, 1]} : vector<8x384xf32> to vector<8x128xf32>
    %249 = arith.mulf %248, %233 : vector<8x128xf32>
    %250 = vector.extract_strided_slice %245 {offsets = [0, 0], sizes = [8, 128], strides = [1, 1]} : vector<8x384xf32> to vector<8x128xf32>
    %251 = arith.mulf %250, %247 : vector<8x128xf32>
    %252 = arith.addf %249, %251 : vector<8x128xf32>
    %253 = vector.extract_strided_slice %245 {offsets = [0, 256], sizes = [8, 128], strides = [1, 1]} : vector<8x384xf32> to vector<8x128xf32>
    %254 = math.tanh %252 : vector<8x128xf32>
    %255 = arith.mulf %253, %254 : vector<8x128xf32>
    %256 = vector.shape_cast %54 : vector<1x128xi1> to vector<1x128xi1>
    %257 = vector.broadcast %256 : vector<1x128xi1> to vector<8x128xi1>
    %258 = arith.select %257, %122, %255 : vector<8x128xi1>, vector<8x128xf32>
    %259 = vector.shape_cast %54 : vector<1x128xi1> to vector<1x128xi1>
    %260 = vector.broadcast %259 : vector<1x128xi1> to vector<8x128xi1>
    %261 = arith.select %260, %141, %236 : vector<8x128xi1>, vector<8x128xf32>
    %262 = vector.shape_cast %54 : vector<1x128xi1> to vector<1x128xi1>
    %263 = vector.broadcast %262 : vector<1x128xi1> to vector<8x128xi1>
    %264 = arith.select %263, %160, %217 : vector<8x128xi1>, vector<8x128xf32>
    %265 = vector.shape_cast %54 : vector<1x128xi1> to vector<1x128xi1>
    %266 = vector.broadcast %265 : vector<1x128xi1> to vector<8x128xi1>
    %267 = arith.select %266, %179, %198 : vector<8x128xi1>, vector<8x128xf32>
    %268 = vector.shape_cast %54 : vector<1x128xi1> to vector<1x128xi1>
    %269 = vector.broadcast %268 : vector<1x128xi1> to vector<8x128xi1>
    %270 = arith.select %269, %198, %179 : vector<8x128xi1>, vector<8x128xf32>
    %271 = vector.shape_cast %54 : vector<1x128xi1> to vector<1x128xi1>
    %272 = vector.broadcast %271 : vector<1x128xi1> to vector<8x128xi1>
    %273 = arith.select %272, %217, %160 : vector<8x128xi1>, vector<8x128xf32>
    %274 = vector.shape_cast %54 : vector<1x128xi1> to vector<1x128xi1>
    %275 = vector.broadcast %274 : vector<1x128xi1> to vector<8x128xi1>
    %276 = arith.select %275, %236, %141 : vector<8x128xi1>, vector<8x128xf32>
    %277 = vector.shape_cast %54 : vector<1x128xi1> to vector<1x128xi1>
    %278 = vector.broadcast %277 : vector<1x128xi1> to vector<8x128xi1>
    %279 = arith.select %278, %255, %122 : vector<8x128xi1>, vector<8x128xf32>
    %280 = tpu.concatenate %258, %261, %264, %267, %270, %273, %276, %279 in 0 : vector<8x128xf32>, vector<8x128xf32>, vector<8x128xf32>, vector<8x128xf32>, vector<8x128xf32>, vector<8x128xf32>, vector<8x128xf32>, vector<8x128xf32> -> vector<64x128xf32>
    %c0_38 = arith.constant 0 : index
    %c0_39 = arith.constant 0 : index
    %281 = vector.load %arg7[%c0_38, %c0_39] : memref<128x512xf32, #tpu.memory_space<vmem>>, vector<128x512xf32>
    %cst_40 = arith.constant dense<0.000000e+00> : vector<64x512xf32>
    %282 = tpu.matmul %280, %281, %cst_40 {dimension_numbers = #tpu.dot_dimension_numbers<[1], [0], [0], [1], [0, 0, 1, 1], [], []>} : vector<64x128xf32>, vector<128x512xf32>, vector<64x512xf32> -> vector<64x512xf32>
    %c0_41 = arith.constant 0 : index
    %c0_42 = arith.constant 0 : index
    %283 = vector.load %arg9[%c0_41, %c0_42] : memref<1x512xf32, #tpu.memory_space<vmem>>, vector<1x512xf32>
    %284 = vector.broadcast %283 : vector<1x512xf32> to vector<64x512xf32>
    %285 = arith.addf %282, %284 : vector<64x512xf32>
    %286 = vector.extract_strided_slice %285 {offsets = [0, 0], sizes = [8, 512], strides = [1, 1]} : vector<64x512xf32> to vector<8x512xf32>
    %287 = vector.extract_strided_slice %285 {offsets = [56, 0], sizes = [8, 512], strides = [1, 1]} : vector<64x512xf32> to vector<8x512xf32>
    %288 = vector.shape_cast %51 : vector<1x512xi1> to vector<1x512xi1>
    %289 = vector.broadcast %288 : vector<1x512xi1> to vector<8x512xi1>
    %290 = arith.select %289, %286, %287 : vector<8x512xi1>, vector<8x512xf32>
    %291 = vector.extract_strided_slice %285 {offsets = [8, 0], sizes = [8, 512], strides = [1, 1]} : vector<64x512xf32> to vector<8x512xf32>
    %292 = vector.extract_strided_slice %285 {offsets = [48, 0], sizes = [8, 512], strides = [1, 1]} : vector<64x512xf32> to vector<8x512xf32>
    %293 = vector.shape_cast %51 : vector<1x512xi1> to vector<1x512xi1>
    %294 = vector.broadcast %293 : vector<1x512xi1> to vector<8x512xi1>
    %295 = arith.select %294, %291, %292 : vector<8x512xi1>, vector<8x512xf32>
    %296 = vector.extract_strided_slice %285 {offsets = [16, 0], sizes = [8, 512], strides = [1, 1]} : vector<64x512xf32> to vector<8x512xf32>
    %297 = vector.extract_strided_slice %285 {offsets = [40, 0], sizes = [8, 512], strides = [1, 1]} : vector<64x512xf32> to vector<8x512xf32>
    %298 = vector.shape_cast %51 : vector<1x512xi1> to vector<1x512xi1>
    %299 = vector.broadcast %298 : vector<1x512xi1> to vector<8x512xi1>
    %300 = arith.select %299, %296, %297 : vector<8x512xi1>, vector<8x512xf32>
    %301 = vector.extract_strided_slice %285 {offsets = [24, 0], sizes = [8, 512], strides = [1, 1]} : vector<64x512xf32> to vector<8x512xf32>
    %302 = vector.extract_strided_slice %285 {offsets = [32, 0], sizes = [8, 512], strides = [1, 1]} : vector<64x512xf32> to vector<8x512xf32>
    %303 = vector.shape_cast %51 : vector<1x512xi1> to vector<1x512xi1>
    %304 = vector.broadcast %303 : vector<1x512xi1> to vector<8x512xi1>
    %305 = arith.select %304, %301, %302 : vector<8x512xi1>, vector<8x512xf32>
    %306 = vector.extract_strided_slice %285 {offsets = [32, 0], sizes = [8, 512], strides = [1, 1]} : vector<64x512xf32> to vector<8x512xf32>
    %307 = vector.extract_strided_slice %285 {offsets = [24, 0], sizes = [8, 512], strides = [1, 1]} : vector<64x512xf32> to vector<8x512xf32>
    %308 = vector.shape_cast %51 : vector<1x512xi1> to vector<1x512xi1>
    %309 = vector.broadcast %308 : vector<1x512xi1> to vector<8x512xi1>
    %310 = arith.select %309, %306, %307 : vector<8x512xi1>, vector<8x512xf32>
    %311 = vector.extract_strided_slice %285 {offsets = [40, 0], sizes = [8, 512], strides = [1, 1]} : vector<64x512xf32> to vector<8x512xf32>
    %312 = vector.extract_strided_slice %285 {offsets = [16, 0], sizes = [8, 512], strides = [1, 1]} : vector<64x512xf32> to vector<8x512xf32>
    %313 = vector.shape_cast %51 : vector<1x512xi1> to vector<1x512xi1>
    %314 = vector.broadcast %313 : vector<1x512xi1> to vector<8x512xi1>
    %315 = arith.select %314, %311, %312 : vector<8x512xi1>, vector<8x512xf32>
    %316 = vector.extract_strided_slice %285 {offsets = [48, 0], sizes = [8, 512], strides = [1, 1]} : vector<64x512xf32> to vector<8x512xf32>
    %317 = vector.extract_strided_slice %285 {offsets = [8, 0], sizes = [8, 512], strides = [1, 1]} : vector<64x512xf32> to vector<8x512xf32>
    %318 = vector.shape_cast %51 : vector<1x512xi1> to vector<1x512xi1>
    %319 = vector.broadcast %318 : vector<1x512xi1> to vector<8x512xi1>
    %320 = arith.select %319, %316, %317 : vector<8x512xi1>, vector<8x512xf32>
    %321 = vector.extract_strided_slice %285 {offsets = [56, 0], sizes = [8, 512], strides = [1, 1]} : vector<64x512xf32> to vector<8x512xf32>
    %322 = vector.extract_strided_slice %285 {offsets = [0, 0], sizes = [8, 512], strides = [1, 1]} : vector<64x512xf32> to vector<8x512xf32>
    %323 = vector.shape_cast %51 : vector<1x512xi1> to vector<1x512xi1>
    %324 = vector.broadcast %323 : vector<1x512xi1> to vector<8x512xi1>
    %325 = arith.select %324, %321, %322 : vector<8x512xi1>, vector<8x512xf32>
    %326 = tpu.concatenate %290, %295, %300, %305, %310, %315, %320, %325 in 0 : vector<8x512xf32>, vector<8x512xf32>, vector<8x512xf32>, vector<8x512xf32>, vector<8x512xf32>, vector<8x512xf32>, vector<8x512xf32>, vector<8x512xf32> -> vector<64x512xf32>
    %c0_43 = arith.constant 0 : index
    %c0_44 = arith.constant 0 : index
    %327 = vector.load %arg8[%c0_43, %c0_44] : memref<128x512xf32, #tpu.memory_space<vmem>>, vector<128x512xf32>
    %cst_45 = arith.constant 0.000000e+00 : f32
    %328 = vector.broadcast %cst_45 : f32 to vector<8x128xf32>
    %cst_46 = arith.constant 0.000000e+00 : f32
    %329 = vector.broadcast %cst_46 : f32 to vector<8x128xf32>
    %330 = vector.extract_strided_slice %326 {offsets = [0, 0], sizes = [8, 512], strides = [1, 1]} : vector<64x512xf32> to vector<8x512xf32>
    %cst_47 = arith.constant dense<0.000000e+00> : vector<8x512xf32>
    %331 = tpu.matmul %328, %327, %cst_47 {dimension_numbers = #tpu.dot_dimension_numbers<[1], [0], [0], [1], [0, 0, 1, 1], [], []>} : vector<8x128xf32>, vector<128x512xf32>, vector<8x512xf32> -> vector<8x512xf32>
    %332 = arith.addf %330, %331 : vector<8x512xf32>
    %333 = vector.extract_strided_slice %332 {offsets = [0, 0], sizes = [8, 384], strides = [1, 1]} : vector<8x512xf32> to vector<8x384xf32>
    %334 = arith.negf %333 : vector<8x384xf32>
    %335 = math.exp %334 : vector<8x384xf32>
    %cst_48 = arith.constant 1.000000e+00 : f32
    %336 = vector.broadcast %cst_48 : f32 to vector<8x384xf32>
    %337 = arith.addf %336, %335 : vector<8x384xf32>
    %338 = arith.divf %336, %337 : vector<8x384xf32>
    %339 = vector.extract_strided_slice %332 {offsets = [0, 384], sizes = [8, 128], strides = [1, 1]} : vector<8x512xf32> to vector<8x128xf32>
    %340 = math.tanh %339 : vector<8x128xf32>
    %341 = vector.extract_strided_slice %338 {offsets = [0, 128], sizes = [8, 128], strides = [1, 1]} : vector<8x384xf32> to vector<8x128xf32>
    %342 = arith.mulf %341, %329 : vector<8x128xf32>
    %343 = vector.extract_strided_slice %338 {offsets = [0, 0], sizes = [8, 128], strides = [1, 1]} : vector<8x384xf32> to vector<8x128xf32>
    %344 = arith.mulf %343, %340 : vector<8x128xf32>
    %345 = arith.addf %342, %344 : vector<8x128xf32>
    %346 = vector.extract_strided_slice %338 {offsets = [0, 256], sizes = [8, 128], strides = [1, 1]} : vector<8x384xf32> to vector<8x128xf32>
    %347 = math.tanh %345 : vector<8x128xf32>
    %348 = arith.mulf %346, %347 : vector<8x128xf32>
    %349 = vector.extract_strided_slice %326 {offsets = [8, 0], sizes = [8, 512], strides = [1, 1]} : vector<64x512xf32> to vector<8x512xf32>
    %cst_49 = arith.constant dense<0.000000e+00> : vector<8x512xf32>
    %350 = tpu.matmul %348, %327, %cst_49 {dimension_numbers = #tpu.dot_dimension_numbers<[1], [0], [0], [1], [0, 0, 1, 1], [], []>} : vector<8x128xf32>, vector<128x512xf32>, vector<8x512xf32> -> vector<8x512xf32>
    %351 = arith.addf %349, %350 : vector<8x512xf32>
    %352 = vector.extract_strided_slice %351 {offsets = [0, 0], sizes = [8, 384], strides = [1, 1]} : vector<8x512xf32> to vector<8x384xf32>
    %353 = arith.negf %352 : vector<8x384xf32>
    %354 = math.exp %353 : vector<8x384xf32>
    %cst_50 = arith.constant 1.000000e+00 : f32
    %355 = vector.broadcast %cst_50 : f32 to vector<8x384xf32>
    %356 = arith.addf %355, %354 : vector<8x384xf32>
    %357 = arith.divf %355, %356 : vector<8x384xf32>
    %358 = vector.extract_strided_slice %351 {offsets = [0, 384], sizes = [8, 128], strides = [1, 1]} : vector<8x512xf32> to vector<8x128xf32>
    %359 = math.tanh %358 : vector<8x128xf32>
    %360 = vector.extract_strided_slice %357 {offsets = [0, 128], sizes = [8, 128], strides = [1, 1]} : vector<8x384xf32> to vector<8x128xf32>
    %361 = arith.mulf %360, %345 : vector<8x128xf32>
    %362 = vector.extract_strided_slice %357 {offsets = [0, 0], sizes = [8, 128], strides = [1, 1]} : vector<8x384xf32> to vector<8x128xf32>
    %363 = arith.mulf %362, %359 : vector<8x128xf32>
    %364 = arith.addf %361, %363 : vector<8x128xf32>
    %365 = vector.extract_strided_slice %357 {offsets = [0, 256], sizes = [8, 128], strides = [1, 1]} : vector<8x384xf32> to vector<8x128xf32>
    %366 = math.tanh %364 : vector<8x128xf32>
    %367 = arith.mulf %365, %366 : vector<8x128xf32>
    %368 = vector.extract_strided_slice %326 {offsets = [16, 0], sizes = [8, 512], strides = [1, 1]} : vector<64x512xf32> to vector<8x512xf32>
    %cst_51 = arith.constant dense<0.000000e+00> : vector<8x512xf32>
    %369 = tpu.matmul %367, %327, %cst_51 {dimension_numbers = #tpu.dot_dimension_numbers<[1], [0], [0], [1], [0, 0, 1, 1], [], []>} : vector<8x128xf32>, vector<128x512xf32>, vector<8x512xf32> -> vector<8x512xf32>
    %370 = arith.addf %368, %369 : vector<8x512xf32>
    %371 = vector.extract_strided_slice %370 {offsets = [0, 0], sizes = [8, 384], strides = [1, 1]} : vector<8x512xf32> to vector<8x384xf32>
    %372 = arith.negf %371 : vector<8x384xf32>
    %373 = math.exp %372 : vector<8x384xf32>
    %cst_52 = arith.constant 1.000000e+00 : f32
    %374 = vector.broadcast %cst_52 : f32 to vector<8x384xf32>
    %375 = arith.addf %374, %373 : vector<8x384xf32>
    %376 = arith.divf %374, %375 : vector<8x384xf32>
    %377 = vector.extract_strided_slice %370 {offsets = [0, 384], sizes = [8, 128], strides = [1, 1]} : vector<8x512xf32> to vector<8x128xf32>
    %378 = math.tanh %377 : vector<8x128xf32>
    %379 = vector.extract_strided_slice %376 {offsets = [0, 128], sizes = [8, 128], strides = [1, 1]} : vector<8x384xf32> to vector<8x128xf32>
    %380 = arith.mulf %379, %364 : vector<8x128xf32>
    %381 = vector.extract_strided_slice %376 {offsets = [0, 0], sizes = [8, 128], strides = [1, 1]} : vector<8x384xf32> to vector<8x128xf32>
    %382 = arith.mulf %381, %378 : vector<8x128xf32>
    %383 = arith.addf %380, %382 : vector<8x128xf32>
    %384 = vector.extract_strided_slice %376 {offsets = [0, 256], sizes = [8, 128], strides = [1, 1]} : vector<8x384xf32> to vector<8x128xf32>
    %385 = math.tanh %383 : vector<8x128xf32>
    %386 = arith.mulf %384, %385 : vector<8x128xf32>
    %387 = vector.extract_strided_slice %326 {offsets = [24, 0], sizes = [8, 512], strides = [1, 1]} : vector<64x512xf32> to vector<8x512xf32>
    %cst_53 = arith.constant dense<0.000000e+00> : vector<8x512xf32>
    %388 = tpu.matmul %386, %327, %cst_53 {dimension_numbers = #tpu.dot_dimension_numbers<[1], [0], [0], [1], [0, 0, 1, 1], [], []>} : vector<8x128xf32>, vector<128x512xf32>, vector<8x512xf32> -> vector<8x512xf32>
    %389 = arith.addf %387, %388 : vector<8x512xf32>
    %390 = vector.extract_strided_slice %389 {offsets = [0, 0], sizes = [8, 384], strides = [1, 1]} : vector<8x512xf32> to vector<8x384xf32>
    %391 = arith.negf %390 : vector<8x384xf32>
    %392 = math.exp %391 : vector<8x384xf32>
    %cst_54 = arith.constant 1.000000e+00 : f32
    %393 = vector.broadcast %cst_54 : f32 to vector<8x384xf32>
    %394 = arith.addf %393, %392 : vector<8x384xf32>
    %395 = arith.divf %393, %394 : vector<8x384xf32>
    %396 = vector.extract_strided_slice %389 {offsets = [0, 384], sizes = [8, 128], strides = [1, 1]} : vector<8x512xf32> to vector<8x128xf32>
    %397 = math.tanh %396 : vector<8x128xf32>
    %398 = vector.extract_strided_slice %395 {offsets = [0, 128], sizes = [8, 128], strides = [1, 1]} : vector<8x384xf32> to vector<8x128xf32>
    %399 = arith.mulf %398, %383 : vector<8x128xf32>
    %400 = vector.extract_strided_slice %395 {offsets = [0, 0], sizes = [8, 128], strides = [1, 1]} : vector<8x384xf32> to vector<8x128xf32>
    %401 = arith.mulf %400, %397 : vector<8x128xf32>
    %402 = arith.addf %399, %401 : vector<8x128xf32>
    %403 = vector.extract_strided_slice %395 {offsets = [0, 256], sizes = [8, 128], strides = [1, 1]} : vector<8x384xf32> to vector<8x128xf32>
    %404 = math.tanh %402 : vector<8x128xf32>
    %405 = arith.mulf %403, %404 : vector<8x128xf32>
    %406 = vector.extract_strided_slice %326 {offsets = [32, 0], sizes = [8, 512], strides = [1, 1]} : vector<64x512xf32> to vector<8x512xf32>
    %cst_55 = arith.constant dense<0.000000e+00> : vector<8x512xf32>
    %407 = tpu.matmul %405, %327, %cst_55 {dimension_numbers = #tpu.dot_dimension_numbers<[1], [0], [0], [1], [0, 0, 1, 1], [], []>} : vector<8x128xf32>, vector<128x512xf32>, vector<8x512xf32> -> vector<8x512xf32>
    %408 = arith.addf %406, %407 : vector<8x512xf32>
    %409 = vector.extract_strided_slice %408 {offsets = [0, 0], sizes = [8, 384], strides = [1, 1]} : vector<8x512xf32> to vector<8x384xf32>
    %410 = arith.negf %409 : vector<8x384xf32>
    %411 = math.exp %410 : vector<8x384xf32>
    %cst_56 = arith.constant 1.000000e+00 : f32
    %412 = vector.broadcast %cst_56 : f32 to vector<8x384xf32>
    %413 = arith.addf %412, %411 : vector<8x384xf32>
    %414 = arith.divf %412, %413 : vector<8x384xf32>
    %415 = vector.extract_strided_slice %408 {offsets = [0, 384], sizes = [8, 128], strides = [1, 1]} : vector<8x512xf32> to vector<8x128xf32>
    %416 = math.tanh %415 : vector<8x128xf32>
    %417 = vector.extract_strided_slice %414 {offsets = [0, 128], sizes = [8, 128], strides = [1, 1]} : vector<8x384xf32> to vector<8x128xf32>
    %418 = arith.mulf %417, %402 : vector<8x128xf32>
    %419 = vector.extract_strided_slice %414 {offsets = [0, 0], sizes = [8, 128], strides = [1, 1]} : vector<8x384xf32> to vector<8x128xf32>
    %420 = arith.mulf %419, %416 : vector<8x128xf32>
    %421 = arith.addf %418, %420 : vector<8x128xf32>
    %422 = vector.extract_strided_slice %414 {offsets = [0, 256], sizes = [8, 128], strides = [1, 1]} : vector<8x384xf32> to vector<8x128xf32>
    %423 = math.tanh %421 : vector<8x128xf32>
    %424 = arith.mulf %422, %423 : vector<8x128xf32>
    %425 = vector.extract_strided_slice %326 {offsets = [40, 0], sizes = [8, 512], strides = [1, 1]} : vector<64x512xf32> to vector<8x512xf32>
    %cst_57 = arith.constant dense<0.000000e+00> : vector<8x512xf32>
    %426 = tpu.matmul %424, %327, %cst_57 {dimension_numbers = #tpu.dot_dimension_numbers<[1], [0], [0], [1], [0, 0, 1, 1], [], []>} : vector<8x128xf32>, vector<128x512xf32>, vector<8x512xf32> -> vector<8x512xf32>
    %427 = arith.addf %425, %426 : vector<8x512xf32>
    %428 = vector.extract_strided_slice %427 {offsets = [0, 0], sizes = [8, 384], strides = [1, 1]} : vector<8x512xf32> to vector<8x384xf32>
    %429 = arith.negf %428 : vector<8x384xf32>
    %430 = math.exp %429 : vector<8x384xf32>
    %cst_58 = arith.constant 1.000000e+00 : f32
    %431 = vector.broadcast %cst_58 : f32 to vector<8x384xf32>
    %432 = arith.addf %431, %430 : vector<8x384xf32>
    %433 = arith.divf %431, %432 : vector<8x384xf32>
    %434 = vector.extract_strided_slice %427 {offsets = [0, 384], sizes = [8, 128], strides = [1, 1]} : vector<8x512xf32> to vector<8x128xf32>
    %435 = math.tanh %434 : vector<8x128xf32>
    %436 = vector.extract_strided_slice %433 {offsets = [0, 128], sizes = [8, 128], strides = [1, 1]} : vector<8x384xf32> to vector<8x128xf32>
    %437 = arith.mulf %436, %421 : vector<8x128xf32>
    %438 = vector.extract_strided_slice %433 {offsets = [0, 0], sizes = [8, 128], strides = [1, 1]} : vector<8x384xf32> to vector<8x128xf32>
    %439 = arith.mulf %438, %435 : vector<8x128xf32>
    %440 = arith.addf %437, %439 : vector<8x128xf32>
    %441 = vector.extract_strided_slice %433 {offsets = [0, 256], sizes = [8, 128], strides = [1, 1]} : vector<8x384xf32> to vector<8x128xf32>
    %442 = math.tanh %440 : vector<8x128xf32>
    %443 = arith.mulf %441, %442 : vector<8x128xf32>
    %444 = vector.extract_strided_slice %326 {offsets = [48, 0], sizes = [8, 512], strides = [1, 1]} : vector<64x512xf32> to vector<8x512xf32>
    %cst_59 = arith.constant dense<0.000000e+00> : vector<8x512xf32>
    %445 = tpu.matmul %443, %327, %cst_59 {dimension_numbers = #tpu.dot_dimension_numbers<[1], [0], [0], [1], [0, 0, 1, 1], [], []>} : vector<8x128xf32>, vector<128x512xf32>, vector<8x512xf32> -> vector<8x512xf32>
    %446 = arith.addf %444, %445 : vector<8x512xf32>
    %447 = vector.extract_strided_slice %446 {offsets = [0, 0], sizes = [8, 384], strides = [1, 1]} : vector<8x512xf32> to vector<8x384xf32>
    %448 = arith.negf %447 : vector<8x384xf32>
    %449 = math.exp %448 : vector<8x384xf32>
    %cst_60 = arith.constant 1.000000e+00 : f32
    %450 = vector.broadcast %cst_60 : f32 to vector<8x384xf32>
    %451 = arith.addf %450, %449 : vector<8x384xf32>
    %452 = arith.divf %450, %451 : vector<8x384xf32>
    %453 = vector.extract_strided_slice %446 {offsets = [0, 384], sizes = [8, 128], strides = [1, 1]} : vector<8x512xf32> to vector<8x128xf32>
    %454 = math.tanh %453 : vector<8x128xf32>
    %455 = vector.extract_strided_slice %452 {offsets = [0, 128], sizes = [8, 128], strides = [1, 1]} : vector<8x384xf32> to vector<8x128xf32>
    %456 = arith.mulf %455, %440 : vector<8x128xf32>
    %457 = vector.extract_strided_slice %452 {offsets = [0, 0], sizes = [8, 128], strides = [1, 1]} : vector<8x384xf32> to vector<8x128xf32>
    %458 = arith.mulf %457, %454 : vector<8x128xf32>
    %459 = arith.addf %456, %458 : vector<8x128xf32>
    %460 = vector.extract_strided_slice %452 {offsets = [0, 256], sizes = [8, 128], strides = [1, 1]} : vector<8x384xf32> to vector<8x128xf32>
    %461 = math.tanh %459 : vector<8x128xf32>
    %462 = arith.mulf %460, %461 : vector<8x128xf32>
    %463 = vector.extract_strided_slice %326 {offsets = [56, 0], sizes = [8, 512], strides = [1, 1]} : vector<64x512xf32> to vector<8x512xf32>
    %cst_61 = arith.constant dense<0.000000e+00> : vector<8x512xf32>
    %464 = tpu.matmul %462, %327, %cst_61 {dimension_numbers = #tpu.dot_dimension_numbers<[1], [0], [0], [1], [0, 0, 1, 1], [], []>} : vector<8x128xf32>, vector<128x512xf32>, vector<8x512xf32> -> vector<8x512xf32>
    %465 = arith.addf %463, %464 : vector<8x512xf32>
    %466 = vector.extract_strided_slice %465 {offsets = [0, 0], sizes = [8, 384], strides = [1, 1]} : vector<8x512xf32> to vector<8x384xf32>
    %467 = arith.negf %466 : vector<8x384xf32>
    %468 = math.exp %467 : vector<8x384xf32>
    %cst_62 = arith.constant 1.000000e+00 : f32
    %469 = vector.broadcast %cst_62 : f32 to vector<8x384xf32>
    %470 = arith.addf %469, %468 : vector<8x384xf32>
    %471 = arith.divf %469, %470 : vector<8x384xf32>
    %472 = vector.extract_strided_slice %465 {offsets = [0, 384], sizes = [8, 128], strides = [1, 1]} : vector<8x512xf32> to vector<8x128xf32>
    %473 = math.tanh %472 : vector<8x128xf32>
    %474 = vector.extract_strided_slice %471 {offsets = [0, 128], sizes = [8, 128], strides = [1, 1]} : vector<8x384xf32> to vector<8x128xf32>
    %475 = arith.mulf %474, %459 : vector<8x128xf32>
    %476 = vector.extract_strided_slice %471 {offsets = [0, 0], sizes = [8, 128], strides = [1, 1]} : vector<8x384xf32> to vector<8x128xf32>
    %477 = arith.mulf %476, %473 : vector<8x128xf32>
    %478 = arith.addf %475, %477 : vector<8x128xf32>
    %479 = vector.extract_strided_slice %471 {offsets = [0, 256], sizes = [8, 128], strides = [1, 1]} : vector<8x384xf32> to vector<8x128xf32>
    %480 = math.tanh %478 : vector<8x128xf32>
    %481 = arith.mulf %479, %480 : vector<8x128xf32>
    %c0_63 = arith.constant 0 : index
    %c0_64 = arith.constant 0 : index
    %482 = vector.load %arg11[%c0_63, %c0_64] : memref<8x128xf32, #tpu.memory_space<vmem>>, vector<8x128xf32>
    tpu.vector_store %arg11[%c0_63, %c0_64], %481 {strides = array<i32>} : memref<8x128xf32, #tpu.memory_space<vmem>>, vector<8x128xf32>,
    return
  }
}

</mosaic_0001>

<llo_original>
// kernel: _lambda_.1
$region0: #{_lambda_.1}
  #allocation0 [shape = 'u32[]', space=smem, size = 0x4, offset = 0x4, fixed_abs, tag = 'smem constant byte address 0x4 - core index']
  #allocation1 [shape = 'u32[144,128]{1,0:T(1,128)}', space=vmem, size = 0x12000, scoped, tag = 'internal scratch']
  %s0 = inlined_call_operand.vmem [shape: f32[768,24], index: 0, kind: input, shape index: {}]
  %s1 = inlined_call_operand.vmem [shape: f32[24,128], index: 1, kind: input, shape index: {}]
  %s2 = inlined_call_operand.vmem [shape: f32[1,128], index: 2, kind: input, shape index: {}]
  %s3 = inlined_call_operand.vmem [shape: f32[64,128], index: 3, kind: input, shape index: {}]
  %s4 = inlined_call_operand.vmem [shape: f32[128,512], index: 4, kind: input, shape index: {}]
  %s5 = inlined_call_operand.vmem [shape: f32[128,512], index: 5, kind: input, shape index: {}]
  %s6 = inlined_call_operand.vmem [shape: f32[1,512], index: 6, kind: input, shape index: {}]
  %s7 = inlined_call_operand.vmem [shape: f32[128,512], index: 7, kind: input, shape index: {}]
  %s8 = inlined_call_operand.vmem [shape: f32[128,512], index: 8, kind: input, shape index: {}]
  %s9 = inlined_call_operand.vmem [shape: f32[1,512], index: 9, kind: input, shape index: {}]
  %s10 = inlined_call_operand.vmem [shape: f32[64,128], index: 10, kind: output, shape index: {0}]
  %s11 = inlined_call_operand.vmem [shape: f32[8,128], index: 11, kind: output, shape index: {1}]
  %12 = xla_tuple %s10, %s11
  %s13 = sld [smem:[#allocation0]]
  $region58: #{_lambda_.1} parent=0
    _
  %s15 = ssub.s32 1, %s13
  %s16 = scalar_select 0, %s15, %s13
  // Predicated region
  $region2: #{_lambda_.1} parent=0 // pred_check
    _
  $region3: #{_lambda_.1} parent=0 // pred_check_branch
    %18 = sbr.rel (0) target = $region5
  $region4: #{_lambda_.1} parent=0 // pred_region
    _
  $region5: #{_lambda_.1} parent=0 // pred_fallthru
    _
  // Predicated region
  $region6: #{_lambda_.1} parent=0 // pred_check
    _
  $region7: #{_lambda_.1} parent=0 // pred_check_branch
    %20 = sbr.rel (0) target = $region9
  $region8: #{_lambda_.1} parent=0 // pred_region
    _
  $region9: #{_lambda_.1} parent=0 // pred_fallthru
    _
  // Predicated region
  $region10: #{_lambda_.1} parent=0 // pred_check
    _
  $region11: #{_lambda_.1} parent=0 // pred_check_branch
    %22 = sbr.rel (0) target = $region13
  $region12: #{_lambda_.1} parent=0 // pred_region
    _
  $region13: #{_lambda_.1} parent=0 // pred_fallthru
    _
  // Predicated region
  $region14: #{_lambda_.1} parent=0 // pred_check
    _
  $region15: #{_lambda_.1} parent=0 // pred_check_branch
    %24 = sbr.rel (0) target = $region17
  $region16: #{_lambda_.1} parent=0 // pred_region
    _
  $region17: #{_lambda_.1} parent=0 // pred_fallthru
    _
  // Predicated region
  $region18: #{_lambda_.1} parent=0 // pred_check
    _
  $region19: #{_lambda_.1} parent=0 // pred_check_branch
    %26 = sbr.rel (0) target = $region21
  $region20: #{_lambda_.1} parent=0 // pred_region
    _
  $region21: #{_lambda_.1} parent=0 // pred_fallthru
    _
  // Predicated region
  $region22: #{_lambda_.1} parent=0 // pred_check
    _
  $region23: #{_lambda_.1} parent=0 // pred_check_branch
    %28 = sbr.rel (0) target = $region25
  $region24: #{_lambda_.1} parent=0 // pred_region
    _
  $region25: #{_lambda_.1} parent=0 // pred_fallthru
    _
  // Predicated region
  $region26: #{_lambda_.1} parent=0 // pred_check
    _
  $region27: #{_lambda_.1} parent=0 // pred_check_branch
    %30 = sbr.rel (0) target = $region29
  $region28: #{_lambda_.1} parent=0 // pred_region
    _
  $region29: #{_lambda_.1} parent=0 // pred_fallthru
    _
  // Predicated region
  $region30: #{_lambda_.1} parent=0 // pred_check
    _
  $region31: #{_lambda_.1} parent=0 // pred_check_branch
    %32 = sbr.rel (0) target = $region33
  $region32: #{_lambda_.1} parent=0 // pred_region
    _
  $region33: #{_lambda_.1} parent=0 // pred_fallthru
    _
  // Predicated region
  $region34: #{_lambda_.1} parent=0 // pred_check
    _
  $region35: #{_lambda_.1} parent=0 // pred_check_branch
    %34 = sbr.rel (0) target = $region37
  $region36: #{_lambda_.1} parent=0 // pred_region
    _
  $region37: #{_lambda_.1} parent=0 // pred_fallthru
    _
  // Predicated region
  $region38: #{_lambda_.1} parent=0 // pred_check
    _
  $region39: #{_lambda_.1} parent=0 // pred_check_branch
    %36 = sbr.rel (0) target = $region41
  $region40: #{_lambda_.1} parent=0 // pred_region
    _
  $region41: #{_lambda_.1} parent=0 // pred_fallthru
    _
  %v37 = vld [vmem:[%s0] sm:$0xff]
  %v38 = vld [vmem:[%s0 + $0x8] sm:$0xff]
  %v39 = vld [vmem:[%s0 + $0x10] sm:$0xff]
  %v40 = vld [vmem:[%s0 + $0x18] sm:$0xff]
  %v41 = vld [vmem:[%s0 + $0x20] sm:$0xff]
  %v42 = vld [vmem:[%s0 + $0x28] sm:$0xff]
  %v43 = vld [vmem:[%s0 + $0x30] sm:$0xff]
  %v44 = vld [vmem:[%s0 + $0x38] sm:$0xff]
  %v45 = vld [vmem:[%s0 + $0x40] sm:$0xff]
  %v46 = vld [vmem:[%s0 + $0x48] sm:$0xff]
  %v47 = vld [vmem:[%s0 + $0x50] sm:$0xff]
  %v48 = vld [vmem:[%s0 + $0x58] sm:$0xff]
  %v49 = vld [vmem:[%s0 + $0x60] sm:$0xff]
  %v50 = vld [vmem:[%s0 + $0x68] sm:$0xff]
  %v51 = vld [vmem:[%s0 + $0x70] sm:$0xff]
  %v52 = vld [vmem:[%s0 + $0x78] sm:$0xff]
  %v53 = vld [vmem:[%s0 + $0x80] sm:$0xff]
  %v54 = vld [vmem:[%s0 + $0x88] sm:$0xff]
  %v55 = vld [vmem:[%s0 + $0x90] sm:$0xff]
  %v56 = vld [vmem:[%s0 + $0x98] sm:$0xff]
  %v57 = vld [vmem:[%s0 + $0xa0] sm:$0xff]
  %v58 = vld [vmem:[%s0 + $0xa8] sm:$0xff]
  %v59 = vld [vmem:[%s0 + $0xb0] sm:$0xff]
  %v60 = vld [vmem:[%s0 + $0xb8] sm:$0xff]
  %v61 = vld [vmem:[%s0 + $0xc0] sm:$0xff]
  %v62 = vld [vmem:[%s0 + $0xc8] sm:$0xff]
  %v63 = vld [vmem:[%s0 + $0xd0] sm:$0xff]
  %v64 = vld [vmem:[%s0 + $0xd8] sm:$0xff]
  %v65 = vld [vmem:[%s0 + $0xe0] sm:$0xff]
  %v66 = vld [vmem:[%s0 + $0xe8] sm:$0xff]
  %v67 = vld [vmem:[%s0 + $0xf0] sm:$0xff]
  %v68 = vld [vmem:[%s0 + $0xf8] sm:$0xff]
  %v69 = vld [vmem:[%s0 + $0x100] sm:$0xff]
  %v70 = vld [vmem:[%s0 + $0x108] sm:$0xff]
  %v71 = vld [vmem:[%s0 + $0x110] sm:$0xff]
  %v72 = vld [vmem:[%s0 + $0x118] sm:$0xff]
  %v73 = vld [vmem:[%s0 + $0x120] sm:$0xff]
  %v74 = vld [vmem:[%s0 + $0x128] sm:$0xff]
  %v75 = vld [vmem:[%s0 + $0x130] sm:$0xff]
  %v76 = vld [vmem:[%s0 + $0x138] sm:$0xff]
  %v77 = vld [vmem:[%s0 + $0x140] sm:$0xff]
  %v78 = vld [vmem:[%s0 + $0x148] sm:$0xff]
  %v79 = vld [vmem:[%s0 + $0x150] sm:$0xff]
  %v80 = vld [vmem:[%s0 + $0x158] sm:$0xff]
  %v81 = vld [vmem:[%s0 + $0x160] sm:$0xff]
  %v82 = vld [vmem:[%s0 + $0x168] sm:$0xff]
  %v83 = vld [vmem:[%s0 + $0x170] sm:$0xff]
  %v84 = vld [vmem:[%s0 + $0x178] sm:$0xff]
  %v85 = vld [vmem:[%s0 + $0x180] sm:$0xff]
  %v86 = vld [vmem:[%s0 + $0x188] sm:$0xff]
  %v87 = vld [vmem:[%s0 + $0x190] sm:$0xff]
  %v88 = vld [vmem:[%s0 + $0x198] sm:$0xff]
  %v89 = vld [vmem:[%s0 + $0x1a0] sm:$0xff]
  %v90 = vld [vmem:[%s0 + $0x1a8] sm:$0xff]
  %v91 = vld [vmem:[%s0 + $0x1b0] sm:$0xff]
  %v92 = vld [vmem:[%s0 + $0x1b8] sm:$0xff]
  %v93 = vld [vmem:[%s0 + $0x1c0] sm:$0xff]
  %v94 = vld [vmem:[%s0 + $0x1c8] sm:$0xff]
  %v95 = vld [vmem:[%s0 + $0x1d0] sm:$0xff]
  %v96 = vld [vmem:[%s0 + $0x1d8] sm:$0xff]
  %v97 = vld [vmem:[%s0 + $0x1e0] sm:$0xff]
  %v98 = vld [vmem:[%s0 + $0x1e8] sm:$0xff]
  %v99 = vld [vmem:[%s0 + $0x1f0] sm:$0xff]
  %v100 = vld [vmem:[%s0 + $0x1f8] sm:$0xff]
  %v101 = vld [vmem:[%s0 + $0x200] sm:$0xff]
  %v102 = vld [vmem:[%s0 + $0x208] sm:$0xff]
  %v103 = vld [vmem:[%s0 + $0x210] sm:$0xff]
  %v104 = vld [vmem:[%s0 + $0x218] sm:$0xff]
  %v105 = vld [vmem:[%s0 + $0x220] sm:$0xff]
  %v106 = vld [vmem:[%s0 + $0x228] sm:$0xff]
  %v107 = vld [vmem:[%s0 + $0x230] sm:$0xff]
  %v108 = vld [vmem:[%s0 + $0x238] sm:$0xff]
  %v109 = vld [vmem:[%s0 + $0x240] sm:$0xff]
  %v110 = vld [vmem:[%s0 + $0x248] sm:$0xff]
  %v111 = vld [vmem:[%s0 + $0x250] sm:$0xff]
  %v112 = vld [vmem:[%s0 + $0x258] sm:$0xff]
  %v113 = vld [vmem:[%s0 + $0x260] sm:$0xff]
  %v114 = vld [vmem:[%s0 + $0x268] sm:$0xff]
  %v115 = vld [vmem:[%s0 + $0x270] sm:$0xff]
  %v116 = vld [vmem:[%s0 + $0x278] sm:$0xff]
  %v117 = vld [vmem:[%s0 + $0x280] sm:$0xff]
  %v118 = vld [vmem:[%s0 + $0x288] sm:$0xff]
  %v119 = vld [vmem:[%s0 + $0x290] sm:$0xff]
  %v120 = vld [vmem:[%s0 + $0x298] sm:$0xff]
  %v121 = vld [vmem:[%s0 + $0x2a0] sm:$0xff]
  %v122 = vld [vmem:[%s0 + $0x2a8] sm:$0xff]
  %v123 = vld [vmem:[%s0 + $0x2b0] sm:$0xff]
  %v124 = vld [vmem:[%s0 + $0x2b8] sm:$0xff]
  %v125 = vld [vmem:[%s0 + $0x2c0] sm:$0xff]
  %v126 = vld [vmem:[%s0 + $0x2c8] sm:$0xff]
  %v127 = vld [vmem:[%s0 + $0x2d0] sm:$0xff]
  %v128 = vld [vmem:[%s0 + $0x2d8] sm:$0xff]
  %v129 = vld [vmem:[%s0 + $0x2e0] sm:$0xff]
  %v130 = vld [vmem:[%s0 + $0x2e8] sm:$0xff]
  %v131 = vld [vmem:[%s0 + $0x2f0] sm:$0xff]
  %v132 = vld [vmem:[%s0 + $0x2f8] sm:$0xff]
  %v133 = vld [vmem:[%s1] sm:$0xff]
  %v134 = vld [vmem:[%s1 + $0x8] sm:$0xff]
  %v135 = vld [vmem:[%s1 + $0x10] sm:$0xff]
  %v136 = vld [vmem:[%s2] sm:$0x1]
  %v138 = vlaneseq
  %v139 = vshrl.u32 %v138, 7
  %v140 = vsub.s32 0, %v139
  %v141 = vrot.slane %v136, %v140
  %vm143 = vcmask 195584
  %v145 = vsel %vm143, %v37, 0
  %v148 = vsel %vm143, %v38, 0
  %v151 = vsel %vm143, %v39, 0
  %v154 = vsel %vm143, %v40, 0
  %v157 = vsel %vm143, %v41, 0
  %v160 = vsel %vm143, %v42, 0
  %v163 = vsel %vm143, %v43, 0
  %v166 = vsel %vm143, %v44, 0
  %v169 = vsel %vm143, %v45, 0
  %v172 = vsel %vm143, %v46, 0
  %v175 = vsel %vm143, %v47, 0
  %v178 = vsel %vm143, %v48, 0
  %v181 = vsel %vm143, %v49, 0
  %v184 = vsel %vm143, %v50, 0
  %v187 = vsel %vm143, %v51, 0
  %v190 = vsel %vm143, %v52, 0
  %v193 = vsel %vm143, %v53, 0
  %v196 = vsel %vm143, %v54, 0
  %v199 = vsel %vm143, %v55, 0
  %v202 = vsel %vm143, %v56, 0
  %v205 = vsel %vm143, %v57, 0
  %v208 = vsel %vm143, %v58, 0
  %v211 = vsel %vm143, %v59, 0
  %v214 = vsel %vm143, %v60, 0
  %v217 = vsel %vm143, %v61, 0
  %v220 = vsel %vm143, %v62, 0
  %v223 = vsel %vm143, %v63, 0
  %v226 = vsel %vm143, %v64, 0
  %v229 = vsel %vm143, %v65, 0
  %v232 = vsel %vm143, %v66, 0
  %v235 = vsel %vm143, %v67, 0
  %v238 = vsel %vm143, %v68, 0
  %v241 = vsel %vm143, %v69, 0
  %v244 = vsel %vm143, %v70, 0
  %v247 = vsel %vm143, %v71, 0
  %v250 = vsel %vm143, %v72, 0
  %v253 = vsel %vm143, %v73, 0
  %v256 = vsel %vm143, %v74, 0
  %v259 = vsel %vm143, %v75, 0
  %v262 = vsel %vm143, %v76, 0
  %v265 = vsel %vm143, %v77, 0
  %v268 = vsel %vm143, %v78, 0
  %v271 = vsel %vm143, %v79, 0
  %v274 = vsel %vm143, %v80, 0
  %v277 = vsel %vm143, %v81, 0
  %v280 = vsel %vm143, %v82, 0
  %v283 = vsel %vm143, %v83, 0
  %v286 = vsel %vm143, %v84, 0
  %v289 = vsel %vm143, %v85, 0
  %v292 = vsel %vm143, %v86, 0
  %v295 = vsel %vm143, %v87, 0
  %v298 = vsel %vm143, %v88, 0
  %v301 = vsel %vm143, %v89, 0
  %v304 = vsel %vm143, %v90, 0
  %v307 = vsel %vm143, %v91, 0
  %v310 = vsel %vm143, %v92, 0
  %v313 = vsel %vm143, %v93, 0
  %v316 = vsel %vm143, %v94, 0
  %v319 = vsel %vm143, %v95, 0
  %v322 = vsel %vm143, %v96, 0
  %v325 = vsel %vm143, %v97, 0
  %v328 = vsel %vm143, %v98, 0
  %v331 = vsel %vm143, %v99, 0
  %v334 = vsel %vm143, %v100, 0
  %v337 = vsel %vm143, %v101, 0
  %v340 = vsel %vm143, %v102, 0
  %v343 = vsel %vm143, %v103, 0
  %v346 = vsel %vm143, %v104, 0
  %v349 = vsel %vm143, %v105, 0
  %v352 = vsel %vm143, %v106, 0
  %v355 = vsel %vm143, %v107, 0
  %v358 = vsel %vm143, %v108, 0
  %v361 = vsel %vm143, %v109, 0
  %v364 = vsel %vm143, %v110, 0
  %v367 = vsel %vm143, %v111, 0
  %v370 = vsel %vm143, %v112, 0
  %v373 = vsel %vm143, %v113, 0
  %v376 = vsel %vm143, %v114, 0
  %v379 = vsel %vm143, %v115, 0
  %v382 = vsel %vm143, %v116, 0
  %v385 = vsel %vm143, %v117, 0
  %v388 = vsel %vm143, %v118, 0
  %v391 = vsel %vm143, %v119, 0
  %v394 = vsel %vm143, %v120, 0
  %v397 = vsel %vm143, %v121, 0
  %v400 = vsel %vm143, %v122, 0
  %v403 = vsel %vm143, %v123, 0
  %v406 = vsel %vm143, %v124, 0
  %v409 = vsel %vm143, %v125, 0
  %v412 = vsel %vm143, %v126, 0
  %v415 = vsel %vm143, %v127, 0
  %v418 = vsel %vm143, %v128, 0
  %v421 = vsel %vm143, %v129, 0
  %v424 = vsel %vm143, %v130, 0
  %v427 = vsel %vm143, %v131, 0
  %v430 = vsel %vm143, %v132, 0
  %432 = vmatprep.subr.mxu0 0.0
  %433 = vmatpush1.msra.mxu0 0.0
  %434 = vmatprep.subr.mxu0 0.0
  %435 = vmatpush1.msra.mxu0 0.0
  %436 = vmatprep.subr.mxu0 0.0
  %437 = vmatpush1.msra.mxu0 0.0
  %438 = vmatprep.subr.mxu0 0.0
  %439 = vmatpush1.msra.mxu0 0.0
  %440 = vmatprep.subr.mxu0 0.0
  %441 = vmatpush1.msra.mxu0 0.0
  %442 = vmatprep.subr.mxu0 0.0
  %443 = vmatpush1.msra.mxu0 0.0
  %444 = vmatprep.subr.mxu0 0.0
  %445 = vmatpush1.msra.mxu0 0.0
  %446 = vmatprep.subr.mxu0 0.0
  %447 = vmatpush1.msra.mxu0 0.0
  %448 = vmatprep.subr.mxu0 0.0
  %449 = vmatpush1.msra.mxu0 0.0
  %450 = vmatprep.subr.mxu0 0.0
  %451 = vmatpush1.msra.mxu0 0.0
  %452 = vmatprep.subr.mxu0 0.0
  %453 = vmatpush1.msra.mxu0 0.0
  %454 = vmatprep.subr.mxu0 0.0
  %455 = vmatpush1.msra.mxu0 0.0
  %456 = vmatprep.subr.mxu0 0.0
  %457 = vmatpush1.msra.mxu0 0.0
  %458 = vmatprep.subr.mxu0 0.0
  %459 = vmatpush1.msra.mxu0 %v135
  %460 = vmatprep.subr.mxu0 0.0
  %461 = vmatpush1.msra.mxu0 %v134
  %462 = vmatprep.subr.mxu0 0.0
  %463 = vmatpush1.msra.mxu0 %v133
  %464 = vmatprep.subr.mxu0 0.0
  %465 = vmatpush2.msra.mxu0 0.0
  %466 = vmatprep.subr.mxu0 0.0
  %467 = vmatpush2.msra.mxu0 0.0
  %468 = vmatprep.subr.mxu0 0.0
  %469 = vmatpush2.msra.mxu0 0.0
  %470 = vmatprep.subr.mxu0 0.0
  %471 = vmatpush2.msra.mxu0 0.0
  %472 = vmatprep.subr.mxu0 0.0
  %473 = vmatpush2.msra.mxu0 0.0
  %474 = vmatprep.subr.mxu0 0.0
  %475 = vmatpush2.msra.mxu0 0.0
  %476 = vmatprep.subr.mxu0 0.0
  %477 = vmatpush2.msra.mxu0 0.0
  %478 = vmatprep.subr.mxu0 0.0
  %479 = vmatpush2.msra.mxu0 0.0
  %480 = vmatprep.subr.mxu0 0.0
  %481 = vmatpush2.msra.mxu0 0.0
  %482 = vmatprep.subr.mxu0 0.0
  %483 = vmatpush2.msra.mxu0 0.0
  %484 = vmatprep.subr.mxu0 0.0
  %485 = vmatpush2.msra.mxu0 0.0
  %486 = vmatprep.subr.mxu0 0.0
  %487 = vmatpush2.msra.mxu0 0.0
  %488 = vmatprep.subr.mxu0 0.0
  %489 = vmatpush2.msra.mxu0 0.0
  %490 = vmatprep.subr.mxu0 0.0
  %491 = vmatpush2.msra.mxu0 0.0
  %492 = vmatprep.subr.mxu0 0.0
  %493 = vmatpush2.msra.mxu0 0.0
  %494 = vmatprep.subr.mxu0 0.0
  %495 = vmatpush2.msra.mxu0 0.0
  %496 = vmatprep.mubr.f32.mxu0 0.0
  %497 = vmatmul.mubr.f32.gmra.mxu0 %v145
  %v498 = vpop.f32.mrf.mxu0
  %v499 = vadd.f32 %v141, %v498
  %v500 = vpop.f32.mrf.mxu0
  %501 = vmatprep.mubr.f32.mxu0 0.0
  %502 = vmatmul.mubr.f32.gmra.mxu0 %v148
  %v503 = vpop.f32.mrf.mxu0
  %v504 = vadd.f32 %v141, %v503
  %v505 = vpop.f32.mrf.mxu0
  %506 = vmatprep.mubr.f32.mxu0 0.0
  %507 = vmatmul.mubr.f32.gmra.mxu0 %v151
  %v508 = vpop.f32.mrf.mxu0
  %v509 = vadd.f32 %v141, %v508
  %v510 = vpop.f32.mrf.mxu0
  %511 = vmatprep.mubr.f32.mxu0 0.0
  %512 = vmatmul.mubr.f32.gmra.mxu0 %v154
  %v513 = vpop.f32.mrf.mxu0
  %v514 = vadd.f32 %v141, %v513
  %v515 = vpop.f32.mrf.mxu0
  %516 = vmatprep.mubr.f32.mxu0 0.0
  %517 = vmatmul.mubr.f32.gmra.mxu0 %v157
  %v518 = vpop.f32.mrf.mxu0
  %v519 = vadd.f32 %v141, %v518
  %v520 = vpop.f32.mrf.mxu0
  %521 = vmatprep.mubr.f32.mxu0 0.0
  %522 = vmatmul.mubr.f32.gmra.mxu0 %v160
  %v523 = vpop.f32.mrf.mxu0
  %v524 = vadd.f32 %v141, %v523
  %v525 = vpop.f32.mrf.mxu0
  %526 = vmatprep.mubr.f32.mxu0 0.0
  %527 = vmatmul.mubr.f32.gmra.mxu0 %v163
  %v528 = vpop.f32.mrf.mxu0
  %v529 = vadd.f32 %v141, %v528
  %v530 = vpop.f32.mrf.mxu0
  %531 = vmatprep.mubr.f32.mxu0 0.0
  %532 = vmatmul.mubr.f32.gmra.mxu0 %v166
  %v533 = vpop.f32.mrf.mxu0
  %v534 = vadd.f32 %v141, %v533
  %v535 = vpop.f32.mrf.mxu0
  %536 = vmatprep.mubr.f32.mxu0 0.0
  %537 = vmatmul.mubr.f32.gmra.mxu0 %v169
  %v538 = vpop.f32.mrf.mxu0
  %v539 = vadd.f32 %v141, %v538
  %v540 = vpop.f32.mrf.mxu0
  %541 = vmatprep.mubr.f32.mxu0 0.0
  %542 = vmatmul.mubr.f32.gmra.mxu0 %v172
  %v543 = vpop.f32.mrf.mxu0
  %v544 = vadd.f32 %v141, %v543
  %v545 = vpop.f32.mrf.mxu0
  %546 = vmatprep.mubr.f32.mxu0 0.0
  %547 = vmatmul.mubr.f32.gmra.mxu0 %v175
  %v548 = vpop.f32.mrf.mxu0
  %v549 = vadd.f32 %v141, %v548
  %v550 = vpop.f32.mrf.mxu0
  %551 = vmatprep.mubr.f32.mxu0 0.0
  %552 = vmatmul.mubr.f32.gmra.mxu0 %v178
  %v553 = vpop.f32.mrf.mxu0
  %v554 = vadd.f32 %v141, %v553
  %v555 = vpop.f32.mrf.mxu0
  %556 = vmatprep.mubr.f32.mxu0 0.0
  %557 = vmatmul.mubr.f32.gmra.mxu0 %v181
  %v558 = vpop.f32.mrf.mxu0
  %v559 = vadd.f32 %v141, %v558
  %v560 = vpop.f32.mrf.mxu0
  %561 = vmatprep.mubr.f32.mxu0 0.0
  %562 = vmatmul.mubr.f32.gmra.mxu0 %v184
  %v563 = vpop.f32.mrf.mxu0
  %v564 = vadd.f32 %v141, %v563
  %v565 = vpop.f32.mrf.mxu0
  %566 = vmatprep.mubr.f32.mxu0 0.0
  %567 = vmatmul.mubr.f32.gmra.mxu0 %v187
  %v568 = vpop.f32.mrf.mxu0
  %v569 = vadd.f32 %v141, %v568
  %v570 = vpop.f32.mrf.mxu0
  %571 = vmatprep.mubr.f32.mxu0 0.0
  %572 = vmatmul.mubr.f32.gmra.mxu0 %v190
  %v573 = vpop.f32.mrf.mxu0
  %v574 = vadd.f32 %v141, %v573
  %v575 = vpop.f32.mrf.mxu0
  %576 = vmatprep.mubr.f32.mxu0 0.0
  %577 = vmatmul.mubr.f32.gmra.mxu0 %v193
  %v578 = vpop.f32.mrf.mxu0
  %v579 = vadd.f32 %v141, %v578
  %v580 = vpop.f32.mrf.mxu0
  %581 = vmatprep.mubr.f32.mxu0 0.0
  %582 = vmatmul.mubr.f32.gmra.mxu0 %v196
  %v583 = vpop.f32.mrf.mxu0
  %v584 = vadd.f32 %v141, %v583
  %v585 = vpop.f32.mrf.mxu0
  %586 = vmatprep.mubr.f32.mxu0 0.0
  %587 = vmatmul.mubr.f32.gmra.mxu0 %v199
  %v588 = vpop.f32.mrf.mxu0
  %v589 = vadd.f32 %v141, %v588
  %v590 = vpop.f32.mrf.mxu0
  %591 = vmatprep.mubr.f32.mxu0 0.0
  %592 = vmatmul.mubr.f32.gmra.mxu0 %v202
  %v593 = vpop.f32.mrf.mxu0
  %v594 = vadd.f32 %v141, %v593
  %v595 = vpop.f32.mrf.mxu0
  %596 = vmatprep.mubr.f32.mxu0 0.0
  %597 = vmatmul.mubr.f32.gmra.mxu0 %v205
  %v598 = vpop.f32.mrf.mxu0
  %v599 = vadd.f32 %v141, %v598
  %v600 = vpop.f32.mrf.mxu0
  %601 = vmatprep.mubr.f32.mxu0 0.0
  %602 = vmatmul.mubr.f32.gmra.mxu0 %v208
  %v603 = vpop.f32.mrf.mxu0
  %v604 = vadd.f32 %v141, %v603
  %v605 = vpop.f32.mrf.mxu0
  %606 = vmatprep.mubr.f32.mxu0 0.0
  %607 = vmatmul.mubr.f32.gmra.mxu0 %v211
  %v608 = vpop.f32.mrf.mxu0
  %v609 = vadd.f32 %v141, %v608
  %v610 = vpop.f32.mrf.mxu0
  %611 = vmatprep.mubr.f32.mxu0 0.0
  %612 = vmatmul.mubr.f32.gmra.mxu0 %v214
  %v613 = vpop.f32.mrf.mxu0
  %v614 = vadd.f32 %v141, %v613
  %v615 = vpop.f32.mrf.mxu0
  %616 = vmatprep.mubr.f32.mxu0 0.0
  %617 = vmatmul.mubr.f32.gmra.mxu0 %v217
  %v618 = vpop.f32.mrf.mxu0
  %v619 = vadd.f32 %v141, %v618
  %v620 = vpop.f32.mrf.mxu0
  %621 = vmatprep.mubr.f32.mxu0 0.0
  %622 = vmatmul.mubr.f32.gmra.mxu0 %v220
  %v623 = vpop.f32.mrf.mxu0
  %v624 = vadd.f32 %v141, %v623
  %v625 = vpop.f32.mrf.mxu0
  %626 = vmatprep.mubr.f32.mxu0 0.0
  %627 = vmatmul.mubr.f32.gmra.mxu0 %v223
  %v628 = vpop.f32.mrf.mxu0
  %v629 = vadd.f32 %v141, %v628
  %v630 = vpop.f32.mrf.mxu0
  %631 = vmatprep.mubr.f32.mxu0 0.0
  %632 = vmatmul.mubr.f32.gmra.mxu0 %v226
  %v633 = vpop.f32.mrf.mxu0
  %v634 = vadd.f32 %v141, %v633
  %v635 = vpop.f32.mrf.mxu0
  %636 = vmatprep.mubr.f32.mxu0 0.0
  %637 = vmatmul.mubr.f32.gmra.mxu0 %v229
  %v638 = vpop.f32.mrf.mxu0
  %v639 = vadd.f32 %v141, %v638
  %v640 = vpop.f32.mrf.mxu0
  %641 = vmatprep.mubr.f32.mxu0 0.0
  %642 = vmatmul.mubr.f32.gmra.mxu0 %v232
  %v643 = vpop.f32.mrf.mxu0
  %v644 = vadd.f32 %v141, %v643
  %v645 = vpop.f32.mrf.mxu0
  %646 = vmatprep.mubr.f32.mxu0 0.0
  %647 = vmatmul.mubr.f32.gmra.mxu0 %v235
  %v648 = vpop.f32.mrf.mxu0
  %v649 = vadd.f32 %v141, %v648
  %v650 = vpop.f32.mrf.mxu0
  %651 = vmatprep.mubr.f32.mxu0 0.0
  %652 = vmatmul.mubr.f32.gmra.mxu0 %v238
  %v653 = vpop.f32.mrf.mxu0
  %v654 = vadd.f32 %v141, %v653
  %v655 = vpop.f32.mrf.mxu0
  %656 = vmatprep.mubr.f32.mxu0 0.0
  %657 = vmatmul.mubr.f32.gmra.mxu0 %v241
  %v658 = vpop.f32.mrf.mxu0
  %v659 = vadd.f32 %v141, %v658
  %v660 = vpop.f32.mrf.mxu0
  %661 = vmatprep.mubr.f32.mxu0 0.0
  %662 = vmatmul.mubr.f32.gmra.mxu0 %v244
  %v663 = vpop.f32.mrf.mxu0
  %v664 = vadd.f32 %v141, %v663
  %v665 = vpop.f32.mrf.mxu0
  %666 = vmatprep.mubr.f32.mxu0 0.0
  %667 = vmatmul.mubr.f32.gmra.mxu0 %v247
  %v668 = vpop.f32.mrf.mxu0
  %v669 = vadd.f32 %v141, %v668
  %v670 = vpop.f32.mrf.mxu0
  %671 = vmatprep.mubr.f32.mxu0 0.0
  %672 = vmatmul.mubr.f32.gmra.mxu0 %v250
  %v673 = vpop.f32.mrf.mxu0
  %v674 = vadd.f32 %v141, %v673
  %v675 = vpop.f32.mrf.mxu0
  %676 = vmatprep.mubr.f32.mxu0 0.0
  %677 = vmatmul.mubr.f32.gmra.mxu0 %v253
  %v678 = vpop.f32.mrf.mxu0
  %v679 = vadd.f32 %v141, %v678
  %v680 = vpop.f32.mrf.mxu0
  %681 = vmatprep.mubr.f32.mxu0 0.0
  %682 = vmatmul.mubr.f32.gmra.mxu0 %v256
  %v683 = vpop.f32.mrf.mxu0
  %v684 = vadd.f32 %v141, %v683
  %v685 = vpop.f32.mrf.mxu0
  %686 = vmatprep.mubr.f32.mxu0 0.0
  %687 = vmatmul.mubr.f32.gmra.mxu0 %v259
  %v688 = vpop.f32.mrf.mxu0
  %v689 = vadd.f32 %v141, %v688
  %v690 = vpop.f32.mrf.mxu0
  %691 = vmatprep.mubr.f32.mxu0 0.0
  %692 = vmatmul.mubr.f32.gmra.mxu0 %v262
  %v693 = vpop.f32.mrf.mxu0
  %v694 = vadd.f32 %v141, %v693
  %v695 = vpop.f32.mrf.mxu0
  %696 = vmatprep.mubr.f32.mxu0 0.0
  %697 = vmatmul.mubr.f32.gmra.mxu0 %v265
  %v698 = vpop.f32.mrf.mxu0
  %v699 = vadd.f32 %v141, %v698
  %v700 = vpop.f32.mrf.mxu0
  %701 = vmatprep.mubr.f32.mxu0 0.0
  %702 = vmatmul.mubr.f32.gmra.mxu0 %v268
  %v703 = vpop.f32.mrf.mxu0
  %v704 = vadd.f32 %v141, %v703
  %v705 = vpop.f32.mrf.mxu0
  %706 = vmatprep.mubr.f32.mxu0 0.0
  %707 = vmatmul.mubr.f32.gmra.mxu0 %v271
  %v708 = vpop.f32.mrf.mxu0
  %v709 = vadd.f32 %v141, %v708
  %v710 = vpop.f32.mrf.mxu0
  %711 = vmatprep.mubr.f32.mxu0 0.0
  %712 = vmatmul.mubr.f32.gmra.mxu0 %v274
  %v713 = vpop.f32.mrf.mxu0
  %v714 = vadd.f32 %v141, %v713
  %v715 = vpop.f32.mrf.mxu0
  %716 = vmatprep.mubr.f32.mxu0 0.0
  %717 = vmatmul.mubr.f32.gmra.mxu0 %v277
  %v718 = vpop.f32.mrf.mxu0
  %v719 = vadd.f32 %v141, %v718
  %v720 = vpop.f32.mrf.mxu0
  %721 = vmatprep.mubr.f32.mxu0 0.0
  %722 = vmatmul.mubr.f32.gmra.mxu0 %v280
  %v723 = vpop.f32.mrf.mxu0
  %v724 = vadd.f32 %v141, %v723
  %v725 = vpop.f32.mrf.mxu0
  %726 = vmatprep.mubr.f32.mxu0 0.0
  %727 = vmatmul.mubr.f32.gmra.mxu0 %v283
  %v728 = vpop.f32.mrf.mxu0
  %v729 = vadd.f32 %v141, %v728
  %v730 = vpop.f32.mrf.mxu0
  %731 = vmatprep.mubr.f32.mxu0 0.0
  %732 = vmatmul.mubr.f32.gmra.mxu0 %v286
  %v733 = vpop.f32.mrf.mxu0
  %v734 = vadd.f32 %v141, %v733
  %v735 = vpop.f32.mrf.mxu0
  %736 = vmatprep.mubr.f32.mxu0 0.0
  %737 = vmatmul.mubr.f32.gmra.mxu0 %v289
  %v738 = vpop.f32.mrf.mxu0
  %v739 = vadd.f32 %v141, %v738
  %v740 = vpop.f32.mrf.mxu0
  %741 = vmatprep.mubr.f32.mxu0 0.0
  %742 = vmatmul.mubr.f32.gmra.mxu0 %v292
  %v743 = vpop.f32.mrf.mxu0
  %v744 = vadd.f32 %v141, %v743
  %v745 = vpop.f32.mrf.mxu0
  %746 = vmatprep.mubr.f32.mxu0 0.0
  %747 = vmatmul.mubr.f32.gmra.mxu0 %v295
  %v748 = vpop.f32.mrf.mxu0
  %v749 = vadd.f32 %v141, %v748
  %v750 = vpop.f32.mrf.mxu0
  %751 = vmatprep.mubr.f32.mxu0 0.0
  %752 = vmatmul.mubr.f32.gmra.mxu0 %v298
  %v753 = vpop.f32.mrf.mxu0
  %v754 = vadd.f32 %v141, %v753
  %v755 = vpop.f32.mrf.mxu0
  %756 = vmatprep.mubr.f32.mxu0 0.0
  %757 = vmatmul.mubr.f32.gmra.mxu0 %v301
  %v758 = vpop.f32.mrf.mxu0
  %v759 = vadd.f32 %v141, %v758
  %v760 = vpop.f32.mrf.mxu0
  %761 = vmatprep.mubr.f32.mxu0 0.0
  %762 = vmatmul.mubr.f32.gmra.mxu0 %v304
  %v763 = vpop.f32.mrf.mxu0
  %v764 = vadd.f32 %v141, %v763
  %v765 = vpop.f32.mrf.mxu0
  %766 = vmatprep.mubr.f32.mxu0 0.0
  %767 = vmatmul.mubr.f32.gmra.mxu0 %v307
  %v768 = vpop.f32.mrf.mxu0
  %v769 = vadd.f32 %v141, %v768
  %v770 = vpop.f32.mrf.mxu0
  %771 = vmatprep.mubr.f32.mxu0 0.0
  %772 = vmatmul.mubr.f32.gmra.mxu0 %v310
  %v773 = vpop.f32.mrf.mxu0
  %v774 = vadd.f32 %v141, %v773
  %v775 = vpop.f32.mrf.mxu0
  %776 = vmatprep.mubr.f32.mxu0 0.0
  %777 = vmatmul.mubr.f32.gmra.mxu0 %v313
  %v778 = vpop.f32.mrf.mxu0
  %v779 = vadd.f32 %v141, %v778
  %v780 = vpop.f32.mrf.mxu0
  %781 = vmatprep.mubr.f32.mxu0 0.0
  %782 = vmatmul.mubr.f32.gmra.mxu0 %v316
  %v783 = vpop.f32.mrf.mxu0
  %v784 = vadd.f32 %v141, %v783
  %v785 = vpop.f32.mrf.mxu0
  %786 = vmatprep.mubr.f32.mxu0 0.0
  %787 = vmatmul.mubr.f32.gmra.mxu0 %v319
  %v788 = vpop.f32.mrf.mxu0
  %v789 = vadd.f32 %v141, %v788
  %v790 = vpop.f32.mrf.mxu0
  %791 = vmatprep.mubr.f32.mxu0 0.0
  %792 = vmatmul.mubr.f32.gmra.mxu0 %v322
  %v793 = vpop.f32.mrf.mxu0
  %v794 = vadd.f32 %v141, %v793
  %v795 = vpop.f32.mrf.mxu0
  %796 = vmatprep.mubr.f32.mxu0 0.0
  %797 = vmatmul.mubr.f32.gmra.mxu0 %v325
  %v798 = vpop.f32.mrf.mxu0
  %v799 = vadd.f32 %v141, %v798
  %v800 = vpop.f32.mrf.mxu0
  %801 = vmatprep.mubr.f32.mxu0 0.0
  %802 = vmatmul.mubr.f32.gmra.mxu0 %v328
  %v803 = vpop.f32.mrf.mxu0
  %v804 = vadd.f32 %v141, %v803
  %v805 = vpop.f32.mrf.mxu0
  %806 = vmatprep.mubr.f32.mxu0 0.0
  %807 = vmatmul.mubr.f32.gmra.mxu0 %v331
  %v808 = vpop.f32.mrf.mxu0
  %v809 = vadd.f32 %v141, %v808
  %v810 = vpop.f32.mrf.mxu0
  %811 = vmatprep.mubr.f32.mxu0 0.0
  %812 = vmatmul.mubr.f32.gmra.mxu0 %v334
  %v813 = vpop.f32.mrf.mxu0
  %v814 = vadd.f32 %v141, %v813
  %v815 = vpop.f32.mrf.mxu0
  %816 = vmatprep.mubr.f32.mxu0 0.0
  %817 = vmatmul.mubr.f32.gmra.mxu0 %v337
  %v818 = vpop.f32.mrf.mxu0
  %v819 = vadd.f32 %v141, %v818
  %v820 = vpop.f32.mrf.mxu0
  %821 = vmatprep.mubr.f32.mxu0 0.0
  %822 = vmatmul.mubr.f32.gmra.mxu0 %v340
  %v823 = vpop.f32.mrf.mxu0
  %v824 = vadd.f32 %v141, %v823
  %v825 = vpop.f32.mrf.mxu0
  %826 = vmatprep.mubr.f32.mxu0 0.0
  %827 = vmatmul.mubr.f32.gmra.mxu0 %v343
  %v828 = vpop.f32.mrf.mxu0
  %v829 = vadd.f32 %v141, %v828
  %v830 = vpop.f32.mrf.mxu0
  %831 = vmatprep.mubr.f32.mxu0 0.0
  %832 = vmatmul.mubr.f32.gmra.mxu0 %v346
  %v833 = vpop.f32.mrf.mxu0
  %v834 = vadd.f32 %v141, %v833
  %v835 = vpop.f32.mrf.mxu0
  %836 = vmatprep.mubr.f32.mxu0 0.0
  %837 = vmatmul.mubr.f32.gmra.mxu0 %v349
  %v838 = vpop.f32.mrf.mxu0
  %v839 = vadd.f32 %v141, %v838
  %v840 = vpop.f32.mrf.mxu0
  %841 = vmatprep.mubr.f32.mxu0 0.0
  %842 = vmatmul.mubr.f32.gmra.mxu0 %v352
  %v843 = vpop.f32.mrf.mxu0
  %v844 = vadd.f32 %v141, %v843
  %v845 = vpop.f32.mrf.mxu0
  %846 = vmatprep.mubr.f32.mxu0 0.0
  %847 = vmatmul.mubr.f32.gmra.mxu0 %v355
  %v848 = vpop.f32.mrf.mxu0
  %v849 = vadd.f32 %v141, %v848
  %v850 = vpop.f32.mrf.mxu0
  %851 = vmatprep.mubr.f32.mxu0 0.0
  %852 = vmatmul.mubr.f32.gmra.mxu0 %v358
  %v853 = vpop.f32.mrf.mxu0
  %v854 = vadd.f32 %v141, %v853
  %v855 = vpop.f32.mrf.mxu0
  %856 = vmatprep.mubr.f32.mxu0 0.0
  %857 = vmatmul.mubr.f32.gmra.mxu0 %v361
  %v858 = vpop.f32.mrf.mxu0
  %v859 = vadd.f32 %v141, %v858
  %v860 = vpop.f32.mrf.mxu0
  %861 = vmatprep.mubr.f32.mxu0 0.0
  %862 = vmatmul.mubr.f32.gmra.mxu0 %v364
  %v863 = vpop.f32.mrf.mxu0
  %v864 = vadd.f32 %v141, %v863
  %v865 = vpop.f32.mrf.mxu0
  %866 = vmatprep.mubr.f32.mxu0 0.0
  %867 = vmatmul.mubr.f32.gmra.mxu0 %v367
  %v868 = vpop.f32.mrf.mxu0
  %v869 = vadd.f32 %v141, %v868
  %v870 = vpop.f32.mrf.mxu0
  %871 = vmatprep.mubr.f32.mxu0 0.0
  %872 = vmatmul.mubr.f32.gmra.mxu0 %v370
  %v873 = vpop.f32.mrf.mxu0
  %v874 = vadd.f32 %v141, %v873
  %v875 = vpop.f32.mrf.mxu0
  %876 = vmatprep.mubr.f32.mxu0 0.0
  %877 = vmatmul.mubr.f32.gmra.mxu0 %v373
  %v878 = vpop.f32.mrf.mxu0
  %v879 = vadd.f32 %v141, %v878
  %v880 = vpop.f32.mrf.mxu0
  %881 = vmatprep.mubr.f32.mxu0 0.0
  %882 = vmatmul.mubr.f32.gmra.mxu0 %v376
  %v883 = vpop.f32.mrf.mxu0
  %v884 = vadd.f32 %v141, %v883
  %v885 = vpop.f32.mrf.mxu0
  %886 = vmatprep.mubr.f32.mxu0 0.0
  %887 = vmatmul.mubr.f32.gmra.mxu0 %v379
  %v888 = vpop.f32.mrf.mxu0
  %v889 = vadd.f32 %v141, %v888
  %v890 = vpop.f32.mrf.mxu0
  %891 = vmatprep.mubr.f32.mxu0 0.0
  %892 = vmatmul.mubr.f32.gmra.mxu0 %v382
  %v893 = vpop.f32.mrf.mxu0
  %v894 = vadd.f32 %v141, %v893
  %v895 = vpop.f32.mrf.mxu0
  %896 = vmatprep.mubr.f32.mxu0 0.0
  %897 = vmatmul.mubr.f32.gmra.mxu0 %v385
  %v898 = vpop.f32.mrf.mxu0
  %v899 = vadd.f32 %v141, %v898
  %v900 = vpop.f32.mrf.mxu0
  %901 = vmatprep.mubr.f32.mxu0 0.0
  %902 = vmatmul.mubr.f32.gmra.mxu0 %v388
  %v903 = vpop.f32.mrf.mxu0
  %v904 = vadd.f32 %v141, %v903
  %v905 = vpop.f32.mrf.mxu0
  %906 = vmatprep.mubr.f32.mxu0 0.0
  %907 = vmatmul.mubr.f32.gmra.mxu0 %v391
  %v908 = vpop.f32.mrf.mxu0
  %v909 = vadd.f32 %v141, %v908
  %v910 = vpop.f32.mrf.mxu0
  %911 = vmatprep.mubr.f32.mxu0 0.0
  %912 = vmatmul.mubr.f32.gmra.mxu0 %v394
  %v913 = vpop.f32.mrf.mxu0
  %v914 = vadd.f32 %v141, %v913
  %v915 = vpop.f32.mrf.mxu0
  %916 = vmatprep.mubr.f32.mxu0 0.0
  %917 = vmatmul.mubr.f32.gmra.mxu0 %v397
  %v918 = vpop.f32.mrf.mxu0
  %v919 = vadd.f32 %v141, %v918
  %v920 = vpop.f32.mrf.mxu0
  %921 = vmatprep.mubr.f32.mxu0 0.0
  %922 = vmatmul.mubr.f32.gmra.mxu0 %v400
  %v923 = vpop.f32.mrf.mxu0
  %v924 = vadd.f32 %v141, %v923
  %v925 = vpop.f32.mrf.mxu0
  %926 = vmatprep.mubr.f32.mxu0 0.0
  %927 = vmatmul.mubr.f32.gmra.mxu0 %v403
  %v928 = vpop.f32.mrf.mxu0
  %v929 = vadd.f32 %v141, %v928
  %v930 = vpop.f32.mrf.mxu0
  %931 = vmatprep.mubr.f32.mxu0 0.0
  %932 = vmatmul.mubr.f32.gmra.mxu0 %v406
  %v933 = vpop.f32.mrf.mxu0
  %v934 = vadd.f32 %v141, %v933
  %v935 = vpop.f32.mrf.mxu0
  %936 = vmatprep.mubr.f32.mxu0 0.0
  %937 = vmatmul.mubr.f32.gmra.mxu0 %v409
  %v938 = vpop.f32.mrf.mxu0
  %v939 = vadd.f32 %v141, %v938
  %v940 = vpop.f32.mrf.mxu0
  %941 = vmatprep.mubr.f32.mxu0 0.0
  %942 = vmatmul.mubr.f32.gmra.mxu0 %v412
  %v943 = vpop.f32.mrf.mxu0
  %v944 = vadd.f32 %v141, %v943
  %v945 = vpop.f32.mrf.mxu0
  %946 = vmatprep.mubr.f32.mxu0 0.0
  %947 = vmatmul.mubr.f32.gmra.mxu0 %v415
  %v948 = vpop.f32.mrf.mxu0
  %v949 = vadd.f32 %v141, %v948
  %v950 = vpop.f32.mrf.mxu0
  %951 = vmatprep.mubr.f32.mxu0 0.0
  %952 = vmatmul.mubr.f32.gmra.mxu0 %v418
  %v953 = vpop.f32.mrf.mxu0
  %v954 = vadd.f32 %v141, %v953
  %v955 = vpop.f32.mrf.mxu0
  %956 = vmatprep.mubr.f32.mxu0 0.0
  %957 = vmatmul.mubr.f32.gmra.mxu0 %v421
  %v958 = vpop.f32.mrf.mxu0
  %v959 = vadd.f32 %v141, %v958
  %v960 = vpop.f32.mrf.mxu0
  %961 = vmatprep.mubr.f32.mxu0 0.0
  %962 = vmatmul.mubr.f32.gmra.mxu0 %v424
  %v963 = vpop.f32.mrf.mxu0
  %v964 = vadd.f32 %v141, %v963
  %v965 = vpop.f32.mrf.mxu0
  %966 = vmatprep.mubr.f32.mxu0 0.0
  %967 = vmatmul.mubr.f32.gmra.mxu0 %v427
  %v968 = vpop.f32.mrf.mxu0
  %v969 = vadd.f32 %v141, %v968
  %v970 = vpop.f32.mrf.mxu0
  %971 = vmatprep.mubr.f32.mxu0 0.0
  %972 = vmatmul.mubr.f32.gmra.mxu0 %v430
  %v973 = vpop.f32.mrf.mxu0
  %v974 = vadd.f32 %v141, %v973
  %v975 = vpop.f32.mrf.mxu0
  %976 = vdwg.mxu0
  %v977 = vmax.f32 %v499, %v539
  %v978 = vmax.f32 %v504, %v544
  %v979 = vmax.f32 %v509, %v549
  %v980 = vmax.f32 %v514, %v554
  %v981 = vmax.f32 %v519, %v559
  %v982 = vmax.f32 %v524, %v564
  %v983 = vmax.f32 %v529, %v569
  %v984 = vmax.f32 %v534, %v574
  %v985 = vmax.f32 %v977, %v579
  %v986 = vmax.f32 %v978, %v584
  %v987 = vmax.f32 %v979, %v589
  %v988 = vmax.f32 %v980, %v594
  %v989 = vmax.f32 %v981, %v599
  %v990 = vmax.f32 %v982, %v604
  %v991 = vmax.f32 %v983, %v609
  %v992 = vmax.f32 %v984, %v614
  %v993 = vmax.f32 %v985, %v619
  %v994 = vmax.f32 %v986, %v624
  %v995 = vmax.f32 %v987, %v629
  %v996 = vmax.f32 %v988, %v634
  %v997 = vmax.f32 %v989, %v639
  %v998 = vmax.f32 %v990, %v644
  %v999 = vmax.f32 %v991, %v649
  %v1000 = vmax.f32 %v992, %v654
  %v1001 = vmax.f32 %v993, %v659
  %v1002 = vmax.f32 %v994, %v664
  %v1003 = vmax.f32 %v995, %v669
  %v1004 = vmax.f32 %v996, %v674
  %v1005 = vmax.f32 %v997, %v679
  %v1006 = vmax.f32 %v998, %v684
  %v1007 = vmax.f32 %v999, %v689
  %v1008 = vmax.f32 %v1000, %v694
  %v1009 = vmax.f32 %v1001, %v699
  %v1010 = vmax.f32 %v1002, %v704
  %v1011 = vmax.f32 %v1003, %v709
  %v1012 = vmax.f32 %v1004, %v714
  %v1013 = vmax.f32 %v1005, %v719
  %v1014 = vmax.f32 %v1006, %v724
  %v1015 = vmax.f32 %v1007, %v729
  %v1016 = vmax.f32 %v1008, %v734
  %v1017 = vmax.f32 %v1009, %v739
  %v1018 = vmax.f32 %v1010, %v744
  %v1019 = vmax.f32 %v1011, %v749
  %v1020 = vmax.f32 %v1012, %v754
  %v1021 = vmax.f32 %v1013, %v759
  %v1022 = vmax.f32 %v1014, %v764
  %v1023 = vmax.f32 %v1015, %v769
  %v1024 = vmax.f32 %v1016, %v774
  %v1025 = vmax.f32 %v1017, %v779
  %v1026 = vmax.f32 %v1018, %v784
  %v1027 = vmax.f32 %v1019, %v789
  %v1028 = vmax.f32 %v1020, %v794
  %v1029 = vmax.f32 %v1021, %v799
  %v1030 = vmax.f32 %v1022, %v804
  %v1031 = vmax.f32 %v1023, %v809
  %v1032 = vmax.f32 %v1024, %v814
  %v1033 = vmax.f32 %v1025, %v819
  %v1034 = vmax.f32 %v1026, %v824
  %v1035 = vmax.f32 %v1027, %v829
  %v1036 = vmax.f32 %v1028, %v834
  %v1037 = vmax.f32 %v1029, %v839
  %v1038 = vmax.f32 %v1030, %v844
  %v1039 = vmax.f32 %v1031, %v849
  %v1040 = vmax.f32 %v1032, %v854
  %v1041 = vmax.f32 %v1033, %v859
  %v1042 = vmax.f32 %v1034, %v864
  %v1043 = vmax.f32 %v1035, %v869
  %v1044 = vmax.f32 %v1036, %v874
  %v1045 = vmax.f32 %v1037, %v879
  %v1046 = vmax.f32 %v1038, %v884
  %v1047 = vmax.f32 %v1039, %v889
  %v1048 = vmax.f32 %v1040, %v894
  %v1049 = vmax.f32 %v1041, %v899
  %v1050 = vmax.f32 %v1042, %v904
  %v1051 = vmax.f32 %v1043, %v909
  %v1052 = vmax.f32 %v1044, %v914
  %v1053 = vmax.f32 %v1045, %v919
  %v1054 = vmax.f32 %v1046, %v924
  %v1055 = vmax.f32 %v1047, %v929
  %v1056 = vmax.f32 %v1048, %v934
  %v1057 = vmax.f32 %v1049, %v939
  %v1058 = vmax.f32 %v1050, %v944
  %v1059 = vmax.f32 %v1051, %v949
  %v1060 = vmax.f32 %v1052, %v954
  %v1061 = vmax.f32 %v1053, %v959
  %v1062 = vmax.f32 %v1054, %v964
  %v1063 = vmax.f32 %v1055, %v969
  %v1064 = vmax.f32 %v1056, %v974
  %v1065 = vtanh.pop %v1057
  %v1066 = vtanh.pop %v1058
  %v1067 = vtanh.pop %v1059
  %v1068 = vtanh.pop %v1060
  %v1069 = vtanh.pop %v1061
  %v1070 = vtanh.pop %v1062
  %v1071 = vtanh.pop %v1063
  %v1072 = vtanh.pop %v1064
  %v1073 = vld [vmem:[%s3] sm:$0xff]
  %v1074 = vld [vmem:[%s3 + $0x8] sm:$0xff]
  %v1075 = vld [vmem:[%s3 + $0x10] sm:$0xff]
  %v1076 = vld [vmem:[%s3 + $0x18] sm:$0xff]
  %v1077 = vld [vmem:[%s3 + $0x20] sm:$0xff]
  %v1078 = vld [vmem:[%s3 + $0x28] sm:$0xff]
  %v1079 = vld [vmem:[%s3 + $0x30] sm:$0xff]
  %v1080 = vld [vmem:[%s3 + $0x38] sm:$0xff]
  %v1081 = vadd.f32 %v1073, %v1065
  %v1082 = vadd.f32 %v1074, %v1066
  %v1083 = vadd.f32 %v1075, %v1067
  %v1084 = vadd.f32 %v1076, %v1068
  %v1085 = vadd.f32 %v1077, %v1069
  %v1086 = vadd.f32 %v1078, %v1070
  %v1087 = vadd.f32 %v1079, %v1071
  %v1088 = vadd.f32 %v1080, %v1072
  %1089 = vst [vmem:[%s10] sm:$0xff] %v1081
  %1090 = vst [vmem:[%s10 + $0x8] sm:$0xff] %v1082
  %1091 = vst [vmem:[%s10 + $0x10] sm:$0xff] %v1083
  %1092 = vst [vmem:[%s10 + $0x18] sm:$0xff] %v1084
  %1093 = vst [vmem:[%s10 + $0x20] sm:$0xff] %v1085
  %1094 = vst [vmem:[%s10 + $0x28] sm:$0xff] %v1086
  %1095 = vst [vmem:[%s10 + $0x30] sm:$0xff] %v1087
  %1096 = vst [vmem:[%s10 + $0x38] sm:$0xff] %v1088
  %v1097 = vlaneseq
  %v1098 = vand.u32 %v1097, 127
  %v1099 = vadd.s32 %v1098, 128
  %v1100 = vadd.s32 %v1098, 256
  %v1101 = vadd.s32 %v1098, 384
  %vm1102 = vcmp.lt.s32.totalorder %v1098, 0
  %v1103 = vsub.s32 0, %v1098
  %v1104 = vsel %vm1102, %v1103, %v1098
  %v1105 = vshrl.u32 %v1104, 7
  %v1106 = vand.u32 %v1104, 127
  %v1107 = vsub.s32 0, %v1106
  %v1108 = vsel %vm1102, %v1107, %v1106
  %vm1109 = vcmp.lt.s32.totalorder %v1099, 0
  %v1110 = vsub.s32 0, %v1099
  %v1111 = vsel %vm1109, %v1110, %v1099
  %v1112 = vshrl.u32 %v1111, 7
  %v1113 = vand.u32 %v1111, 127
  %v1114 = vsub.s32 0, %v1113
  %v1115 = vsel %vm1109, %v1114, %v1113
  %vm1116 = vcmp.lt.s32.totalorder %v1100, 0
  %v1117 = vsub.s32 0, %v1100
  %v1118 = vsel %vm1116, %v1117, %v1100
  %v1119 = vshrl.u32 %v1118, 7
  %v1120 = vand.u32 %v1118, 127
  %v1121 = vsub.s32 0, %v1120
  %v1122 = vsel %vm1116, %v1121, %v1120
  %vm1123 = vcmp.lt.s32.totalorder %v1101, 0
  %v1124 = vsub.s32 0, %v1101
  %v1125 = vsel %vm1123, %v1124, %v1101
  %v1126 = vshrl.u32 %v1125, 7
  %v1127 = vand.u32 %v1125, 127
  %v1128 = vsub.s32 0, %v1127
  %v1129 = vsel %vm1123, %v1128, %v1127
  %vm1130 = vcmp.ne.s32.totalorder %v1108, 0
  %vm1131 = vcmp.ne.s32.totalorder %v1115, 0
  %vm1132 = vcmp.ne.s32.totalorder %v1122, 0
  %vm1133 = vcmp.ne.s32.totalorder %v1129, 0
  %vm1134 = vcmp.lt.s32.totalorder %v1108, 0
  %vm1135 = vcmp.lt.s32.totalorder %v1115, 0
  %vm1136 = vcmp.lt.s32.totalorder %v1122, 0
  %vm1137 = vcmp.lt.s32.totalorder %v1129, 0
  %vm1138 = vmand %vm1134, %vm1130
  %vm1139 = vmand %vm1135, %vm1131
  %vm1140 = vmand %vm1136, %vm1132
  %vm1141 = vmand %vm1137, %vm1133
  %v1142 = vadd.s32 %v1108, 128
  %v1143 = vadd.s32 %v1115, 128
  %v1144 = vadd.s32 %v1122, 128
  %v1145 = vadd.s32 %v1129, 128
  %v1146 = vsel %vm1138, %v1142, %v1108
  %v1147 = vsel %vm1139, %v1143, %v1115
  %v1148 = vsel %vm1140, %v1144, %v1122
  %v1149 = vsel %vm1141, %v1145, %v1129
  %vm1150 = vcmp.lt.s32.totalorder %v1146, 32
  %vm1151 = vcmp.lt.s32.totalorder %v1147, 32
  %vm1152 = vcmp.lt.s32.totalorder %v1148, 32
  %vm1153 = vcmp.lt.s32.totalorder %v1149, 32
  %vm1154 = vcmp.lt.s32.totalorder %v1098, 32
  %v1155 = vld [vmem:[%s4] sm:$0xff]
  %v1156 = vld [vmem:[%s4 + $0x8] sm:$0xff]
  %v1157 = vld [vmem:[%s4 + $0x10] sm:$0xff]
  %v1158 = vld [vmem:[%s4 + $0x18] sm:$0xff]
  %v1159 = vld [vmem:[%s4 + $0x20] sm:$0xff]
  %v1160 = vld [vmem:[%s4 + $0x28] sm:$0xff]
  %v1161 = vld [vmem:[%s4 + $0x30] sm:$0xff]
  %v1162 = vld [vmem:[%s4 + $0x38] sm:$0xff]
  %v1163 = vld [vmem:[%s4 + $0x40] sm:$0xff]
  %v1164 = vld [vmem:[%s4 + $0x48] sm:$0xff]
  %v1165 = vld [vmem:[%s4 + $0x50] sm:$0xff]
  %v1166 = vld [vmem:[%s4 + $0x58] sm:$0xff]
  %v1167 = vld [vmem:[%s4 + $0x60] sm:$0xff]
  %v1168 = vld [vmem:[%s4 + $0x68] sm:$0xff]
  %v1169 = vld [vmem:[%s4 + $0x70] sm:$0xff]
  %v1170 = vld [vmem:[%s4 + $0x78] sm:$0xff]
  %v1171 = vld [vmem:[%s4 + $0x80] sm:$0xff]
  %v1172 = vld [vmem:[%s4 + $0x88] sm:$0xff]
  %v1173 = vld [vmem:[%s4 + $0x90] sm:$0xff]
  %v1174 = vld [vmem:[%s4 + $0x98] sm:$0xff]
  %v1175 = vld [vmem:[%s4 + $0xa0] sm:$0xff]
  %v1176 = vld [vmem:[%s4 + $0xa8] sm:$0xff]
  %v1177 = vld [vmem:[%s4 + $0xb0] sm:$0xff]
  %v1178 = vld [vmem:[%s4 + $0xb8] sm:$0xff]
  %v1179 = vld [vmem:[%s4 + $0xc0] sm:$0xff]
  %v1180 = vld [vmem:[%s4 + $0xc8] sm:$0xff]
  %v1181 = vld [vmem:[%s4 + $0xd0] sm:$0xff]
  %v1182 = vld [vmem:[%s4 + $0xd8] sm:$0xff]
  %v1183 = vld [vmem:[%s4 + $0xe0] sm:$0xff]
  %v1184 = vld [vmem:[%s4 + $0xe8] sm:$0xff]
  %v1185 = vld [vmem:[%s4 + $0xf0] sm:$0xff]
  %v1186 = vld [vmem:[%s4 + $0xf8] sm:$0xff]
  %v1187 = vld [vmem:[%s4 + $0x100] sm:$0xff]
  %v1188 = vld [vmem:[%s4 + $0x108] sm:$0xff]
  %v1189 = vld [vmem:[%s4 + $0x110] sm:$0xff]
  %v1190 = vld [vmem:[%s4 + $0x118] sm:$0xff]
  %v1191 = vld [vmem:[%s4 + $0x120] sm:$0xff]
  %v1192 = vld [vmem:[%s4 + $0x128] sm:$0xff]
  %v1193 = vld [vmem:[%s4 + $0x130] sm:$0xff]
  %v1194 = vld [vmem:[%s4 + $0x138] sm:$0xff]
  %v1195 = vld [vmem:[%s4 + $0x140] sm:$0xff]
  %v1196 = vld [vmem:[%s4 + $0x148] sm:$0xff]
  %v1197 = vld [vmem:[%s4 + $0x150] sm:$0xff]
  %v1198 = vld [vmem:[%s4 + $0x158] sm:$0xff]
  %v1199 = vld [vmem:[%s4 + $0x160] sm:$0xff]
  %v1200 = vld [vmem:[%s4 + $0x168] sm:$0xff]
  %v1201 = vld [vmem:[%s4 + $0x170] sm:$0xff]
  %v1202 = vld [vmem:[%s4 + $0x178] sm:$0xff]
  %v1203 = vld [vmem:[%s4 + $0x180] sm:$0xff]
  %v1204 = vld [vmem:[%s4 + $0x188] sm:$0xff]
  %v1205 = vld [vmem:[%s4 + $0x190] sm:$0xff]
  %v1206 = vld [vmem:[%s4 + $0x198] sm:$0xff]
  %v1207 = vld [vmem:[%s4 + $0x1a0] sm:$0xff]
  %v1208 = vld [vmem:[%s4 + $0x1a8] sm:$0xff]
  %v1209 = vld [vmem:[%s4 + $0x1b0] sm:$0xff]
  %v1210 = vld [vmem:[%s4 + $0x1b8] sm:$0xff]
  %v1211 = vld [vmem:[%s4 + $0x1c0] sm:$0xff]
  %v1212 = vld [vmem:[%s4 + $0x1c8] sm:$0xff]
  %v1213 = vld [vmem:[%s4 + $0x1d0] sm:$0xff]
  %v1214 = vld [vmem:[%s4 + $0x1d8] sm:$0xff]
  %v1215 = vld [vmem:[%s4 + $0x1e0] sm:$0xff]
  %v1216 = vld [vmem:[%s4 + $0x1e8] sm:$0xff]
  %v1217 = vld [vmem:[%s4 + $0x1f0] sm:$0xff]
  %v1218 = vld [vmem:[%s4 + $0x1f8] sm:$0xff]
  %v1219 = vld [vmem:[%s6] sm:$0xf]
  %v1221 = vlaneseq
  %v1222 = vshrl.u32 %v1221, 7
  %v1223 = vsub.s32 0, %v1222
  %v1224 = vrot.slane %v1219, %v1223
  %v1225 = vlaneseq
  %v1226 = vshrl.u32 %v1225, 7
  %v1227 = vsub.s32 1, %v1226
  %v1228 = vrot.slane %v1219, %v1227
  %v1229 = vlaneseq
  %v1230 = vshrl.u32 %v1229, 7
  %v1231 = vsub.s32 2, %v1230
  %v1232 = vrot.slane %v1219, %v1231
  %v1233 = vlaneseq
  %v1234 = vshrl.u32 %v1233, 7
  %v1235 = vsub.s32 3, %v1234
  %v1236 = vrot.slane %v1219, %v1235
  %1241 = vmatprep.subr.mxu0 %v1216
  %1242 = vmatpush1.msra.mxu0 %v1215
  %1243 = vmatprep.subr.mxu0 %v1212
  %1244 = vmatpush1.msra.mxu0 %v1211
  %1245 = vmatprep.subr.mxu0 %v1208
  %1246 = vmatpush1.msra.mxu0 %v1207
  %1247 = vmatprep.subr.mxu0 %v1204
  %1248 = vmatpush1.msra.mxu0 %v1203
  %1249 = vmatprep.subr.mxu0 %v1200
  %1250 = vmatpush1.msra.mxu0 %v1199
  %1251 = vmatprep.subr.mxu0 %v1196
  %1252 = vmatpush1.msra.mxu0 %v1195
  %1253 = vmatprep.subr.mxu0 %v1192
  %1254 = vmatpush1.msra.mxu0 %v1191
  %1255 = vmatprep.subr.mxu0 %v1188
  %1256 = vmatpush1.msra.mxu0 %v1187
  %1257 = vmatprep.subr.mxu0 %v1184
  %1258 = vmatpush1.msra.mxu0 %v1183
  %1259 = vmatprep.subr.mxu0 %v1180
  %1260 = vmatpush1.msra.mxu0 %v1179
  %1261 = vmatprep.subr.mxu0 %v1176
  %1262 = vmatpush1.msra.mxu0 %v1175
  %1263 = vmatprep.subr.mxu0 %v1172
  %1264 = vmatpush1.msra.mxu0 %v1171
  %1265 = vmatprep.subr.mxu0 %v1168
  %1266 = vmatpush1.msra.mxu0 %v1167
  %1267 = vmatprep.subr.mxu0 %v1164
  %1268 = vmatpush1.msra.mxu0 %v1163
  %1269 = vmatprep.subr.mxu0 %v1160
  %1270 = vmatpush1.msra.mxu0 %v1159
  %1271 = vmatprep.subr.mxu0 %v1156
  %1272 = vmatpush1.msra.mxu0 %v1155
  %1273 = vmatprep.subr.mxu0 0.0
  %1274 = vmatpush2.msra.mxu0 0.0
  %1275 = vmatprep.subr.mxu0 0.0
  %1276 = vmatpush2.msra.mxu0 0.0
  %1277 = vmatprep.subr.mxu0 0.0
  %1278 = vmatpush2.msra.mxu0 0.0
  %1279 = vmatprep.subr.mxu0 0.0
  %1280 = vmatpush2.msra.mxu0 0.0
  %1281 = vmatprep.subr.mxu0 0.0
  %1282 = vmatpush2.msra.mxu0 0.0
  %1283 = vmatprep.subr.mxu0 0.0
  %1284 = vmatpush2.msra.mxu0 0.0
  %1285 = vmatprep.subr.mxu0 0.0
  %1286 = vmatpush2.msra.mxu0 0.0
  %1287 = vmatprep.subr.mxu0 0.0
  %1288 = vmatpush2.msra.mxu0 0.0
  %1289 = vmatprep.subr.mxu0 0.0
  %1290 = vmatpush2.msra.mxu0 0.0
  %1291 = vmatprep.subr.mxu0 0.0
  %1292 = vmatpush2.msra.mxu0 0.0
  %1293 = vmatprep.subr.mxu0 0.0
  %1294 = vmatpush2.msra.mxu0 0.0
  %1295 = vmatprep.subr.mxu0 0.0
  %1296 = vmatpush2.msra.mxu0 0.0
  %1297 = vmatprep.subr.mxu0 0.0
  %1298 = vmatpush2.msra.mxu0 0.0
  %1299 = vmatprep.subr.mxu0 0.0
  %1300 = vmatpush2.msra.mxu0 0.0
  %1301 = vmatprep.subr.mxu0 0.0
  %1302 = vmatpush2.msra.mxu0 0.0
  %1303 = vmatprep.subr.mxu0 0.0
  %1304 = vmatpush2.msra.mxu0 0.0
  %1305 = vmatprep.mubr.f32.mxu0 0.0
  %1306 = vmatmul.mubr.f32.gmra.mxu0 %v1081
  %v1307 = vpop.f32.mrf.mxu0
  %v1308 = vadd.f32 %v1224, %v1307
  %v1309 = vpop.f32.mrf.mxu0
  %v1310 = vadd.f32 %v1228, %v1309
  %1311 = vmatprep.mubr.f32.mxu0 0.0
  %1312 = vmatmul.mubr.f32.gmra.mxu0 %v1082
  %v1313 = vpop.f32.mrf.mxu0
  %v1314 = vadd.f32 %v1224, %v1313
  %v1315 = vpop.f32.mrf.mxu0
  %v1316 = vadd.f32 %v1228, %v1315
  %1317 = vmatprep.mubr.f32.mxu0 0.0
  %1318 = vmatmul.mubr.f32.gmra.mxu0 %v1083
  %v1319 = vpop.f32.mrf.mxu0
  %v1320 = vadd.f32 %v1224, %v1319
  %v1321 = vpop.f32.mrf.mxu0
  %v1322 = vadd.f32 %v1228, %v1321
  %1323 = vmatprep.mubr.f32.mxu0 0.0
  %1324 = vmatmul.mubr.f32.gmra.mxu0 %v1084
  %v1325 = vpop.f32.mrf.mxu0
  %v1326 = vadd.f32 %v1224, %v1325
  %v1327 = vpop.f32.mrf.mxu0
  %v1328 = vadd.f32 %v1228, %v1327
  %1329 = vmatprep.mubr.f32.mxu0 0.0
  %1330 = vmatmul.mubr.f32.gmra.mxu0 %v1085
  %v1331 = vpop.f32.mrf.mxu0
  %v1332 = vadd.f32 %v1224, %v1331
  %v1333 = vpop.f32.mrf.mxu0
  %v1334 = vadd.f32 %v1228, %v1333
  %1335 = vmatprep.mubr.f32.mxu0 0.0
  %1336 = vmatmul.mubr.f32.gmra.mxu0 %v1086
  %v1337 = vpop.f32.mrf.mxu0
  %v1338 = vadd.f32 %v1224, %v1337
  %v1339 = vpop.f32.mrf.mxu0
  %v1340 = vadd.f32 %v1228, %v1339
  %1341 = vmatprep.mubr.f32.mxu0 0.0
  %1342 = vmatmul.mubr.f32.gmra.mxu0 %v1087
  %v1343 = vpop.f32.mrf.mxu0
  %v1344 = vadd.f32 %v1224, %v1343
  %v1345 = vpop.f32.mrf.mxu0
  %v1346 = vadd.f32 %v1228, %v1345
  %1347 = vmatprep.mubr.f32.mxu0 0.0
  %1348 = vmatmul.mubr.f32.gmra.mxu0 %v1088
  %v1349 = vpop.f32.mrf.mxu0
  %v1350 = vadd.f32 %v1224, %v1349
  %v1351 = vpop.f32.mrf.mxu0
  %v1352 = vadd.f32 %v1228, %v1351
  %1353 = vdwg.mxu0
  %1354 = vmatprep.subr.mxu0 %v1218
  %1355 = vmatpush1.msra.mxu0 %v1217
  %1356 = vmatprep.subr.mxu0 %v1214
  %1357 = vmatpush1.msra.mxu0 %v1213
  %1358 = vmatprep.subr.mxu0 %v1210
  %1359 = vmatpush1.msra.mxu0 %v1209
  %1360 = vmatprep.subr.mxu0 %v1206
  %1361 = vmatpush1.msra.mxu0 %v1205
  %1362 = vmatprep.subr.mxu0 %v1202
  %1363 = vmatpush1.msra.mxu0 %v1201
  %1364 = vmatprep.subr.mxu0 %v1198
  %1365 = vmatpush1.msra.mxu0 %v1197
  %1366 = vmatprep.subr.mxu0 %v1194
  %1367 = vmatpush1.msra.mxu0 %v1193
  %1368 = vmatprep.subr.mxu0 %v1190
  %1369 = vmatpush1.msra.mxu0 %v1189
  %1370 = vmatprep.subr.mxu0 %v1186
  %1371 = vmatpush1.msra.mxu0 %v1185
  %1372 = vmatprep.subr.mxu0 %v1182
  %1373 = vmatpush1.msra.mxu0 %v1181
  %1374 = vmatprep.subr.mxu0 %v1178
  %1375 = vmatpush1.msra.mxu0 %v1177
  %1376 = vmatprep.subr.mxu0 %v1174
  %1377 = vmatpush1.msra.mxu0 %v1173
  %1378 = vmatprep.subr.mxu0 %v1170
  %1379 = vmatpush1.msra.mxu0 %v1169
  %1380 = vmatprep.subr.mxu0 %v1166
  %1381 = vmatpush1.msra.mxu0 %v1165
  %1382 = vmatprep.subr.mxu0 %v1162
  %1383 = vmatpush1.msra.mxu0 %v1161
  %1384 = vmatprep.subr.mxu0 %v1158
  %1385 = vmatpush1.msra.mxu0 %v1157
  %1386 = vmatprep.subr.mxu0 0.0
  %1387 = vmatpush2.msra.mxu0 0.0
  %1388 = vmatprep.subr.mxu0 0.0
  %1389 = vmatpush2.msra.mxu0 0.0
  %1390 = vmatprep.subr.mxu0 0.0
  %1391 = vmatpush2.msra.mxu0 0.0
  %1392 = vmatprep.subr.mxu0 0.0
  %1393 = vmatpush2.msra.mxu0 0.0
  %1394 = vmatprep.subr.mxu0 0.0
  %1395 = vmatpush2.msra.mxu0 0.0
  %1396 = vmatprep.subr.mxu0 0.0
  %1397 = vmatpush2.msra.mxu0 0.0
  %1398 = vmatprep.subr.mxu0 0.0
  %1399 = vmatpush2.msra.mxu0 0.0
  %1400 = vmatprep.subr.mxu0 0.0
  %1401 = vmatpush2.msra.mxu0 0.0
  %1402 = vmatprep.subr.mxu0 0.0
  %1403 = vmatpush2.msra.mxu0 0.0
  %1404 = vmatprep.subr.mxu0 0.0
  %1405 = vmatpush2.msra.mxu0 0.0
  %1406 = vmatprep.subr.mxu0 0.0
  %1407 = vmatpush2.msra.mxu0 0.0
  %1408 = vmatprep.subr.mxu0 0.0
  %1409 = vmatpush2.msra.mxu0 0.0
  %1410 = vmatprep.subr.mxu0 0.0
  %1411 = vmatpush2.msra.mxu0 0.0
  %1412 = vmatprep.subr.mxu0 0.0
  %1413 = vmatpush2.msra.mxu0 0.0
  %1414 = vmatprep.subr.mxu0 0.0
  %1415 = vmatpush2.msra.mxu0 0.0
  %1416 = vmatprep.subr.mxu0 0.0
  %1417 = vmatpush2.msra.mxu0 0.0
  %1418 = vmatprep.mubr.f32.mxu0 0.0
  %1419 = vmatmul.mubr.f32.gmra.mxu0 %v1081
  %v1420 = vpop.f32.mrf.mxu0
  %v1421 = vadd.f32 %v1232, %v1420
  %v1422 = vpop.f32.mrf.mxu0
  %v1423 = vadd.f32 %v1236, %v1422
  %1424 = vmatprep.mubr.f32.mxu0 0.0
  %1425 = vmatmul.mubr.f32.gmra.mxu0 %v1082
  %v1426 = vpop.f32.mrf.mxu0
  %v1427 = vadd.f32 %v1232, %v1426
  %v1428 = vpop.f32.mrf.mxu0
  %v1429 = vadd.f32 %v1236, %v1428
  %1430 = vmatprep.mubr.f32.mxu0 0.0
  %1431 = vmatmul.mubr.f32.gmra.mxu0 %v1083
  %v1432 = vpop.f32.mrf.mxu0
  %v1433 = vadd.f32 %v1232, %v1432
  %v1434 = vpop.f32.mrf.mxu0
  %v1435 = vadd.f32 %v1236, %v1434
  %1436 = vmatprep.mubr.f32.mxu0 0.0
  %1437 = vmatmul.mubr.f32.gmra.mxu0 %v1084
  %v1438 = vpop.f32.mrf.mxu0
  %v1439 = vadd.f32 %v1232, %v1438
  %v1440 = vpop.f32.mrf.mxu0
  %v1441 = vadd.f32 %v1236, %v1440
  %1442 = vmatprep.mubr.f32.mxu0 0.0
  %1443 = vmatmul.mubr.f32.gmra.mxu0 %v1085
  %v1444 = vpop.f32.mrf.mxu0
  %v1445 = vadd.f32 %v1232, %v1444
  %v1446 = vpop.f32.mrf.mxu0
  %v1447 = vadd.f32 %v1236, %v1446
  %1448 = vmatprep.mubr.f32.mxu0 0.0
  %1449 = vmatmul.mubr.f32.gmra.mxu0 %v1086
  %v1450 = vpop.f32.mrf.mxu0
  %v1451 = vadd.f32 %v1232, %v1450
  %v1452 = vpop.f32.mrf.mxu0
  %v1453 = vadd.f32 %v1236, %v1452
  %1454 = vmatprep.mubr.f32.mxu0 0.0
  %1455 = vmatmul.mubr.f32.gmra.mxu0 %v1087
  %v1456 = vpop.f32.mrf.mxu0
  %v1457 = vadd.f32 %v1232, %v1456
  %v1458 = vpop.f32.mrf.mxu0
  %v1459 = vadd.f32 %v1236, %v1458
  %1460 = vmatprep.mubr.f32.mxu0 0.0
  %1461 = vmatmul.mubr.f32.gmra.mxu0 %v1088
  %v1462 = vpop.f32.mrf.mxu0
  %v1463 = vadd.f32 %v1232, %v1462
  %v1464 = vpop.f32.mrf.mxu0
  %v1465 = vadd.f32 %v1236, %v1464
  %1466 = vdwg.mxu0
  %v1467 = vsel %vm1150, 1, 0
  %v1468 = vsel %vm1151, 1, 0
  %v1469 = vsel %vm1152, 1, 0
  %v1470 = vsel %vm1153, 1, 0
  %vm1471 = vcmp.eq.s32.totalorder %v1467, 1
  %vm1472 = vcmp.eq.s32.totalorder %v1468, 1
  %vm1473 = vcmp.eq.s32.totalorder %v1469, 1
  %vm1474 = vcmp.eq.s32.totalorder %v1470, 1
  %v1475 = vsel %vm1471, %v1308, %v1350
  %v1476 = vsel %vm1472, %v1310, %v1352
  %v1477 = vsel %vm1473, %v1421, %v1463
  %v1478 = vsel %vm1474, %v1423, %v1465
  %v1479 = vsel %vm1471, %v1314, %v1344
  %v1480 = vsel %vm1472, %v1316, %v1346
  %v1481 = vsel %vm1473, %v1427, %v1457
  %v1482 = vsel %vm1474, %v1429, %v1459
  %v1483 = vsel %vm1471, %v1320, %v1338
  %v1484 = vsel %vm1472, %v1322, %v1340
  %v1485 = vsel %vm1473, %v1433, %v1451
  %v1486 = vsel %vm1474, %v1435, %v1453
  %v1487 = vsel %vm1471, %v1326, %v1332
  %v1488 = vsel %vm1472, %v1328, %v1334
  %v1489 = vsel %vm1473, %v1439, %v1445
  %v1490 = vsel %vm1474, %v1441, %v1447
  %v1491 = vsel %vm1471, %v1332, %v1326
  %v1492 = vsel %vm1472, %v1334, %v1328
  %v1493 = vsel %vm1473, %v1445, %v1439
  %v1494 = vsel %vm1474, %v1447, %v1441
  %v1495 = vsel %vm1471, %v1338, %v1320
  %v1496 = vsel %vm1472, %v1340, %v1322
  %v1497 = vsel %vm1473, %v1451, %v1433
  %v1498 = vsel %vm1474, %v1453, %v1435
  %v1499 = vsel %vm1471, %v1344, %v1314
  %v1500 = vsel %vm1472, %v1346, %v1316
  %v1501 = vsel %vm1473, %v1457, %v1427
  %v1502 = vsel %vm1474, %v1459, %v1429
  %v1503 = vsel %vm1471, %v1350, %v1308
  %v1504 = vsel %vm1472, %v1352, %v1310
  %v1505 = vsel %vm1473, %v1463, %v1421
  %v1506 = vsel %vm1474, %v1465, %v1423
  %v1507 = vld [vmem:[%s5] sm:$0xff]
  %v1508 = vld [vmem:[%s5 + $0x8] sm:$0xff]
  %v1509 = vld [vmem:[%s5 + $0x10] sm:$0xff]
  %v1510 = vld [vmem:[%s5 + $0x18] sm:$0xff]
  %v1511 = vld [vmem:[%s5 + $0x20] sm:$0xff]
  %v1512 = vld [vmem:[%s5 + $0x28] sm:$0xff]
  %v1513 = vld [vmem:[%s5 + $0x30] sm:$0xff]
  %v1514 = vld [vmem:[%s5 + $0x38] sm:$0xff]
  %v1515 = vld [vmem:[%s5 + $0x40] sm:$0xff]
  %v1516 = vld [vmem:[%s5 + $0x48] sm:$0xff]
  %v1517 = vld [vmem:[%s5 + $0x50] sm:$0xff]
  %v1518 = vld [vmem:[%s5 + $0x58] sm:$0xff]
  %v1519 = vld [vmem:[%s5 + $0x60] sm:$0xff]
  %v1520 = vld [vmem:[%s5 + $0x68] sm:$0xff]
  %v1521 = vld [vmem:[%s5 + $0x70] sm:$0xff]
  %v1522 = vld [vmem:[%s5 + $0x78] sm:$0xff]
  %v1523 = vld [vmem:[%s5 + $0x80] sm:$0xff]
  %v1524 = vld [vmem:[%s5 + $0x88] sm:$0xff]
  %v1525 = vld [vmem:[%s5 + $0x90] sm:$0xff]
  %v1526 = vld [vmem:[%s5 + $0x98] sm:$0xff]
  %v1527 = vld [vmem:[%s5 + $0xa0] sm:$0xff]
  %v1528 = vld [vmem:[%s5 + $0xa8] sm:$0xff]
  %v1529 = vld [vmem:[%s5 + $0xb0] sm:$0xff]
  %v1530 = vld [vmem:[%s5 + $0xb8] sm:$0xff]
  %v1531 = vld [vmem:[%s5 + $0xc0] sm:$0xff]
  %v1532 = vld [vmem:[%s5 + $0xc8] sm:$0xff]
  %v1533 = vld [vmem:[%s5 + $0xd0] sm:$0xff]
  %v1534 = vld [vmem:[%s5 + $0xd8] sm:$0xff]
  %v1535 = vld [vmem:[%s5 + $0xe0] sm:$0xff]
  %v1536 = vld [vmem:[%s5 + $0xe8] sm:$0xff]
  %v1537 = vld [vmem:[%s5 + $0xf0] sm:$0xff]
  %v1538 = vld [vmem:[%s5 + $0xf8] sm:$0xff]
  %v1539 = vld [vmem:[%s5 + $0x100] sm:$0xff]
  %v1540 = vld [vmem:[%s5 + $0x108] sm:$0xff]
  %v1541 = vld [vmem:[%s5 + $0x110] sm:$0xff]
  %v1542 = vld [vmem:[%s5 + $0x118] sm:$0xff]
  %v1543 = vld [vmem:[%s5 + $0x120] sm:$0xff]
  %v1544 = vld [vmem:[%s5 + $0x128] sm:$0xff]
  %v1545 = vld [vmem:[%s5 + $0x130] sm:$0xff]
  %v1546 = vld [vmem:[%s5 + $0x138] sm:$0xff]
  %v1547 = vld [vmem:[%s5 + $0x140] sm:$0xff]
  %v1548 = vld [vmem:[%s5 + $0x148] sm:$0xff]
  %v1549 = vld [vmem:[%s5 + $0x150] sm:$0xff]
  %v1550 = vld [vmem:[%s5 + $0x158] sm:$0xff]
  %v1551 = vld [vmem:[%s5 + $0x160] sm:$0xff]
  %v1552 = vld [vmem:[%s5 + $0x168] sm:$0xff]
  %v1553 = vld [vmem:[%s5 + $0x170] sm:$0xff]
  %v1554 = vld [vmem:[%s5 + $0x178] sm:$0xff]
  %v1555 = vld [vmem:[%s5 + $0x180] sm:$0xff]
  %v1556 = vld [vmem:[%s5 + $0x188] sm:$0xff]
  %v1557 = vld [vmem:[%s5 + $0x190] sm:$0xff]
  %v1558 = vld [vmem:[%s5 + $0x198] sm:$0xff]
  %v1559 = vld [vmem:[%s5 + $0x1a0] sm:$0xff]
  %v1560 = vld [vmem:[%s5 + $0x1a8] sm:$0xff]
  %v1561 = vld [vmem:[%s5 + $0x1b0] sm:$0xff]
  %v1562 = vld [vmem:[%s5 + $0x1b8] sm:$0xff]
  %v1563 = vld [vmem:[%s5 + $0x1c0] sm:$0xff]
  %v1564 = vld [vmem:[%s5 + $0x1c8] sm:$0xff]
  %v1565 = vld [vmem:[%s5 + $0x1d0] sm:$0xff]
  %v1566 = vld [vmem:[%s5 + $0x1d8] sm:$0xff]
  %v1567 = vld [vmem:[%s5 + $0x1e0] sm:$0xff]
  %v1568 = vld [vmem:[%s5 + $0x1e8] sm:$0xff]
  %v1569 = vld [vmem:[%s5 + $0x1f0] sm:$0xff]
  %v1570 = vld [vmem:[%s5 + $0x1f8] sm:$0xff]
  %1571 = vmatprep.subr.mxu0 %v1568
  %1572 = vmatpush1.msra.mxu0 %v1567
  %1573 = vmatprep.subr.mxu0 %v1564
  %1574 = vmatpush1.msra.mxu0 %v1563
  %1575 = vmatprep.subr.mxu0 %v1560
  %1576 = vmatpush1.msra.mxu0 %v1559
  %1577 = vmatprep.subr.mxu0 %v1556
  %1578 = vmatpush1.msra.mxu0 %v1555
  %1579 = vmatprep.subr.mxu0 %v1552
  %1580 = vmatpush1.msra.mxu0 %v1551
  %1581 = vmatprep.subr.mxu0 %v1548
  %1582 = vmatpush1.msra.mxu0 %v1547
  %1583 = vmatprep.subr.mxu0 %v1544
  %1584 = vmatpush1.msra.mxu0 %v1543
  %1585 = vmatprep.subr.mxu0 %v1540
  %1586 = vmatpush1.msra.mxu0 %v1539
  %1587 = vmatprep.subr.mxu0 %v1536
  %1588 = vmatpush1.msra.mxu0 %v1535
  %1589 = vmatprep.subr.mxu0 %v1532
  %1590 = vmatpush1.msra.mxu0 %v1531
  %1591 = vmatprep.subr.mxu0 %v1528
  %1592 = vmatpush1.msra.mxu0 %v1527
  %1593 = vmatprep.subr.mxu0 %v1524
  %1594 = vmatpush1.msra.mxu0 %v1523
  %1595 = vmatprep.subr.mxu0 %v1520
  %1596 = vmatpush1.msra.mxu0 %v1519
  %1597 = vmatprep.subr.mxu0 %v1516
  %1598 = vmatpush1.msra.mxu0 %v1515
  %1599 = vmatprep.subr.mxu0 %v1512
  %1600 = vmatpush1.msra.mxu0 %v1511
  %1601 = vmatprep.subr.mxu0 %v1508
  %1602 = vmatpush1.msra.mxu0 %v1507
  %1603 = vmatprep.subr.mxu0 0.0
  %1604 = vmatpush2.msra.mxu0 0.0
  %1605 = vmatprep.subr.mxu0 0.0
  %1606 = vmatpush2.msra.mxu0 0.0
  %1607 = vmatprep.subr.mxu0 0.0
  %1608 = vmatpush2.msra.mxu0 0.0
  %1609 = vmatprep.subr.mxu0 0.0
  %1610 = vmatpush2.msra.mxu0 0.0
  %1611 = vmatprep.subr.mxu0 0.0
  %1612 = vmatpush2.msra.mxu0 0.0
  %1613 = vmatprep.subr.mxu0 0.0
  %1614 = vmatpush2.msra.mxu0 0.0
  %1615 = vmatprep.subr.mxu0 0.0
  %1616 = vmatpush2.msra.mxu0 0.0
  %1617 = vmatprep.subr.mxu0 0.0
  %1618 = vmatpush2.msra.mxu0 0.0
  %1619 = vmatprep.subr.mxu0 0.0
  %1620 = vmatpush2.msra.mxu0 0.0
  %1621 = vmatprep.subr.mxu0 0.0
  %1622 = vmatpush2.msra.mxu0 0.0
  %1623 = vmatprep.subr.mxu0 0.0
  %1624 = vmatpush2.msra.mxu0 0.0
  %1625 = vmatprep.subr.mxu0 0.0
  %1626 = vmatpush2.msra.mxu0 0.0
  %1627 = vmatprep.subr.mxu0 0.0
  %1628 = vmatpush2.msra.mxu0 0.0
  %1629 = vmatprep.subr.mxu0 0.0
  %1630 = vmatpush2.msra.mxu0 0.0
  %1631 = vmatprep.subr.mxu0 0.0
  %1632 = vmatpush2.msra.mxu0 0.0
  %1633 = vmatprep.subr.mxu0 0.0
  %1634 = vmatpush2.msra.mxu0 0.0
  %1635 = vmatprep.mubr.f32.mxu0 0.0
  %1636 = vmatmul.mubr.f32.gmra.mxu0 0.0
  %v1637 = vpop.f32.mrf.mxu0
  %v1638 = vadd.f32 0.0, %v1637
  %v1639 = vpop.f32.mrf.mxu0
  %v1640 = vadd.f32 0.0, %v1639
  %1641 = vdwg.mxu0
  %1642 = vmatprep.subr.mxu0 %v1570
  %1643 = vmatpush1.msra.mxu0 %v1569
  %1644 = vmatprep.subr.mxu0 %v1566
  %1645 = vmatpush1.msra.mxu0 %v1565
  %1646 = vmatprep.subr.mxu0 %v1562
  %1647 = vmatpush1.msra.mxu0 %v1561
  %1648 = vmatprep.subr.mxu0 %v1558
  %1649 = vmatpush1.msra.mxu0 %v1557
  %1650 = vmatprep.subr.mxu0 %v1554
  %1651 = vmatpush1.msra.mxu0 %v1553
  %1652 = vmatprep.subr.mxu0 %v1550
  %1653 = vmatpush1.msra.mxu0 %v1549
  %1654 = vmatprep.subr.mxu0 %v1546
  %1655 = vmatpush1.msra.mxu0 %v1545
  %1656 = vmatprep.subr.mxu0 %v1542
  %1657 = vmatpush1.msra.mxu0 %v1541
  %1658 = vmatprep.subr.mxu0 %v1538
  %1659 = vmatpush1.msra.mxu0 %v1537
  %1660 = vmatprep.subr.mxu0 %v1534
  %1661 = vmatpush1.msra.mxu0 %v1533
  %1662 = vmatprep.subr.mxu0 %v1530
  %1663 = vmatpush1.msra.mxu0 %v1529
  %1664 = vmatprep.subr.mxu0 %v1526
  %1665 = vmatpush1.msra.mxu0 %v1525
  %1666 = vmatprep.subr.mxu0 %v1522
  %1667 = vmatpush1.msra.mxu0 %v1521
  %1668 = vmatprep.subr.mxu0 %v1518
  %1669 = vmatpush1.msra.mxu0 %v1517
  %1670 = vmatprep.subr.mxu0 %v1514
  %1671 = vmatpush1.msra.mxu0 %v1513
  %1672 = vmatprep.subr.mxu0 %v1510
  %1673 = vmatpush1.msra.mxu0 %v1509
  %1674 = vmatprep.subr.mxu0 0.0
  %1675 = vmatpush2.msra.mxu0 0.0
  %1676 = vmatprep.subr.mxu0 0.0
  %1677 = vmatpush2.msra.mxu0 0.0
  %1678 = vmatprep.subr.mxu0 0.0
  %1679 = vmatpush2.msra.mxu0 0.0
  %1680 = vmatprep.subr.mxu0 0.0
  %1681 = vmatpush2.msra.mxu0 0.0
  %1682 = vmatprep.subr.mxu0 0.0
  %1683 = vmatpush2.msra.mxu0 0.0
  %1684 = vmatprep.subr.mxu0 0.0
  %1685 = vmatpush2.msra.mxu0 0.0
  %1686 = vmatprep.subr.mxu0 0.0
  %1687 = vmatpush2.msra.mxu0 0.0
  %1688 = vmatprep.subr.mxu0 0.0
  %1689 = vmatpush2.msra.mxu0 0.0
  %1690 = vmatprep.subr.mxu0 0.0
  %1691 = vmatpush2.msra.mxu0 0.0
  %1692 = vmatprep.subr.mxu0 0.0
  %1693 = vmatpush2.msra.mxu0 0.0
  %1694 = vmatprep.subr.mxu0 0.0
  %1695 = vmatpush2.msra.mxu0 0.0
  %1696 = vmatprep.subr.mxu0 0.0
  %1697 = vmatpush2.msra.mxu0 0.0
  %1698 = vmatprep.subr.mxu0 0.0
  %1699 = vmatpush2.msra.mxu0 0.0
  %1700 = vmatprep.subr.mxu0 0.0
  %1701 = vmatpush2.msra.mxu0 0.0
  %1702 = vmatprep.subr.mxu0 0.0
  %1703 = vmatpush2.msra.mxu0 0.0
  %1704 = vmatprep.subr.mxu0 0.0
  %1705 = vmatpush2.msra.mxu0 0.0
  %1706 = vmatprep.mubr.f32.mxu0 0.0
  %1707 = vmatmul.mubr.f32.gmra.mxu0 0.0
  %v1708 = vpop.f32.mrf.mxu0
  %v1709 = vadd.f32 0.0, %v1708
  %v1710 = vpop.f32.mrf.mxu0
  %v1711 = vadd.f32 0.0, %v1710
  %1712 = vdwg.mxu0
  %v1713 = vadd.f32 %v1475, %v1638
  %v1714 = vadd.f32 %v1476, %v1640
  %v1715 = vadd.f32 %v1477, %v1709
  %v1716 = vadd.f32 %v1478, %v1711
  %v1717 = vxor.u32 %v1713, 2147483648
  %v1718 = vxor.u32 %v1714, 2147483648
  %v1719 = vxor.u32 %v1715, 2147483648
  %v1720 = vmul.f32 %v1717, 1.442695
  %v1721 = vpow.pop %v1720
  %v1722 = vmul.f32 %v1718, 1.442695
  %v1723 = vpow.pop %v1722
  %v1724 = vmul.f32 %v1719, 1.442695
  %v1725 = vpow.pop %v1724
  %v1726 = vadd.f32 %v1721, 1.0
  %v1727 = vadd.f32 %v1723, 1.0
  %v1728 = vadd.f32 %v1725, 1.0
  %v1729 = vrcp.pop %v1726
  %v1730 = vmul.f32 1.0, %v1729
  %v1731 = vrcp.pop %v1727
  %v1732 = vmul.f32 1.0, %v1731
  %v1733 = vrcp.pop %v1728
  %v1734 = vmul.f32 1.0, %v1733
  %v1735 = vtanh.pop %v1716
  %v1736 = vmul.f32 %v1732, 0.0
  %v1737 = vmul.f32 %v1730, %v1735
  %v1738 = vadd.f32 %v1736, %v1737
  %v1739 = vtanh.pop %v1738
  %v1740 = vmul.f32 %v1734, %v1739
  %1741 = vmatprep.subr.mxu0 %v1568
  %1742 = vmatpush1.msra.mxu0 %v1567
  %1743 = vmatprep.subr.mxu0 %v1564
  %1744 = vmatpush1.msra.mxu0 %v1563
  %1745 = vmatprep.subr.mxu0 %v1560
  %1746 = vmatpush1.msra.mxu0 %v1559
  %1747 = vmatprep.subr.mxu0 %v1556
  %1748 = vmatpush1.msra.mxu0 %v1555
  %1749 = vmatprep.subr.mxu0 %v1552
  %1750 = vmatpush1.msra.mxu0 %v1551
  %1751 = vmatprep.subr.mxu0 %v1548
  %1752 = vmatpush1.msra.mxu0 %v1547
  %1753 = vmatprep.subr.mxu0 %v1544
  %1754 = vmatpush1.msra.mxu0 %v1543
  %1755 = vmatprep.subr.mxu0 %v1540
  %1756 = vmatpush1.msra.mxu0 %v1539
  %1757 = vmatprep.subr.mxu0 %v1536
  %1758 = vmatpush1.msra.mxu0 %v1535
  %1759 = vmatprep.subr.mxu0 %v1532
  %1760 = vmatpush1.msra.mxu0 %v1531
  %1761 = vmatprep.subr.mxu0 %v1528
  %1762 = vmatpush1.msra.mxu0 %v1527
  %1763 = vmatprep.subr.mxu0 %v1524
  %1764 = vmatpush1.msra.mxu0 %v1523
  %1765 = vmatprep.subr.mxu0 %v1520
  %1766 = vmatpush1.msra.mxu0 %v1519
  %1767 = vmatprep.subr.mxu0 %v1516
  %1768 = vmatpush1.msra.mxu0 %v1515
  %1769 = vmatprep.subr.mxu0 %v1512
  %1770 = vmatpush1.msra.mxu0 %v1511
  %1771 = vmatprep.subr.mxu0 %v1508
  %1772 = vmatpush1.msra.mxu0 %v1507
  %1773 = vmatprep.subr.mxu0 0.0
  %1774 = vmatpush2.msra.mxu0 0.0
  %1775 = vmatprep.subr.mxu0 0.0
  %1776 = vmatpush2.msra.mxu0 0.0
  %1777 = vmatprep.subr.mxu0 0.0
  %1778 = vmatpush2.msra.mxu0 0.0
  %1779 = vmatprep.subr.mxu0 0.0
  %1780 = vmatpush2.msra.mxu0 0.0
  %1781 = vmatprep.subr.mxu0 0.0
  %1782 = vmatpush2.msra.mxu0 0.0
  %1783 = vmatprep.subr.mxu0 0.0
  %1784 = vmatpush2.msra.mxu0 0.0
  %1785 = vmatprep.subr.mxu0 0.0
  %1786 = vmatpush2.msra.mxu0 0.0
  %1787 = vmatprep.subr.mxu0 0.0
  %1788 = vmatpush2.msra.mxu0 0.0
  %1789 = vmatprep.subr.mxu0 0.0
  %1790 = vmatpush2.msra.mxu0 0.0
  %1791 = vmatprep.subr.mxu0 0.0
  %1792 = vmatpush2.msra.mxu0 0.0
  %1793 = vmatprep.subr.mxu0 0.0
  %1794 = vmatpush2.msra.mxu0 0.0
  %1795 = vmatprep.subr.mxu0 0.0
  %1796 = vmatpush2.msra.mxu0 0.0
  %1797 = vmatprep.subr.mxu0 0.0
  %1798 = vmatpush2.msra.mxu0 0.0
  %1799 = vmatprep.subr.mxu0 0.0
  %1800 = vmatpush2.msra.mxu0 0.0
  %1801 = vmatprep.subr.mxu0 0.0
  %1802 = vmatpush2.msra.mxu0 0.0
  %1803 = vmatprep.subr.mxu0 0.0
  %1804 = vmatpush2.msra.mxu0 0.0
  %1805 = vmatprep.mubr.f32.mxu0 0.0
  %1806 = vmatmul.mubr.f32.gmra.mxu0 %v1740
  %v1807 = vpop.f32.mrf.mxu0
  %v1808 = vadd.f32 0.0, %v1807
  %v1809 = vpop.f32.mrf.mxu0
  %v1810 = vadd.f32 0.0, %v1809
  %1811 = vdwg.mxu0
  %1812 = vmatprep.subr.mxu0 %v1570
  %1813 = vmatpush1.msra.mxu0 %v1569
  %1814 = vmatprep.subr.mxu0 %v1566
  %1815 = vmatpush1.msra.mxu0 %v1565
  %1816 = vmatprep.subr.mxu0 %v1562
  %1817 = vmatpush1.msra.mxu0 %v1561
  %1818 = vmatprep.subr.mxu0 %v1558
  %1819 = vmatpush1.msra.mxu0 %v1557
  %1820 = vmatprep.subr.mxu0 %v1554
  %1821 = vmatpush1.msra.mxu0 %v1553
  %1822 = vmatprep.subr.mxu0 %v1550
  %1823 = vmatpush1.msra.mxu0 %v1549
  %1824 = vmatprep.subr.mxu0 %v1546
  %1825 = vmatpush1.msra.mxu0 %v1545
  %1826 = vmatprep.subr.mxu0 %v1542
  %1827 = vmatpush1.msra.mxu0 %v1541
  %1828 = vmatprep.subr.mxu0 %v1538
  %1829 = vmatpush1.msra.mxu0 %v1537
  %1830 = vmatprep.subr.mxu0 %v1534
  %1831 = vmatpush1.msra.mxu0 %v1533
  %1832 = vmatprep.subr.mxu0 %v1530
  %1833 = vmatpush1.msra.mxu0 %v1529
  %1834 = vmatprep.subr.mxu0 %v1526
  %1835 = vmatpush1.msra.mxu0 %v1525
  %1836 = vmatprep.subr.mxu0 %v1522
  %1837 = vmatpush1.msra.mxu0 %v1521
  %1838 = vmatprep.subr.mxu0 %v1518
  %1839 = vmatpush1.msra.mxu0 %v1517
  %1840 = vmatprep.subr.mxu0 %v1514
  %1841 = vmatpush1.msra.mxu0 %v1513
  %1842 = vmatprep.subr.mxu0 %v1510
  %1843 = vmatpush1.msra.mxu0 %v1509
  %1844 = vmatprep.subr.mxu0 0.0
  %1845 = vmatpush2.msra.mxu0 0.0
  %1846 = vmatprep.subr.mxu0 0.0
  %1847 = vmatpush2.msra.mxu0 0.0
  %1848 = vmatprep.subr.mxu0 0.0
  %1849 = vmatpush2.msra.mxu0 0.0
  %1850 = vmatprep.subr.mxu0 0.0
  %1851 = vmatpush2.msra.mxu0 0.0
  %1852 = vmatprep.subr.mxu0 0.0
  %1853 = vmatpush2.msra.mxu0 0.0
  %1854 = vmatprep.subr.mxu0 0.0
  %1855 = vmatpush2.msra.mxu0 0.0
  %1856 = vmatprep.subr.mxu0 0.0
  %1857 = vmatpush2.msra.mxu0 0.0
  %1858 = vmatprep.subr.mxu0 0.0
  %1859 = vmatpush2.msra.mxu0 0.0
  %1860 = vmatprep.subr.mxu0 0.0
  %1861 = vmatpush2.msra.mxu0 0.0
  %1862 = vmatprep.subr.mxu0 0.0
  %1863 = vmatpush2.msra.mxu0 0.0
  %1864 = vmatprep.subr.mxu0 0.0
  %1865 = vmatpush2.msra.mxu0 0.0
  %1866 = vmatprep.subr.mxu0 0.0
  %1867 = vmatpush2.msra.mxu0 0.0
  %1868 = vmatprep.subr.mxu0 0.0
  %1869 = vmatpush2.msra.mxu0 0.0
  %1870 = vmatprep.subr.mxu0 0.0
  %1871 = vmatpush2.msra.mxu0 0.0
  %1872 = vmatprep.subr.mxu0 0.0
  %1873 = vmatpush2.msra.mxu0 0.0
  %1874 = vmatprep.subr.mxu0 0.0
  %1875 = vmatpush2.msra.mxu0 0.0
  %1876 = vmatprep.mubr.f32.mxu0 0.0
  %1877 = vmatmul.mubr.f32.gmra.mxu0 %v1740
  %v1878 = vpop.f32.mrf.mxu0
  %v1879 = vadd.f32 0.0, %v1878
  %v1880 = vpop.f32.mrf.mxu0
  %v1881 = vadd.f32 0.0, %v1880
  %1882 = vdwg.mxu0
  %v1883 = vadd.f32 %v1479, %v1808
  %v1884 = vadd.f32 %v1480, %v1810
  %v1885 = vadd.f32 %v1481, %v1879
  %v1886 = vadd.f32 %v1482, %v1881
  %v1887 = vxor.u32 %v1883, 2147483648
  %v1888 = vxor.u32 %v1884, 2147483648
  %v1889 = vxor.u32 %v1885, 2147483648
  %v1890 = vmul.f32 %v1887, 1.442695
  %v1891 = vpow.pop %v1890
  %v1892 = vmul.f32 %v1888, 1.442695
  %v1893 = vpow.pop %v1892
  %v1894 = vmul.f32 %v1889, 1.442695
  %v1895 = vpow.pop %v1894
  %v1896 = vadd.f32 %v1891, 1.0
  %v1897 = vadd.f32 %v1893, 1.0
  %v1898 = vadd.f32 %v1895, 1.0
  %v1899 = vrcp.pop %v1896
  %v1900 = vmul.f32 1.0, %v1899
  %v1901 = vrcp.pop %v1897
  %v1902 = vmul.f32 1.0, %v1901
  %v1903 = vrcp.pop %v1898
  %v1904 = vmul.f32 1.0, %v1903
  %v1905 = vtanh.pop %v1886
  %v1906 = vmul.f32 %v1902, %v1738
  %v1907 = vmul.f32 %v1900, %v1905
  %v1908 = vadd.f32 %v1906, %v1907
  %v1909 = vtanh.pop %v1908
  %v1910 = vmul.f32 %v1904, %v1909
  %1911 = vmatprep.subr.mxu0 %v1568
  %1912 = vmatpush1.msra.mxu0 %v1567
  %1913 = vmatprep.subr.mxu0 %v1564
  %1914 = vmatpush1.msra.mxu0 %v1563
  %1915 = vmatprep.subr.mxu0 %v1560
  %1916 = vmatpush1.msra.mxu0 %v1559
  %1917 = vmatprep.subr.mxu0 %v1556
  %1918 = vmatpush1.msra.mxu0 %v1555
  %1919 = vmatprep.subr.mxu0 %v1552
  %1920 = vmatpush1.msra.mxu0 %v1551
  %1921 = vmatprep.subr.mxu0 %v1548
  %1922 = vmatpush1.msra.mxu0 %v1547
  %1923 = vmatprep.subr.mxu0 %v1544
  %1924 = vmatpush1.msra.mxu0 %v1543
  %1925 = vmatprep.subr.mxu0 %v1540
  %1926 = vmatpush1.msra.mxu0 %v1539
  %1927 = vmatprep.subr.mxu0 %v1536
  %1928 = vmatpush1.msra.mxu0 %v1535
  %1929 = vmatprep.subr.mxu0 %v1532
  %1930 = vmatpush1.msra.mxu0 %v1531
  %1931 = vmatprep.subr.mxu0 %v1528
  %1932 = vmatpush1.msra.mxu0 %v1527
  %1933 = vmatprep.subr.mxu0 %v1524
  %1934 = vmatpush1.msra.mxu0 %v1523
  %1935 = vmatprep.subr.mxu0 %v1520
  %1936 = vmatpush1.msra.mxu0 %v1519
  %1937 = vmatprep.subr.mxu0 %v1516
  %1938 = vmatpush1.msra.mxu0 %v1515
  %1939 = vmatprep.subr.mxu0 %v1512
  %1940 = vmatpush1.msra.mxu0 %v1511
  %1941 = vmatprep.subr.mxu0 %v1508
  %1942 = vmatpush1.msra.mxu0 %v1507
  %1943 = vmatprep.subr.mxu0 0.0
  %1944 = vmatpush2.msra.mxu0 0.0
  %1945 = vmatprep.subr.mxu0 0.0
  %1946 = vmatpush2.msra.mxu0 0.0
  %1947 = vmatprep.subr.mxu0 0.0
  %1948 = vmatpush2.msra.mxu0 0.0
  %1949 = vmatprep.subr.mxu0 0.0
  %1950 = vmatpush2.msra.mxu0 0.0
  %1951 = vmatprep.subr.mxu0 0.0
  %1952 = vmatpush2.msra.mxu0 0.0
  %1953 = vmatprep.subr.mxu0 0.0
  %1954 = vmatpush2.msra.mxu0 0.0
  %1955 = vmatprep.subr.mxu0 0.0
  %1956 = vmatpush2.msra.mxu0 0.0
  %1957 = vmatprep.subr.mxu0 0.0
  %1958 = vmatpush2.msra.mxu0 0.0
  %1959 = vmatprep.subr.mxu0 0.0
  %1960 = vmatpush2.msra.mxu0 0.0
  %1961 = vmatprep.subr.mxu0 0.0
  %1962 = vmatpush2.msra.mxu0 0.0
  %1963 = vmatprep.subr.mxu0 0.0
  %1964 = vmatpush2.msra.mxu0 0.0
  %1965 = vmatprep.subr.mxu0 0.0
  %1966 = vmatpush2.msra.mxu0 0.0
  %1967 = vmatprep.subr.mxu0 0.0
  %1968 = vmatpush2.msra.mxu0 0.0
  %1969 = vmatprep.subr.mxu0 0.0
  %1970 = vmatpush2.msra.mxu0 0.0
  %1971 = vmatprep.subr.mxu0 0.0
  %1972 = vmatpush2.msra.mxu0 0.0
  %1973 = vmatprep.subr.mxu0 0.0
  %1974 = vmatpush2.msra.mxu0 0.0
  %1975 = vmatprep.mubr.f32.mxu0 0.0
  %1976 = vmatmul.mubr.f32.gmra.mxu0 %v1910
  %v1977 = vpop.f32.mrf.mxu0
  %v1978 = vadd.f32 0.0, %v1977
  %v1979 = vpop.f32.mrf.mxu0
  %v1980 = vadd.f32 0.0, %v1979
  %1981 = vdwg.mxu0
  %1982 = vmatprep.subr.mxu0 %v1570
  %1983 = vmatpush1.msra.mxu0 %v1569
  %1984 = vmatprep.subr.mxu0 %v1566
  %1985 = vmatpush1.msra.mxu0 %v1565
  %1986 = vmatprep.subr.mxu0 %v1562
  %1987 = vmatpush1.msra.mxu0 %v1561
  %1988 = vmatprep.subr.mxu0 %v1558
  %1989 = vmatpush1.msra.mxu0 %v1557
  %1990 = vmatprep.subr.mxu0 %v1554
  %1991 = vmatpush1.msra.mxu0 %v1553
  %1992 = vmatprep.subr.mxu0 %v1550
  %1993 = vmatpush1.msra.mxu0 %v1549
  %1994 = vmatprep.subr.mxu0 %v1546
  %1995 = vmatpush1.msra.mxu0 %v1545
  %1996 = vmatprep.subr.mxu0 %v1542
  %1997 = vmatpush1.msra.mxu0 %v1541
  %1998 = vmatprep.subr.mxu0 %v1538
  %1999 = vmatpush1.msra.mxu0 %v1537
  %2000 = vmatprep.subr.mxu0 %v1534
  %2001 = vmatpush1.msra.mxu0 %v1533
  %2002 = vmatprep.subr.mxu0 %v1530
  %2003 = vmatpush1.msra.mxu0 %v1529
  %2004 = vmatprep.subr.mxu0 %v1526
  %2005 = vmatpush1.msra.mxu0 %v1525
  %2006 = vmatprep.subr.mxu0 %v1522
  %2007 = vmatpush1.msra.mxu0 %v1521
  %2008 = vmatprep.subr.mxu0 %v1518
  %2009 = vmatpush1.msra.mxu0 %v1517
  %2010 = vmatprep.subr.mxu0 %v1514
  %2011 = vmatpush1.msra.mxu0 %v1513
  %2012 = vmatprep.subr.mxu0 %v1510
  %2013 = vmatpush1.msra.mxu0 %v1509
  %2014 = vmatprep.subr.mxu0 0.0
  %2015 = vmatpush2.msra.mxu0 0.0
  %2016 = vmatprep.subr.mxu0 0.0
  %2017 = vmatpush2.msra.mxu0 0.0
  %2018 = vmatprep.subr.mxu0 0.0
  %2019 = vmatpush2.msra.mxu0 0.0
  %2020 = vmatprep.subr.mxu0 0.0
  %2021 = vmatpush2.msra.mxu0 0.0
  %2022 = vmatprep.subr.mxu0 0.0
  %2023 = vmatpush2.msra.mxu0 0.0
  %2024 = vmatprep.subr.mxu0 0.0
  %2025 = vmatpush2.msra.mxu0 0.0
  %2026 = vmatprep.subr.mxu0 0.0
  %2027 = vmatpush2.msra.mxu0 0.0
  %2028 = vmatprep.subr.mxu0 0.0
  %2029 = vmatpush2.msra.mxu0 0.0
  %2030 = vmatprep.subr.mxu0 0.0
  %2031 = vmatpush2.msra.mxu0 0.0
  %2032 = vmatprep.subr.mxu0 0.0
  %2033 = vmatpush2.msra.mxu0 0.0
  %2034 = vmatprep.subr.mxu0 0.0
  %2035 = vmatpush2.msra.mxu0 0.0
  %2036 = vmatprep.subr.mxu0 0.0
  %2037 = vmatpush2.msra.mxu0 0.0
  %2038 = vmatprep.subr.mxu0 0.0
  %2039 = vmatpush2.msra.mxu0 0.0
  %2040 = vmatprep.subr.mxu0 0.0
  %2041 = vmatpush2.msra.mxu0 0.0
  %2042 = vmatprep.subr.mxu0 0.0
  %2043 = vmatpush2.msra.mxu0 0.0
  %2044 = vmatprep.subr.mxu0 0.0
  %2045 = vmatpush2.msra.mxu0 0.0
  %2046 = vmatprep.mubr.f32.mxu0 0.0
  %2047 = vmatmul.mubr.f32.gmra.mxu0 %v1910
  %v2048 = vpop.f32.mrf.mxu0
  %v2049 = vadd.f32 0.0, %v2048
  %v2050 = vpop.f32.mrf.mxu0
  %v2051 = vadd.f32 0.0, %v2050
  %2052 = vdwg.mxu0
  %v2053 = vadd.f32 %v1483, %v1978
  %v2054 = vadd.f32 %v1484, %v1980
  %v2055 = vadd.f32 %v1485, %v2049
  %v2056 = vadd.f32 %v1486, %v2051
  %v2057 = vxor.u32 %v2053, 2147483648
  %v2058 = vxor.u32 %v2054, 2147483648
  %v2059 = vxor.u32 %v2055, 2147483648
  %v2060 = vmul.f32 %v2057, 1.442695
  %v2061 = vpow.pop %v2060
  %v2062 = vmul.f32 %v2058, 1.442695
  %v2063 = vpow.pop %v2062
  %v2064 = vmul.f32 %v2059, 1.442695
  %v2065 = vpow.pop %v2064
  %v2066 = vadd.f32 %v2061, 1.0
  %v2067 = vadd.f32 %v2063, 1.0
  %v2068 = vadd.f32 %v2065, 1.0
  %v2069 = vrcp.pop %v2066
  %v2070 = vmul.f32 1.0, %v2069
  %v2071 = vrcp.pop %v2067
  %v2072 = vmul.f32 1.0, %v2071
  %v2073 = vrcp.pop %v2068
  %v2074 = vmul.f32 1.0, %v2073
  %v2075 = vtanh.pop %v2056
  %v2076 = vmul.f32 %v2072, %v1908
  %v2077 = vmul.f32 %v2070, %v2075
  %v2078 = vadd.f32 %v2076, %v2077
  %v2079 = vtanh.pop %v2078
  %v2080 = vmul.f32 %v2074, %v2079
  %2081 = vmatprep.subr.mxu0 %v1568
  %2082 = vmatpush1.msra.mxu0 %v1567
  %2083 = vmatprep.subr.mxu0 %v1564
  %2084 = vmatpush1.msra.mxu0 %v1563
  %2085 = vmatprep.subr.mxu0 %v1560
  %2086 = vmatpush1.msra.mxu0 %v1559
  %2087 = vmatprep.subr.mxu0 %v1556
  %2088 = vmatpush1.msra.mxu0 %v1555
  %2089 = vmatprep.subr.mxu0 %v1552
  %2090 = vmatpush1.msra.mxu0 %v1551
  %2091 = vmatprep.subr.mxu0 %v1548
  %2092 = vmatpush1.msra.mxu0 %v1547
  %2093 = vmatprep.subr.mxu0 %v1544
  %2094 = vmatpush1.msra.mxu0 %v1543
  %2095 = vmatprep.subr.mxu0 %v1540
  %2096 = vmatpush1.msra.mxu0 %v1539
  %2097 = vmatprep.subr.mxu0 %v1536
  %2098 = vmatpush1.msra.mxu0 %v1535
  %2099 = vmatprep.subr.mxu0 %v1532
  %2100 = vmatpush1.msra.mxu0 %v1531
  %2101 = vmatprep.subr.mxu0 %v1528
  %2102 = vmatpush1.msra.mxu0 %v1527
  %2103 = vmatprep.subr.mxu0 %v1524
  %2104 = vmatpush1.msra.mxu0 %v1523
  %2105 = vmatprep.subr.mxu0 %v1520
  %2106 = vmatpush1.msra.mxu0 %v1519
  %2107 = vmatprep.subr.mxu0 %v1516
  %2108 = vmatpush1.msra.mxu0 %v1515
  %2109 = vmatprep.subr.mxu0 %v1512
  %2110 = vmatpush1.msra.mxu0 %v1511
  %2111 = vmatprep.subr.mxu0 %v1508
  %2112 = vmatpush1.msra.mxu0 %v1507
  %2113 = vmatprep.subr.mxu0 0.0
  %2114 = vmatpush2.msra.mxu0 0.0
  %2115 = vmatprep.subr.mxu0 0.0
  %2116 = vmatpush2.msra.mxu0 0.0
  %2117 = vmatprep.subr.mxu0 0.0
  %2118 = vmatpush2.msra.mxu0 0.0
  %2119 = vmatprep.subr.mxu0 0.0
  %2120 = vmatpush2.msra.mxu0 0.0
  %2121 = vmatprep.subr.mxu0 0.0
  %2122 = vmatpush2.msra.mxu0 0.0
  %2123 = vmatprep.subr.mxu0 0.0
  %2124 = vmatpush2.msra.mxu0 0.0
  %2125 = vmatprep.subr.mxu0 0.0
  %2126 = vmatpush2.msra.mxu0 0.0
  %2127 = vmatprep.subr.mxu0 0.0
  %2128 = vmatpush2.msra.mxu0 0.0
  %2129 = vmatprep.subr.mxu0 0.0
  %2130 = vmatpush2.msra.mxu0 0.0
  %2131 = vmatprep.subr.mxu0 0.0
  %2132 = vmatpush2.msra.mxu0 0.0
  %2133 = vmatprep.subr.mxu0 0.0
  %2134 = vmatpush2.msra.mxu0 0.0
  %2135 = vmatprep.subr.mxu0 0.0
  %2136 = vmatpush2.msra.mxu0 0.0
  %2137 = vmatprep.subr.mxu0 0.0
  %2138 = vmatpush2.msra.mxu0 0.0
  %2139 = vmatprep.subr.mxu0 0.0
  %2140 = vmatpush2.msra.mxu0 0.0
  %2141 = vmatprep.subr.mxu0 0.0
  %2142 = vmatpush2.msra.mxu0 0.0
  %2143 = vmatprep.subr.mxu0 0.0
  %2144 = vmatpush2.msra.mxu0 0.0
  %2145 = vmatprep.mubr.f32.mxu0 0.0
  %2146 = vmatmul.mubr.f32.gmra.mxu0 %v2080
  %v2147 = vpop.f32.mrf.mxu0
  %v2148 = vadd.f32 0.0, %v2147
  %v2149 = vpop.f32.mrf.mxu0
  %v2150 = vadd.f32 0.0, %v2149
  %2151 = vdwg.mxu0
  %2152 = vmatprep.subr.mxu0 %v1570
  %2153 = vmatpush1.msra.mxu0 %v1569
  %2154 = vmatprep.subr.mxu0 %v1566
  %2155 = vmatpush1.msra.mxu0 %v1565
  %2156 = vmatprep.subr.mxu0 %v1562
  %2157 = vmatpush1.msra.mxu0 %v1561
  %2158 = vmatprep.subr.mxu0 %v1558
  %2159 = vmatpush1.msra.mxu0 %v1557
  %2160 = vmatprep.subr.mxu0 %v1554
  %2161 = vmatpush1.msra.mxu0 %v1553
  %2162 = vmatprep.subr.mxu0 %v1550
  %2163 = vmatpush1.msra.mxu0 %v1549
  %2164 = vmatprep.subr.mxu0 %v1546
  %2165 = vmatpush1.msra.mxu0 %v1545
  %2166 = vmatprep.subr.mxu0 %v1542
  %2167 = vmatpush1.msra.mxu0 %v1541
  %2168 = vmatprep.subr.mxu0 %v1538
  %2169 = vmatpush1.msra.mxu0 %v1537
  %2170 = vmatprep.subr.mxu0 %v1534
  %2171 = vmatpush1.msra.mxu0 %v1533
  %2172 = vmatprep.subr.mxu0 %v1530
  %2173 = vmatpush1.msra.mxu0 %v1529
  %2174 = vmatprep.subr.mxu0 %v1526
  %2175 = vmatpush1.msra.mxu0 %v1525
  %2176 = vmatprep.subr.mxu0 %v1522
  %2177 = vmatpush1.msra.mxu0 %v1521
  %2178 = vmatprep.subr.mxu0 %v1518
  %2179 = vmatpush1.msra.mxu0 %v1517
  %2180 = vmatprep.subr.mxu0 %v1514
  %2181 = vmatpush1.msra.mxu0 %v1513
  %2182 = vmatprep.subr.mxu0 %v1510
  %2183 = vmatpush1.msra.mxu0 %v1509
  %2184 = vmatprep.subr.mxu0 0.0
  %2185 = vmatpush2.msra.mxu0 0.0
  %2186 = vmatprep.subr.mxu0 0.0
  %2187 = vmatpush2.msra.mxu0 0.0
  %2188 = vmatprep.subr.mxu0 0.0
  %2189 = vmatpush2.msra.mxu0 0.0
  %2190 = vmatprep.subr.mxu0 0.0
  %2191 = vmatpush2.msra.mxu0 0.0
  %2192 = vmatprep.subr.mxu0 0.0
  %2193 = vmatpush2.msra.mxu0 0.0
  %2194 = vmatprep.subr.mxu0 0.0
  %2195 = vmatpush2.msra.mxu0 0.0
  %2196 = vmatprep.subr.mxu0 0.0
  %2197 = vmatpush2.msra.mxu0 0.0
  %2198 = vmatprep.subr.mxu0 0.0
  %2199 = vmatpush2.msra.mxu0 0.0
  %2200 = vmatprep.subr.mxu0 0.0
  %2201 = vmatpush2.msra.mxu0 0.0
  %2202 = vmatprep.subr.mxu0 0.0
  %2203 = vmatpush2.msra.mxu0 0.0
  %2204 = vmatprep.subr.mxu0 0.0
  %2205 = vmatpush2.msra.mxu0 0.0
  %2206 = vmatprep.subr.mxu0 0.0
  %2207 = vmatpush2.msra.mxu0 0.0
  %2208 = vmatprep.subr.mxu0 0.0
  %2209 = vmatpush2.msra.mxu0 0.0
  %2210 = vmatprep.subr.mxu0 0.0
  %2211 = vmatpush2.msra.mxu0 0.0
  %2212 = vmatprep.subr.mxu0 0.0
  %2213 = vmatpush2.msra.mxu0 0.0
  %2214 = vmatprep.subr.mxu0 0.0
  %2215 = vmatpush2.msra.mxu0 0.0
  %2216 = vmatprep.mubr.f32.mxu0 0.0
  %2217 = vmatmul.mubr.f32.gmra.mxu0 %v2080
  %v2218 = vpop.f32.mrf.mxu0
  %v2219 = vadd.f32 0.0, %v2218
  %v2220 = vpop.f32.mrf.mxu0
  %v2221 = vadd.f32 0.0, %v2220
  %2222 = vdwg.mxu0
  %v2223 = vadd.f32 %v1487, %v2148
  %v2224 = vadd.f32 %v1488, %v2150
  %v2225 = vadd.f32 %v1489, %v2219
  %v2226 = vadd.f32 %v1490, %v2221
  %v2227 = vxor.u32 %v2223, 2147483648
  %v2228 = vxor.u32 %v2224, 2147483648
  %v2229 = vxor.u32 %v2225, 2147483648
  %v2230 = vmul.f32 %v2227, 1.442695
  %v2231 = vpow.pop %v2230
  %v2232 = vmul.f32 %v2228, 1.442695
  %v2233 = vpow.pop %v2232
  %v2234 = vmul.f32 %v2229, 1.442695
  %v2235 = vpow.pop %v2234
  %v2236 = vadd.f32 %v2231, 1.0
  %v2237 = vadd.f32 %v2233, 1.0
  %v2238 = vadd.f32 %v2235, 1.0
  %v2239 = vrcp.pop %v2236
  %v2240 = vmul.f32 1.0, %v2239
  %v2241 = vrcp.pop %v2237
  %v2242 = vmul.f32 1.0, %v2241
  %v2243 = vrcp.pop %v2238
  %v2244 = vmul.f32 1.0, %v2243
  %v2245 = vtanh.pop %v2226
  %v2246 = vmul.f32 %v2242, %v2078
  %v2247 = vmul.f32 %v2240, %v2245
  %v2248 = vadd.f32 %v2246, %v2247
  %v2249 = vtanh.pop %v2248
  %v2250 = vmul.f32 %v2244, %v2249
  %2251 = vmatprep.subr.mxu0 %v1568
  %2252 = vmatpush1.msra.mxu0 %v1567
  %2253 = vmatprep.subr.mxu0 %v1564
  %2254 = vmatpush1.msra.mxu0 %v1563
  %2255 = vmatprep.subr.mxu0 %v1560
  %2256 = vmatpush1.msra.mxu0 %v1559
  %2257 = vmatprep.subr.mxu0 %v1556
  %2258 = vmatpush1.msra.mxu0 %v1555
  %2259 = vmatprep.subr.mxu0 %v1552
  %2260 = vmatpush1.msra.mxu0 %v1551
  %2261 = vmatprep.subr.mxu0 %v1548
  %2262 = vmatpush1.msra.mxu0 %v1547
  %2263 = vmatprep.subr.mxu0 %v1544
  %2264 = vmatpush1.msra.mxu0 %v1543
  %2265 = vmatprep.subr.mxu0 %v1540
  %2266 = vmatpush1.msra.mxu0 %v1539
  %2267 = vmatprep.subr.mxu0 %v1536
  %2268 = vmatpush1.msra.mxu0 %v1535
  %2269 = vmatprep.subr.mxu0 %v1532
  %2270 = vmatpush1.msra.mxu0 %v1531
  %2271 = vmatprep.subr.mxu0 %v1528
  %2272 = vmatpush1.msra.mxu0 %v1527
  %2273 = vmatprep.subr.mxu0 %v1524
  %2274 = vmatpush1.msra.mxu0 %v1523
  %2275 = vmatprep.subr.mxu0 %v1520
  %2276 = vmatpush1.msra.mxu0 %v1519
  %2277 = vmatprep.subr.mxu0 %v1516
  %2278 = vmatpush1.msra.mxu0 %v1515
  %2279 = vmatprep.subr.mxu0 %v1512
  %2280 = vmatpush1.msra.mxu0 %v1511
  %2281 = vmatprep.subr.mxu0 %v1508
  %2282 = vmatpush1.msra.mxu0 %v1507
  %2283 = vmatprep.subr.mxu0 0.0
  %2284 = vmatpush2.msra.mxu0 0.0
  %2285 = vmatprep.subr.mxu0 0.0
  %2286 = vmatpush2.msra.mxu0 0.0
  %2287 = vmatprep.subr.mxu0 0.0
  %2288 = vmatpush2.msra.mxu0 0.0
  %2289 = vmatprep.subr.mxu0 0.0
  %2290 = vmatpush2.msra.mxu0 0.0
  %2291 = vmatprep.subr.mxu0 0.0
  %2292 = vmatpush2.msra.mxu0 0.0
  %2293 = vmatprep.subr.mxu0 0.0
  %2294 = vmatpush2.msra.mxu0 0.0
  %2295 = vmatprep.subr.mxu0 0.0
  %2296 = vmatpush2.msra.mxu0 0.0
  %2297 = vmatprep.subr.mxu0 0.0
  %2298 = vmatpush2.msra.mxu0 0.0
  %2299 = vmatprep.subr.mxu0 0.0
  %2300 = vmatpush2.msra.mxu0 0.0
  %2301 = vmatprep.subr.mxu0 0.0
  %2302 = vmatpush2.msra.mxu0 0.0
  %2303 = vmatprep.subr.mxu0 0.0
  %2304 = vmatpush2.msra.mxu0 0.0
  %2305 = vmatprep.subr.mxu0 0.0
  %2306 = vmatpush2.msra.mxu0 0.0
  %2307 = vmatprep.subr.mxu0 0.0
  %2308 = vmatpush2.msra.mxu0 0.0
  %2309 = vmatprep.subr.mxu0 0.0
  %2310 = vmatpush2.msra.mxu0 0.0
  %2311 = vmatprep.subr.mxu0 0.0
  %2312 = vmatpush2.msra.mxu0 0.0
  %2313 = vmatprep.subr.mxu0 0.0
  %2314 = vmatpush2.msra.mxu0 0.0
  %2315 = vmatprep.mubr.f32.mxu0 0.0
  %2316 = vmatmul.mubr.f32.gmra.mxu0 %v2250
  %v2317 = vpop.f32.mrf.mxu0
  %v2318 = vadd.f32 0.0, %v2317
  %v2319 = vpop.f32.mrf.mxu0
  %v2320 = vadd.f32 0.0, %v2319
  %2321 = vdwg.mxu0
  %2322 = vmatprep.subr.mxu0 %v1570
  %2323 = vmatpush1.msra.mxu0 %v1569
  %2324 = vmatprep.subr.mxu0 %v1566
  %2325 = vmatpush1.msra.mxu0 %v1565
  %2326 = vmatprep.subr.mxu0 %v1562
  %2327 = vmatpush1.msra.mxu0 %v1561
  %2328 = vmatprep.subr.mxu0 %v1558
  %2329 = vmatpush1.msra.mxu0 %v1557
  %2330 = vmatprep.subr.mxu0 %v1554
  %2331 = vmatpush1.msra.mxu0 %v1553
  %2332 = vmatprep.subr.mxu0 %v1550
  %2333 = vmatpush1.msra.mxu0 %v1549
  %2334 = vmatprep.subr.mxu0 %v1546
  %2335 = vmatpush1.msra.mxu0 %v1545
  %2336 = vmatprep.subr.mxu0 %v1542
  %2337 = vmatpush1.msra.mxu0 %v1541
  %2338 = vmatprep.subr.mxu0 %v1538
  %2339 = vmatpush1.msra.mxu0 %v1537
  %2340 = vmatprep.subr.mxu0 %v1534
  %2341 = vmatpush1.msra.mxu0 %v1533
  %2342 = vmatprep.subr.mxu0 %v1530
  %2343 = vmatpush1.msra.mxu0 %v1529
  %2344 = vmatprep.subr.mxu0 %v1526
  %2345 = vmatpush1.msra.mxu0 %v1525
  %2346 = vmatprep.subr.mxu0 %v1522
  %2347 = vmatpush1.msra.mxu0 %v1521
  %2348 = vmatprep.subr.mxu0 %v1518
  %2349 = vmatpush1.msra.mxu0 %v1517
  %2350 = vmatprep.subr.mxu0 %v1514
  %2351 = vmatpush1.msra.mxu0 %v1513
  %2352 = vmatprep.subr.mxu0 %v1510
  %2353 = vmatpush1.msra.mxu0 %v1509
  %2354 = vmatprep.subr.mxu0 0.0
  %2355 = vmatpush2.msra.mxu0 0.0
  %2356 = vmatprep.subr.mxu0 0.0
  %2357 = vmatpush2.msra.mxu0 0.0
  %2358 = vmatprep.subr.mxu0 0.0
  %2359 = vmatpush2.msra.mxu0 0.0
  %2360 = vmatprep.subr.mxu0 0.0
  %2361 = vmatpush2.msra.mxu0 0.0
  %2362 = vmatprep.subr.mxu0 0.0
  %2363 = vmatpush2.msra.mxu0 0.0
  %2364 = vmatprep.subr.mxu0 0.0
  %2365 = vmatpush2.msra.mxu0 0.0
  %2366 = vmatprep.subr.mxu0 0.0
  %2367 = vmatpush2.msra.mxu0 0.0
  %2368 = vmatprep.subr.mxu0 0.0
  %2369 = vmatpush2.msra.mxu0 0.0
  %2370 = vmatprep.subr.mxu0 0.0
  %2371 = vmatpush2.msra.mxu0 0.0
  %2372 = vmatprep.subr.mxu0 0.0
  %2373 = vmatpush2.msra.mxu0 0.0
  %2374 = vmatprep.subr.mxu0 0.0
  %2375 = vmatpush2.msra.mxu0 0.0
  %2376 = vmatprep.subr.mxu0 0.0
  %2377 = vmatpush2.msra.mxu0 0.0
  %2378 = vmatprep.subr.mxu0 0.0
  %2379 = vmatpush2.msra.mxu0 0.0
  %2380 = vmatprep.subr.mxu0 0.0
  %2381 = vmatpush2.msra.mxu0 0.0
  %2382 = vmatprep.subr.mxu0 0.0
  %2383 = vmatpush2.msra.mxu0 0.0
  %2384 = vmatprep.subr.mxu0 0.0
  %2385 = vmatpush2.msra.mxu0 0.0
  %2386 = vmatprep.mubr.f32.mxu0 0.0
  %2387 = vmatmul.mubr.f32.gmra.mxu0 %v2250
  %v2388 = vpop.f32.mrf.mxu0
  %v2389 = vadd.f32 0.0, %v2388
  %v2390 = vpop.f32.mrf.mxu0
  %v2391 = vadd.f32 0.0, %v2390
  %2392 = vdwg.mxu0
  %v2393 = vadd.f32 %v1491, %v2318
  %v2394 = vadd.f32 %v1492, %v2320
  %v2395 = vadd.f32 %v1493, %v2389
  %v2396 = vadd.f32 %v1494, %v2391
  %v2397 = vxor.u32 %v2393, 2147483648
  %v2398 = vxor.u32 %v2394, 2147483648
  %v2399 = vxor.u32 %v2395, 2147483648
  %v2400 = vmul.f32 %v2397, 1.442695
  %v2401 = vpow.pop %v2400
  %v2402 = vmul.f32 %v2398, 1.442695
  %v2403 = vpow.pop %v2402
  %v2404 = vmul.f32 %v2399, 1.442695
  %v2405 = vpow.pop %v2404
  %v2406 = vadd.f32 %v2401, 1.0
  %v2407 = vadd.f32 %v2403, 1.0
  %v2408 = vadd.f32 %v2405, 1.0
  %v2409 = vrcp.pop %v2406
  %v2410 = vmul.f32 1.0, %v2409
  %v2411 = vrcp.pop %v2407
  %v2412 = vmul.f32 1.0, %v2411
  %v2413 = vrcp.pop %v2408
  %v2414 = vmul.f32 1.0, %v2413
  %v2415 = vtanh.pop %v2396
  %v2416 = vmul.f32 %v2412, %v2248
  %v2417 = vmul.f32 %v2410, %v2415
  %v2418 = vadd.f32 %v2416, %v2417
  %v2419 = vtanh.pop %v2418
  %v2420 = vmul.f32 %v2414, %v2419
  %2421 = vmatprep.subr.mxu0 %v1568
  %2422 = vmatpush1.msra.mxu0 %v1567
  %2423 = vmatprep.subr.mxu0 %v1564
  %2424 = vmatpush1.msra.mxu0 %v1563
  %2425 = vmatprep.subr.mxu0 %v1560
  %2426 = vmatpush1.msra.mxu0 %v1559
  %2427 = vmatprep.subr.mxu0 %v1556
  %2428 = vmatpush1.msra.mxu0 %v1555
  %2429 = vmatprep.subr.mxu0 %v1552
  %2430 = vmatpush1.msra.mxu0 %v1551
  %2431 = vmatprep.subr.mxu0 %v1548
  %2432 = vmatpush1.msra.mxu0 %v1547
  %2433 = vmatprep.subr.mxu0 %v1544
  %2434 = vmatpush1.msra.mxu0 %v1543
  %2435 = vmatprep.subr.mxu0 %v1540
  %2436 = vmatpush1.msra.mxu0 %v1539
  %2437 = vmatprep.subr.mxu0 %v1536
  %2438 = vmatpush1.msra.mxu0 %v1535
  %2439 = vmatprep.subr.mxu0 %v1532
  %2440 = vmatpush1.msra.mxu0 %v1531
  %2441 = vmatprep.subr.mxu0 %v1528
  %2442 = vmatpush1.msra.mxu0 %v1527
  %2443 = vmatprep.subr.mxu0 %v1524
  %2444 = vmatpush1.msra.mxu0 %v1523
  %2445 = vmatprep.subr.mxu0 %v1520
  %2446 = vmatpush1.msra.mxu0 %v1519
  %2447 = vmatprep.subr.mxu0 %v1516
  %2448 = vmatpush1.msra.mxu0 %v1515
  %2449 = vmatprep.subr.mxu0 %v1512
  %2450 = vmatpush1.msra.mxu0 %v1511
  %2451 = vmatprep.subr.mxu0 %v1508
  %2452 = vmatpush1.msra.mxu0 %v1507
  %2453 = vmatprep.subr.mxu0 0.0
  %2454 = vmatpush2.msra.mxu0 0.0
  %2455 = vmatprep.subr.mxu0 0.0
  %2456 = vmatpush2.msra.mxu0 0.0
  %2457 = vmatprep.subr.mxu0 0.0
  %2458 = vmatpush2.msra.mxu0 0.0
  %2459 = vmatprep.subr.mxu0 0.0
  %2460 = vmatpush2.msra.mxu0 0.0
  %2461 = vmatprep.subr.mxu0 0.0
  %2462 = vmatpush2.msra.mxu0 0.0
  %2463 = vmatprep.subr.mxu0 0.0
  %2464 = vmatpush2.msra.mxu0 0.0
  %2465 = vmatprep.subr.mxu0 0.0
  %2466 = vmatpush2.msra.mxu0 0.0
  %2467 = vmatprep.subr.mxu0 0.0
  %2468 = vmatpush2.msra.mxu0 0.0
  %2469 = vmatprep.subr.mxu0 0.0
  %2470 = vmatpush2.msra.mxu0 0.0
  %2471 = vmatprep.subr.mxu0 0.0
  %2472 = vmatpush2.msra.mxu0 0.0
  %2473 = vmatprep.subr.mxu0 0.0
  %2474 = vmatpush2.msra.mxu0 0.0
  %2475 = vmatprep.subr.mxu0 0.0
  %2476 = vmatpush2.msra.mxu0 0.0
  %2477 = vmatprep.subr.mxu0 0.0
  %2478 = vmatpush2.msra.mxu0 0.0
  %2479 = vmatprep.subr.mxu0 0.0
  %2480 = vmatpush2.msra.mxu0 0.0
  %2481 = vmatprep.subr.mxu0 0.0
  %2482 = vmatpush2.msra.mxu0 0.0
  %2483 = vmatprep.subr.mxu0 0.0
  %2484 = vmatpush2.msra.mxu0 0.0
  %2485 = vmatprep.mubr.f32.mxu0 0.0
  %2486 = vmatmul.mubr.f32.gmra.mxu0 %v2420
  %v2487 = vpop.f32.mrf.mxu0
  %v2488 = vadd.f32 0.0, %v2487
  %v2489 = vpop.f32.mrf.mxu0
  %v2490 = vadd.f32 0.0, %v2489
  %2491 = vdwg.mxu0
  %2492 = vmatprep.subr.mxu0 %v1570
  %2493 = vmatpush1.msra.mxu0 %v1569
  %2494 = vmatprep.subr.mxu0 %v1566
  %2495 = vmatpush1.msra.mxu0 %v1565
  %2496 = vmatprep.subr.mxu0 %v1562
  %2497 = vmatpush1.msra.mxu0 %v1561
  %2498 = vmatprep.subr.mxu0 %v1558
  %2499 = vmatpush1.msra.mxu0 %v1557
  %2500 = vmatprep.subr.mxu0 %v1554
  %2501 = vmatpush1.msra.mxu0 %v1553
  %2502 = vmatprep.subr.mxu0 %v1550
  %2503 = vmatpush1.msra.mxu0 %v1549
  %2504 = vmatprep.subr.mxu0 %v1546
  %2505 = vmatpush1.msra.mxu0 %v1545
  %2506 = vmatprep.subr.mxu0 %v1542
  %2507 = vmatpush1.msra.mxu0 %v1541
  %2508 = vmatprep.subr.mxu0 %v1538
  %2509 = vmatpush1.msra.mxu0 %v1537
  %2510 = vmatprep.subr.mxu0 %v1534
  %2511 = vmatpush1.msra.mxu0 %v1533
  %2512 = vmatprep.subr.mxu0 %v1530
  %2513 = vmatpush1.msra.mxu0 %v1529
  %2514 = vmatprep.subr.mxu0 %v1526
  %2515 = vmatpush1.msra.mxu0 %v1525
  %2516 = vmatprep.subr.mxu0 %v1522
  %2517 = vmatpush1.msra.mxu0 %v1521
  %2518 = vmatprep.subr.mxu0 %v1518
  %2519 = vmatpush1.msra.mxu0 %v1517
  %2520 = vmatprep.subr.mxu0 %v1514
  %2521 = vmatpush1.msra.mxu0 %v1513
  %2522 = vmatprep.subr.mxu0 %v1510
  %2523 = vmatpush1.msra.mxu0 %v1509
  %2524 = vmatprep.subr.mxu0 0.0
  %2525 = vmatpush2.msra.mxu0 0.0
  %2526 = vmatprep.subr.mxu0 0.0
  %2527 = vmatpush2.msra.mxu0 0.0
  %2528 = vmatprep.subr.mxu0 0.0
  %2529 = vmatpush2.msra.mxu0 0.0
  %2530 = vmatprep.subr.mxu0 0.0
  %2531 = vmatpush2.msra.mxu0 0.0
  %2532 = vmatprep.subr.mxu0 0.0
  %2533 = vmatpush2.msra.mxu0 0.0
  %2534 = vmatprep.subr.mxu0 0.0
  %2535 = vmatpush2.msra.mxu0 0.0
  %2536 = vmatprep.subr.mxu0 0.0
  %2537 = vmatpush2.msra.mxu0 0.0
  %2538 = vmatprep.subr.mxu0 0.0
  %2539 = vmatpush2.msra.mxu0 0.0
  %2540 = vmatprep.subr.mxu0 0.0
  %2541 = vmatpush2.msra.mxu0 0.0
  %2542 = vmatprep.subr.mxu0 0.0
  %2543 = vmatpush2.msra.mxu0 0.0
  %2544 = vmatprep.subr.mxu0 0.0
  %2545 = vmatpush2.msra.mxu0 0.0
  %2546 = vmatprep.subr.mxu0 0.0
  %2547 = vmatpush2.msra.mxu0 0.0
  %2548 = vmatprep.subr.mxu0 0.0
  %2549 = vmatpush2.msra.mxu0 0.0
  %2550 = vmatprep.subr.mxu0 0.0
  %2551 = vmatpush2.msra.mxu0 0.0
  %2552 = vmatprep.subr.mxu0 0.0
  %2553 = vmatpush2.msra.mxu0 0.0
  %2554 = vmatprep.subr.mxu0 0.0
  %2555 = vmatpush2.msra.mxu0 0.0
  %2556 = vmatprep.mubr.f32.mxu0 0.0
  %2557 = vmatmul.mubr.f32.gmra.mxu0 %v2420
  %v2558 = vpop.f32.mrf.mxu0
  %v2559 = vadd.f32 0.0, %v2558
  %v2560 = vpop.f32.mrf.mxu0
  %v2561 = vadd.f32 0.0, %v2560
  %2562 = vdwg.mxu0
  %v2563 = vadd.f32 %v1495, %v2488
  %v2564 = vadd.f32 %v1496, %v2490
  %v2565 = vadd.f32 %v1497, %v2559
  %v2566 = vadd.f32 %v1498, %v2561
  %v2567 = vxor.u32 %v2563, 2147483648
  %v2568 = vxor.u32 %v2564, 2147483648
  %v2569 = vxor.u32 %v2565, 2147483648
  %v2570 = vmul.f32 %v2567, 1.442695
  %v2571 = vpow.pop %v2570
  %v2572 = vmul.f32 %v2568, 1.442695
  %v2573 = vpow.pop %v2572
  %v2574 = vmul.f32 %v2569, 1.442695
  %v2575 = vpow.pop %v2574
  %v2576 = vadd.f32 %v2571, 1.0
  %v2577 = vadd.f32 %v2573, 1.0
  %v2578 = vadd.f32 %v2575, 1.0
  %v2579 = vrcp.pop %v2576
  %v2580 = vmul.f32 1.0, %v2579
  %v2581 = vrcp.pop %v2577
  %v2582 = vmul.f32 1.0, %v2581
  %v2583 = vrcp.pop %v2578
  %v2584 = vmul.f32 1.0, %v2583
  %v2585 = vtanh.pop %v2566
  %v2586 = vmul.f32 %v2582, %v2418
  %v2587 = vmul.f32 %v2580, %v2585
  %v2588 = vadd.f32 %v2586, %v2587
  %v2589 = vtanh.pop %v2588
  %v2590 = vmul.f32 %v2584, %v2589
  %2591 = vmatprep.subr.mxu0 %v1568
  %2592 = vmatpush1.msra.mxu0 %v1567
  %2593 = vmatprep.subr.mxu0 %v1564
  %2594 = vmatpush1.msra.mxu0 %v1563
  %2595 = vmatprep.subr.mxu0 %v1560
  %2596 = vmatpush1.msra.mxu0 %v1559
  %2597 = vmatprep.subr.mxu0 %v1556
  %2598 = vmatpush1.msra.mxu0 %v1555
  %2599 = vmatprep.subr.mxu0 %v1552
  %2600 = vmatpush1.msra.mxu0 %v1551
  %2601 = vmatprep.subr.mxu0 %v1548
  %2602 = vmatpush1.msra.mxu0 %v1547
  %2603 = vmatprep.subr.mxu0 %v1544
  %2604 = vmatpush1.msra.mxu0 %v1543
  %2605 = vmatprep.subr.mxu0 %v1540
  %2606 = vmatpush1.msra.mxu0 %v1539
  %2607 = vmatprep.subr.mxu0 %v1536
  %2608 = vmatpush1.msra.mxu0 %v1535
  %2609 = vmatprep.subr.mxu0 %v1532
  %2610 = vmatpush1.msra.mxu0 %v1531
  %2611 = vmatprep.subr.mxu0 %v1528
  %2612 = vmatpush1.msra.mxu0 %v1527
  %2613 = vmatprep.subr.mxu0 %v1524
  %2614 = vmatpush1.msra.mxu0 %v1523
  %2615 = vmatprep.subr.mxu0 %v1520
  %2616 = vmatpush1.msra.mxu0 %v1519
  %2617 = vmatprep.subr.mxu0 %v1516
  %2618 = vmatpush1.msra.mxu0 %v1515
  %2619 = vmatprep.subr.mxu0 %v1512
  %2620 = vmatpush1.msra.mxu0 %v1511
  %2621 = vmatprep.subr.mxu0 %v1508
  %2622 = vmatpush1.msra.mxu0 %v1507
  %2623 = vmatprep.subr.mxu0 0.0
  %2624 = vmatpush2.msra.mxu0 0.0
  %2625 = vmatprep.subr.mxu0 0.0
  %2626 = vmatpush2.msra.mxu0 0.0
  %2627 = vmatprep.subr.mxu0 0.0
  %2628 = vmatpush2.msra.mxu0 0.0
  %2629 = vmatprep.subr.mxu0 0.0
  %2630 = vmatpush2.msra.mxu0 0.0
  %2631 = vmatprep.subr.mxu0 0.0
  %2632 = vmatpush2.msra.mxu0 0.0
  %2633 = vmatprep.subr.mxu0 0.0
  %2634 = vmatpush2.msra.mxu0 0.0
  %2635 = vmatprep.subr.mxu0 0.0
  %2636 = vmatpush2.msra.mxu0 0.0
  %2637 = vmatprep.subr.mxu0 0.0
  %2638 = vmatpush2.msra.mxu0 0.0
  %2639 = vmatprep.subr.mxu0 0.0
  %2640 = vmatpush2.msra.mxu0 0.0
  %2641 = vmatprep.subr.mxu0 0.0
  %2642 = vmatpush2.msra.mxu0 0.0
  %2643 = vmatprep.subr.mxu0 0.0
  %2644 = vmatpush2.msra.mxu0 0.0
  %2645 = vmatprep.subr.mxu0 0.0
  %2646 = vmatpush2.msra.mxu0 0.0
  %2647 = vmatprep.subr.mxu0 0.0
  %2648 = vmatpush2.msra.mxu0 0.0
  %2649 = vmatprep.subr.mxu0 0.0
  %2650 = vmatpush2.msra.mxu0 0.0
  %2651 = vmatprep.subr.mxu0 0.0
  %2652 = vmatpush2.msra.mxu0 0.0
  %2653 = vmatprep.subr.mxu0 0.0
  %2654 = vmatpush2.msra.mxu0 0.0
  %2655 = vmatprep.mubr.f32.mxu0 0.0
  %2656 = vmatmul.mubr.f32.gmra.mxu0 %v2590
  %v2657 = vpop.f32.mrf.mxu0
  %v2658 = vadd.f32 0.0, %v2657
  %v2659 = vpop.f32.mrf.mxu0
  %v2660 = vadd.f32 0.0, %v2659
  %2661 = vdwg.mxu0
  %2662 = vmatprep.subr.mxu0 %v1570
  %2663 = vmatpush1.msra.mxu0 %v1569
  %2664 = vmatprep.subr.mxu0 %v1566
  %2665 = vmatpush1.msra.mxu0 %v1565
  %2666 = vmatprep.subr.mxu0 %v1562
  %2667 = vmatpush1.msra.mxu0 %v1561
  %2668 = vmatprep.subr.mxu0 %v1558
  %2669 = vmatpush1.msra.mxu0 %v1557
  %2670 = vmatprep.subr.mxu0 %v1554
  %2671 = vmatpush1.msra.mxu0 %v1553
  %2672 = vmatprep.subr.mxu0 %v1550
  %2673 = vmatpush1.msra.mxu0 %v1549
  %2674 = vmatprep.subr.mxu0 %v1546
  %2675 = vmatpush1.msra.mxu0 %v1545
  %2676 = vmatprep.subr.mxu0 %v1542
  %2677 = vmatpush1.msra.mxu0 %v1541
  %2678 = vmatprep.subr.mxu0 %v1538
  %2679 = vmatpush1.msra.mxu0 %v1537
  %2680 = vmatprep.subr.mxu0 %v1534
  %2681 = vmatpush1.msra.mxu0 %v1533
  %2682 = vmatprep.subr.mxu0 %v1530
  %2683 = vmatpush1.msra.mxu0 %v1529
  %2684 = vmatprep.subr.mxu0 %v1526
  %2685 = vmatpush1.msra.mxu0 %v1525
  %2686 = vmatprep.subr.mxu0 %v1522
  %2687 = vmatpush1.msra.mxu0 %v1521
  %2688 = vmatprep.subr.mxu0 %v1518
  %2689 = vmatpush1.msra.mxu0 %v1517
  %2690 = vmatprep.subr.mxu0 %v1514
  %2691 = vmatpush1.msra.mxu0 %v1513
  %2692 = vmatprep.subr.mxu0 %v1510
  %2693 = vmatpush1.msra.mxu0 %v1509
  %2694 = vmatprep.subr.mxu0 0.0
  %2695 = vmatpush2.msra.mxu0 0.0
  %2696 = vmatprep.subr.mxu0 0.0
  %2697 = vmatpush2.msra.mxu0 0.0
  %2698 = vmatprep.subr.mxu0 0.0
  %2699 = vmatpush2.msra.mxu0 0.0
  %2700 = vmatprep.subr.mxu0 0.0
  %2701 = vmatpush2.msra.mxu0 0.0
  %2702 = vmatprep.subr.mxu0 0.0
  %2703 = vmatpush2.msra.mxu0 0.0
  %2704 = vmatprep.subr.mxu0 0.0
  %2705 = vmatpush2.msra.mxu0 0.0
  %2706 = vmatprep.subr.mxu0 0.0
  %2707 = vmatpush2.msra.mxu0 0.0
  %2708 = vmatprep.subr.mxu0 0.0
  %2709 = vmatpush2.msra.mxu0 0.0
  %2710 = vmatprep.subr.mxu0 0.0
  %2711 = vmatpush2.msra.mxu0 0.0
  %2712 = vmatprep.subr.mxu0 0.0
  %2713 = vmatpush2.msra.mxu0 0.0
  %2714 = vmatprep.subr.mxu0 0.0
  %2715 = vmatpush2.msra.mxu0 0.0
  %2716 = vmatprep.subr.mxu0 0.0
  %2717 = vmatpush2.msra.mxu0 0.0
  %2718 = vmatprep.subr.mxu0 0.0
  %2719 = vmatpush2.msra.mxu0 0.0
  %2720 = vmatprep.subr.mxu0 0.0
  %2721 = vmatpush2.msra.mxu0 0.0
  %2722 = vmatprep.subr.mxu0 0.0
  %2723 = vmatpush2.msra.mxu0 0.0
  %2724 = vmatprep.subr.mxu0 0.0
  %2725 = vmatpush2.msra.mxu0 0.0
  %2726 = vmatprep.mubr.f32.mxu0 0.0
  %2727 = vmatmul.mubr.f32.gmra.mxu0 %v2590
  %v2728 = vpop.f32.mrf.mxu0
  %v2729 = vadd.f32 0.0, %v2728
  %v2730 = vpop.f32.mrf.mxu0
  %v2731 = vadd.f32 0.0, %v2730
  %2732 = vdwg.mxu0
  %v2733 = vadd.f32 %v1499, %v2658
  %v2734 = vadd.f32 %v1500, %v2660
  %v2735 = vadd.f32 %v1501, %v2729
  %v2736 = vadd.f32 %v1502, %v2731
  %v2737 = vxor.u32 %v2733, 2147483648
  %v2738 = vxor.u32 %v2734, 2147483648
  %v2739 = vxor.u32 %v2735, 2147483648
  %v2740 = vmul.f32 %v2737, 1.442695
  %v2741 = vpow.pop %v2740
  %v2742 = vmul.f32 %v2738, 1.442695
  %v2743 = vpow.pop %v2742
  %v2744 = vmul.f32 %v2739, 1.442695
  %v2745 = vpow.pop %v2744
  %v2746 = vadd.f32 %v2741, 1.0
  %v2747 = vadd.f32 %v2743, 1.0
  %v2748 = vadd.f32 %v2745, 1.0
  %v2749 = vrcp.pop %v2746
  %v2750 = vmul.f32 1.0, %v2749
  %v2751 = vrcp.pop %v2747
  %v2752 = vmul.f32 1.0, %v2751
  %v2753 = vrcp.pop %v2748
  %v2754 = vmul.f32 1.0, %v2753
  %v2755 = vtanh.pop %v2736
  %v2756 = vmul.f32 %v2752, %v2588
  %v2757 = vmul.f32 %v2750, %v2755
  %v2758 = vadd.f32 %v2756, %v2757
  %v2759 = vtanh.pop %v2758
  %v2760 = vmul.f32 %v2754, %v2759
  %2761 = vmatprep.subr.mxu0 %v1568
  %2762 = vmatpush1.msra.mxu0 %v1567
  %2763 = vmatprep.subr.mxu0 %v1564
  %2764 = vmatpush1.msra.mxu0 %v1563
  %2765 = vmatprep.subr.mxu0 %v1560
  %2766 = vmatpush1.msra.mxu0 %v1559
  %2767 = vmatprep.subr.mxu0 %v1556
  %2768 = vmatpush1.msra.mxu0 %v1555
  %2769 = vmatprep.subr.mxu0 %v1552
  %2770 = vmatpush1.msra.mxu0 %v1551
  %2771 = vmatprep.subr.mxu0 %v1548
  %2772 = vmatpush1.msra.mxu0 %v1547
  %2773 = vmatprep.subr.mxu0 %v1544
  %2774 = vmatpush1.msra.mxu0 %v1543
  %2775 = vmatprep.subr.mxu0 %v1540
  %2776 = vmatpush1.msra.mxu0 %v1539
  %2777 = vmatprep.subr.mxu0 %v1536
  %2778 = vmatpush1.msra.mxu0 %v1535
  %2779 = vmatprep.subr.mxu0 %v1532
  %2780 = vmatpush1.msra.mxu0 %v1531
  %2781 = vmatprep.subr.mxu0 %v1528
  %2782 = vmatpush1.msra.mxu0 %v1527
  %2783 = vmatprep.subr.mxu0 %v1524
  %2784 = vmatpush1.msra.mxu0 %v1523
  %2785 = vmatprep.subr.mxu0 %v1520
  %2786 = vmatpush1.msra.mxu0 %v1519
  %2787 = vmatprep.subr.mxu0 %v1516
  %2788 = vmatpush1.msra.mxu0 %v1515
  %2789 = vmatprep.subr.mxu0 %v1512
  %2790 = vmatpush1.msra.mxu0 %v1511
  %2791 = vmatprep.subr.mxu0 %v1508
  %2792 = vmatpush1.msra.mxu0 %v1507
  %2793 = vmatprep.subr.mxu0 0.0
  %2794 = vmatpush2.msra.mxu0 0.0
  %2795 = vmatprep.subr.mxu0 0.0
  %2796 = vmatpush2.msra.mxu0 0.0
  %2797 = vmatprep.subr.mxu0 0.0
  %2798 = vmatpush2.msra.mxu0 0.0
  %2799 = vmatprep.subr.mxu0 0.0
  %2800 = vmatpush2.msra.mxu0 0.0
  %2801 = vmatprep.subr.mxu0 0.0
  %2802 = vmatpush2.msra.mxu0 0.0
  %2803 = vmatprep.subr.mxu0 0.0
  %2804 = vmatpush2.msra.mxu0 0.0
  %2805 = vmatprep.subr.mxu0 0.0
  %2806 = vmatpush2.msra.mxu0 0.0
  %2807 = vmatprep.subr.mxu0 0.0
  %2808 = vmatpush2.msra.mxu0 0.0
  %2809 = vmatprep.subr.mxu0 0.0
  %2810 = vmatpush2.msra.mxu0 0.0
  %2811 = vmatprep.subr.mxu0 0.0
  %2812 = vmatpush2.msra.mxu0 0.0
  %2813 = vmatprep.subr.mxu0 0.0
  %2814 = vmatpush2.msra.mxu0 0.0
  %2815 = vmatprep.subr.mxu0 0.0
  %2816 = vmatpush2.msra.mxu0 0.0
  %2817 = vmatprep.subr.mxu0 0.0
  %2818 = vmatpush2.msra.mxu0 0.0
  %2819 = vmatprep.subr.mxu0 0.0
  %2820 = vmatpush2.msra.mxu0 0.0
  %2821 = vmatprep.subr.mxu0 0.0
  %2822 = vmatpush2.msra.mxu0 0.0
  %2823 = vmatprep.subr.mxu0 0.0
  %2824 = vmatpush2.msra.mxu0 0.0
  %2825 = vmatprep.mubr.f32.mxu0 0.0
  %2826 = vmatmul.mubr.f32.gmra.mxu0 %v2760
  %v2827 = vpop.f32.mrf.mxu0
  %v2828 = vadd.f32 0.0, %v2827
  %v2829 = vpop.f32.mrf.mxu0
  %v2830 = vadd.f32 0.0, %v2829
  %2831 = vdwg.mxu0
  %2832 = vmatprep.subr.mxu0 %v1570
  %2833 = vmatpush1.msra.mxu0 %v1569
  %2834 = vmatprep.subr.mxu0 %v1566
  %2835 = vmatpush1.msra.mxu0 %v1565
  %2836 = vmatprep.subr.mxu0 %v1562
  %2837 = vmatpush1.msra.mxu0 %v1561
  %2838 = vmatprep.subr.mxu0 %v1558
  %2839 = vmatpush1.msra.mxu0 %v1557
  %2840 = vmatprep.subr.mxu0 %v1554
  %2841 = vmatpush1.msra.mxu0 %v1553
  %2842 = vmatprep.subr.mxu0 %v1550
  %2843 = vmatpush1.msra.mxu0 %v1549
  %2844 = vmatprep.subr.mxu0 %v1546
  %2845 = vmatpush1.msra.mxu0 %v1545
  %2846 = vmatprep.subr.mxu0 %v1542
  %2847 = vmatpush1.msra.mxu0 %v1541
  %2848 = vmatprep.subr.mxu0 %v1538
  %2849 = vmatpush1.msra.mxu0 %v1537
  %2850 = vmatprep.subr.mxu0 %v1534
  %2851 = vmatpush1.msra.mxu0 %v1533
  %2852 = vmatprep.subr.mxu0 %v1530
  %2853 = vmatpush1.msra.mxu0 %v1529
  %2854 = vmatprep.subr.mxu0 %v1526
  %2855 = vmatpush1.msra.mxu0 %v1525
  %2856 = vmatprep.subr.mxu0 %v1522
  %2857 = vmatpush1.msra.mxu0 %v1521
  %2858 = vmatprep.subr.mxu0 %v1518
  %2859 = vmatpush1.msra.mxu0 %v1517
  %2860 = vmatprep.subr.mxu0 %v1514
  %2861 = vmatpush1.msra.mxu0 %v1513
  %2862 = vmatprep.subr.mxu0 %v1510
  %2863 = vmatpush1.msra.mxu0 %v1509
  %2864 = vmatprep.subr.mxu0 0.0
  %2865 = vmatpush2.msra.mxu0 0.0
  %2866 = vmatprep.subr.mxu0 0.0
  %2867 = vmatpush2.msra.mxu0 0.0
  %2868 = vmatprep.subr.mxu0 0.0
  %2869 = vmatpush2.msra.mxu0 0.0
  %2870 = vmatprep.subr.mxu0 0.0
  %2871 = vmatpush2.msra.mxu0 0.0
  %2872 = vmatprep.subr.mxu0 0.0
  %2873 = vmatpush2.msra.mxu0 0.0
  %2874 = vmatprep.subr.mxu0 0.0
  %2875 = vmatpush2.msra.mxu0 0.0
  %2876 = vmatprep.subr.mxu0 0.0
  %2877 = vmatpush2.msra.mxu0 0.0
  %2878 = vmatprep.subr.mxu0 0.0
  %2879 = vmatpush2.msra.mxu0 0.0
  %2880 = vmatprep.subr.mxu0 0.0
  %2881 = vmatpush2.msra.mxu0 0.0
  %2882 = vmatprep.subr.mxu0 0.0
  %2883 = vmatpush2.msra.mxu0 0.0
  %2884 = vmatprep.subr.mxu0 0.0
  %2885 = vmatpush2.msra.mxu0 0.0
  %2886 = vmatprep.subr.mxu0 0.0
  %2887 = vmatpush2.msra.mxu0 0.0
  %2888 = vmatprep.subr.mxu0 0.0
  %2889 = vmatpush2.msra.mxu0 0.0
  %2890 = vmatprep.subr.mxu0 0.0
  %2891 = vmatpush2.msra.mxu0 0.0
  %2892 = vmatprep.subr.mxu0 0.0
  %2893 = vmatpush2.msra.mxu0 0.0
  %2894 = vmatprep.subr.mxu0 0.0
  %2895 = vmatpush2.msra.mxu0 0.0
  %2896 = vmatprep.mubr.f32.mxu0 0.0
  %2897 = vmatmul.mubr.f32.gmra.mxu0 %v2760
  %v2898 = vpop.f32.mrf.mxu0
  %v2899 = vadd.f32 0.0, %v2898
  %v2900 = vpop.f32.mrf.mxu0
  %v2901 = vadd.f32 0.0, %v2900
  %2902 = vdwg.mxu0
  %v2903 = vadd.f32 %v1503, %v2828
  %v2904 = vadd.f32 %v1504, %v2830
  %v2905 = vadd.f32 %v1505, %v2899
  %v2906 = vadd.f32 %v1506, %v2901
  %v2907 = vxor.u32 %v2903, 2147483648
  %v2908 = vxor.u32 %v2904, 2147483648
  %v2909 = vxor.u32 %v2905, 2147483648
  %v2910 = vmul.f32 %v2907, 1.442695
  %v2911 = vpow.pop %v2910
  %v2912 = vmul.f32 %v2908, 1.442695
  %v2913 = vpow.pop %v2912
  %v2914 = vmul.f32 %v2909, 1.442695
  %v2915 = vpow.pop %v2914
  %v2916 = vadd.f32 %v2911, 1.0
  %v2917 = vadd.f32 %v2913, 1.0
  %v2918 = vadd.f32 %v2915, 1.0
  %v2919 = vrcp.pop %v2916
  %v2920 = vmul.f32 1.0, %v2919
  %v2921 = vrcp.pop %v2917
  %v2922 = vmul.f32 1.0, %v2921
  %v2923 = vrcp.pop %v2918
  %v2924 = vmul.f32 1.0, %v2923
  %v2925 = vtanh.pop %v2906
  %v2926 = vmul.f32 %v2922, %v2758
  %v2927 = vmul.f32 %v2920, %v2925
  %v2928 = vadd.f32 %v2926, %v2927
  %v2929 = vtanh.pop %v2928
  %v2930 = vmul.f32 %v2924, %v2929
  %v2931 = vsel %vm1154, 1, 0
  %vm2932 = vcmp.eq.s32.totalorder %v2931, 1
  %v2933 = vsel %vm2932, %v1740, %v2930
  %v2934 = vsel %vm2932, %v1910, %v2760
  %v2935 = vsel %vm2932, %v2080, %v2590
  %v2936 = vsel %vm2932, %v2250, %v2420
  %v2937 = vsel %vm2932, %v2420, %v2250
  %v2938 = vsel %vm2932, %v2590, %v2080
  %v2939 = vsel %vm2932, %v2760, %v1910
  %v2940 = vsel %vm2932, %v2930, %v1740
  %v2941 = vld [vmem:[%s7] sm:$0xff]
  %v2942 = vld [vmem:[%s7 + $0x8] sm:$0xff]
  %v2943 = vld [vmem:[%s7 + $0x10] sm:$0xff]
  %v2944 = vld [vmem:[%s7 + $0x18] sm:$0xff]
  %v2945 = vld [vmem:[%s7 + $0x20] sm:$0xff]
  %v2946 = vld [vmem:[%s7 + $0x28] sm:$0xff]
  %v2947 = vld [vmem:[%s7 + $0x30] sm:$0xff]
  %v2948 = vld [vmem:[%s7 + $0x38] sm:$0xff]
  %v2949 = vld [vmem:[%s7 + $0x40] sm:$0xff]
  %v2950 = vld [vmem:[%s7 + $0x48] sm:$0xff]
  %v2951 = vld [vmem:[%s7 + $0x50] sm:$0xff]
  %v2952 = vld [vmem:[%s7 + $0x58] sm:$0xff]
  %v2953 = vld [vmem:[%s7 + $0x60] sm:$0xff]
  %v2954 = vld [vmem:[%s7 + $0x68] sm:$0xff]
  %v2955 = vld [vmem:[%s7 + $0x70] sm:$0xff]
  %v2956 = vld [vmem:[%s7 + $0x78] sm:$0xff]
  %v2957 = vld [vmem:[%s7 + $0x80] sm:$0xff]
  %v2958 = vld [vmem:[%s7 + $0x88] sm:$0xff]
  %v2959 = vld [vmem:[%s7 + $0x90] sm:$0xff]
  %v2960 = vld [vmem:[%s7 + $0x98] sm:$0xff]
  %v2961 = vld [vmem:[%s7 + $0xa0] sm:$0xff]
  %v2962 = vld [vmem:[%s7 + $0xa8] sm:$0xff]
  %v2963 = vld [vmem:[%s7 + $0xb0] sm:$0xff]
  %v2964 = vld [vmem:[%s7 + $0xb8] sm:$0xff]
  %v2965 = vld [vmem:[%s7 + $0xc0] sm:$0xff]
  %v2966 = vld [vmem:[%s7 + $0xc8] sm:$0xff]
  %v2967 = vld [vmem:[%s7 + $0xd0] sm:$0xff]
  %v2968 = vld [vmem:[%s7 + $0xd8] sm:$0xff]
  %v2969 = vld [vmem:[%s7 + $0xe0] sm:$0xff]
  %v2970 = vld [vmem:[%s7 + $0xe8] sm:$0xff]
  %v2971 = vld [vmem:[%s7 + $0xf0] sm:$0xff]
  %v2972 = vld [vmem:[%s7 + $0xf8] sm:$0xff]
  %v2973 = vld [vmem:[%s7 + $0x100] sm:$0xff]
  %v2974 = vld [vmem:[%s7 + $0x108] sm:$0xff]
  %v2975 = vld [vmem:[%s7 + $0x110] sm:$0xff]
  %v2976 = vld [vmem:[%s7 + $0x118] sm:$0xff]
  %v2977 = vld [vmem:[%s7 + $0x120] sm:$0xff]
  %v2978 = vld [vmem:[%s7 + $0x128] sm:$0xff]
  %v2979 = vld [vmem:[%s7 + $0x130] sm:$0xff]
  %v2980 = vld [vmem:[%s7 + $0x138] sm:$0xff]
  %v2981 = vld [vmem:[%s7 + $0x140] sm:$0xff]
  %v2982 = vld [vmem:[%s7 + $0x148] sm:$0xff]
  %v2983 = vld [vmem:[%s7 + $0x150] sm:$0xff]
  %v2984 = vld [vmem:[%s7 + $0x158] sm:$0xff]
  %v2985 = vld [vmem:[%s7 + $0x160] sm:$0xff]
  %v2986 = vld [vmem:[%s7 + $0x168] sm:$0xff]
  %v2987 = vld [vmem:[%s7 + $0x170] sm:$0xff]
  %v2988 = vld [vmem:[%s7 + $0x178] sm:$0xff]
  %v2989 = vld [vmem:[%s7 + $0x180] sm:$0xff]
  %v2990 = vld [vmem:[%s7 + $0x188] sm:$0xff]
  %v2991 = vld [vmem:[%s7 + $0x190] sm:$0xff]
  %v2992 = vld [vmem:[%s7 + $0x198] sm:$0xff]
  %v2993 = vld [vmem:[%s7 + $0x1a0] sm:$0xff]
  %v2994 = vld [vmem:[%s7 + $0x1a8] sm:$0xff]
  %v2995 = vld [vmem:[%s7 + $0x1b0] sm:$0xff]
  %v2996 = vld [vmem:[%s7 + $0x1b8] sm:$0xff]
  %v2997 = vld [vmem:[%s7 + $0x1c0] sm:$0xff]
  %v2998 = vld [vmem:[%s7 + $0x1c8] sm:$0xff]
  %v2999 = vld [vmem:[%s7 + $0x1d0] sm:$0xff]
  %v3000 = vld [vmem:[%s7 + $0x1d8] sm:$0xff]
  %v3001 = vld [vmem:[%s7 + $0x1e0] sm:$0xff]
  %v3002 = vld [vmem:[%s7 + $0x1e8] sm:$0xff]
  %v3003 = vld [vmem:[%s7 + $0x1f0] sm:$0xff]
  %v3004 = vld [vmem:[%s7 + $0x1f8] sm:$0xff]
  %v3005 = vld [vmem:[%s9] sm:$0xf]
  %v3007 = vlaneseq
  %v3008 = vshrl.u32 %v3007, 7
  %v3009 = vsub.s32 0, %v3008
  %v3010 = vrot.slane %v3005, %v3009
  %v3011 = vlaneseq
  %v3012 = vshrl.u32 %v3011, 7
  %v3013 = vsub.s32 1, %v3012
  %v3014 = vrot.slane %v3005, %v3013
  %v3015 = vlaneseq
  %v3016 = vshrl.u32 %v3015, 7
  %v3017 = vsub.s32 2, %v3016
  %v3018 = vrot.slane %v3005, %v3017
  %v3019 = vlaneseq
  %v3020 = vshrl.u32 %v3019, 7
  %v3021 = vsub.s32 3, %v3020
  %v3022 = vrot.slane %v3005, %v3021
  %3027 = vmatprep.subr.mxu0 %v3002
  %3028 = vmatpush1.msra.mxu0 %v3001
  %3029 = vmatprep.subr.mxu0 %v2998
  %3030 = vmatpush1.msra.mxu0 %v2997
  %3031 = vmatprep.subr.mxu0 %v2994
  %3032 = vmatpush1.msra.mxu0 %v2993
  %3033 = vmatprep.subr.mxu0 %v2990
  %3034 = vmatpush1.msra.mxu0 %v2989
  %3035 = vmatprep.subr.mxu0 %v2986
  %3036 = vmatpush1.msra.mxu0 %v2985
  %3037 = vmatprep.subr.mxu0 %v2982
  %3038 = vmatpush1.msra.mxu0 %v2981
  %3039 = vmatprep.subr.mxu0 %v2978
  %3040 = vmatpush1.msra.mxu0 %v2977
  %3041 = vmatprep.subr.mxu0 %v2974
  %3042 = vmatpush1.msra.mxu0 %v2973
  %3043 = vmatprep.subr.mxu0 %v2970
  %3044 = vmatpush1.msra.mxu0 %v2969
  %3045 = vmatprep.subr.mxu0 %v2966
  %3046 = vmatpush1.msra.mxu0 %v2965
  %3047 = vmatprep.subr.mxu0 %v2962
  %3048 = vmatpush1.msra.mxu0 %v2961
  %3049 = vmatprep.subr.mxu0 %v2958
  %3050 = vmatpush1.msra.mxu0 %v2957
  %3051 = vmatprep.subr.mxu0 %v2954
  %3052 = vmatpush1.msra.mxu0 %v2953
  %3053 = vmatprep.subr.mxu0 %v2950
  %3054 = vmatpush1.msra.mxu0 %v2949
  %3055 = vmatprep.subr.mxu0 %v2946
  %3056 = vmatpush1.msra.mxu0 %v2945
  %3057 = vmatprep.subr.mxu0 %v2942
  %3058 = vmatpush1.msra.mxu0 %v2941
  %3059 = vmatprep.subr.mxu0 0.0
  %3060 = vmatpush2.msra.mxu0 0.0
  %3061 = vmatprep.subr.mxu0 0.0
  %3062 = vmatpush2.msra.mxu0 0.0
  %3063 = vmatprep.subr.mxu0 0.0
  %3064 = vmatpush2.msra.mxu0 0.0
  %3065 = vmatprep.subr.mxu0 0.0
  %3066 = vmatpush2.msra.mxu0 0.0
  %3067 = vmatprep.subr.mxu0 0.0
  %3068 = vmatpush2.msra.mxu0 0.0
  %3069 = vmatprep.subr.mxu0 0.0
  %3070 = vmatpush2.msra.mxu0 0.0
  %3071 = vmatprep.subr.mxu0 0.0
  %3072 = vmatpush2.msra.mxu0 0.0
  %3073 = vmatprep.subr.mxu0 0.0
  %3074 = vmatpush2.msra.mxu0 0.0
  %3075 = vmatprep.subr.mxu0 0.0
  %3076 = vmatpush2.msra.mxu0 0.0
  %3077 = vmatprep.subr.mxu0 0.0
  %3078 = vmatpush2.msra.mxu0 0.0
  %3079 = vmatprep.subr.mxu0 0.0
  %3080 = vmatpush2.msra.mxu0 0.0
  %3081 = vmatprep.subr.mxu0 0.0
  %3082 = vmatpush2.msra.mxu0 0.0
  %3083 = vmatprep.subr.mxu0 0.0
  %3084 = vmatpush2.msra.mxu0 0.0
  %3085 = vmatprep.subr.mxu0 0.0
  %3086 = vmatpush2.msra.mxu0 0.0
  %3087 = vmatprep.subr.mxu0 0.0
  %3088 = vmatpush2.msra.mxu0 0.0
  %3089 = vmatprep.subr.mxu0 0.0
  %3090 = vmatpush2.msra.mxu0 0.0
  %3091 = vmatprep.mubr.f32.mxu0 0.0
  %3092 = vmatmul.mubr.f32.gmra.mxu0 %v2933
  %v3093 = vpop.f32.mrf.mxu0
  %v3094 = vadd.f32 %v3010, %v3093
  %v3095 = vpop.f32.mrf.mxu0
  %v3096 = vadd.f32 %v3014, %v3095
  %3097 = vmatprep.mubr.f32.mxu0 0.0
  %3098 = vmatmul.mubr.f32.gmra.mxu0 %v2934
  %v3099 = vpop.f32.mrf.mxu0
  %v3100 = vadd.f32 %v3010, %v3099
  %v3101 = vpop.f32.mrf.mxu0
  %v3102 = vadd.f32 %v3014, %v3101
  %3103 = vmatprep.mubr.f32.mxu0 0.0
  %3104 = vmatmul.mubr.f32.gmra.mxu0 %v2935
  %v3105 = vpop.f32.mrf.mxu0
  %v3106 = vadd.f32 %v3010, %v3105
  %v3107 = vpop.f32.mrf.mxu0
  %v3108 = vadd.f32 %v3014, %v3107
  %3109 = vmatprep.mubr.f32.mxu0 0.0
  %3110 = vmatmul.mubr.f32.gmra.mxu0 %v2936
  %v3111 = vpop.f32.mrf.mxu0
  %v3112 = vadd.f32 %v3010, %v3111
  %v3113 = vpop.f32.mrf.mxu0
  %v3114 = vadd.f32 %v3014, %v3113
  %3115 = vmatprep.mubr.f32.mxu0 0.0
  %3116 = vmatmul.mubr.f32.gmra.mxu0 %v2937
  %v3117 = vpop.f32.mrf.mxu0
  %v3118 = vadd.f32 %v3010, %v3117
  %v3119 = vpop.f32.mrf.mxu0
  %v3120 = vadd.f32 %v3014, %v3119
  %3121 = vmatprep.mubr.f32.mxu0 0.0
  %3122 = vmatmul.mubr.f32.gmra.mxu0 %v2938
  %v3123 = vpop.f32.mrf.mxu0
  %v3124 = vadd.f32 %v3010, %v3123
  %v3125 = vpop.f32.mrf.mxu0
  %v3126 = vadd.f32 %v3014, %v3125
  %3127 = vmatprep.mubr.f32.mxu0 0.0
  %3128 = vmatmul.mubr.f32.gmra.mxu0 %v2939
  %v3129 = vpop.f32.mrf.mxu0
  %v3130 = vadd.f32 %v3010, %v3129
  %v3131 = vpop.f32.mrf.mxu0
  %v3132 = vadd.f32 %v3014, %v3131
  %3133 = vmatprep.mubr.f32.mxu0 0.0
  %3134 = vmatmul.mubr.f32.gmra.mxu0 %v2940
  %v3135 = vpop.f32.mrf.mxu0
  %v3136 = vadd.f32 %v3010, %v3135
  %v3137 = vpop.f32.mrf.mxu0
  %v3138 = vadd.f32 %v3014, %v3137
  %3139 = vdwg.mxu0
  %3140 = vmatprep.subr.mxu0 %v3004
  %3141 = vmatpush1.msra.mxu0 %v3003
  %3142 = vmatprep.subr.mxu0 %v3000
  %3143 = vmatpush1.msra.mxu0 %v2999
  %3144 = vmatprep.subr.mxu0 %v2996
  %3145 = vmatpush1.msra.mxu0 %v2995
  %3146 = vmatprep.subr.mxu0 %v2992
  %3147 = vmatpush1.msra.mxu0 %v2991
  %3148 = vmatprep.subr.mxu0 %v2988
  %3149 = vmatpush1.msra.mxu0 %v2987
  %3150 = vmatprep.subr.mxu0 %v2984
  %3151 = vmatpush1.msra.mxu0 %v2983
  %3152 = vmatprep.subr.mxu0 %v2980
  %3153 = vmatpush1.msra.mxu0 %v2979
  %3154 = vmatprep.subr.mxu0 %v2976
  %3155 = vmatpush1.msra.mxu0 %v2975
  %3156 = vmatprep.subr.mxu0 %v2972
  %3157 = vmatpush1.msra.mxu0 %v2971
  %3158 = vmatprep.subr.mxu0 %v2968
  %3159 = vmatpush1.msra.mxu0 %v2967
  %3160 = vmatprep.subr.mxu0 %v2964
  %3161 = vmatpush1.msra.mxu0 %v2963
  %3162 = vmatprep.subr.mxu0 %v2960
  %3163 = vmatpush1.msra.mxu0 %v2959
  %3164 = vmatprep.subr.mxu0 %v2956
  %3165 = vmatpush1.msra.mxu0 %v2955
  %3166 = vmatprep.subr.mxu0 %v2952
  %3167 = vmatpush1.msra.mxu0 %v2951
  %3168 = vmatprep.subr.mxu0 %v2948
  %3169 = vmatpush1.msra.mxu0 %v2947
  %3170 = vmatprep.subr.mxu0 %v2944
  %3171 = vmatpush1.msra.mxu0 %v2943
  %3172 = vmatprep.subr.mxu0 0.0
  %3173 = vmatpush2.msra.mxu0 0.0
  %3174 = vmatprep.subr.mxu0 0.0
  %3175 = vmatpush2.msra.mxu0 0.0
  %3176 = vmatprep.subr.mxu0 0.0
  %3177 = vmatpush2.msra.mxu0 0.0
  %3178 = vmatprep.subr.mxu0 0.0
  %3179 = vmatpush2.msra.mxu0 0.0
  %3180 = vmatprep.subr.mxu0 0.0
  %3181 = vmatpush2.msra.mxu0 0.0
  %3182 = vmatprep.subr.mxu0 0.0
  %3183 = vmatpush2.msra.mxu0 0.0
  %3184 = vmatprep.subr.mxu0 0.0
  %3185 = vmatpush2.msra.mxu0 0.0
  %3186 = vmatprep.subr.mxu0 0.0
  %3187 = vmatpush2.msra.mxu0 0.0
  %3188 = vmatprep.subr.mxu0 0.0
  %3189 = vmatpush2.msra.mxu0 0.0
  %3190 = vmatprep.subr.mxu0 0.0
  %3191 = vmatpush2.msra.mxu0 0.0
  %3192 = vmatprep.subr.mxu0 0.0
  %3193 = vmatpush2.msra.mxu0 0.0
  %3194 = vmatprep.subr.mxu0 0.0
  %3195 = vmatpush2.msra.mxu0 0.0
  %3196 = vmatprep.subr.mxu0 0.0
  %3197 = vmatpush2.msra.mxu0 0.0
  %3198 = vmatprep.subr.mxu0 0.0
  %3199 = vmatpush2.msra.mxu0 0.0
  %3200 = vmatprep.subr.mxu0 0.0
  %3201 = vmatpush2.msra.mxu0 0.0
  %3202 = vmatprep.subr.mxu0 0.0
  %3203 = vmatpush2.msra.mxu0 0.0
  %3204 = vmatprep.mubr.f32.mxu0 0.0
  %3205 = vmatmul.mubr.f32.gmra.mxu0 %v2933
  %v3206 = vpop.f32.mrf.mxu0
  %v3207 = vadd.f32 %v3018, %v3206
  %v3208 = vpop.f32.mrf.mxu0
  %v3209 = vadd.f32 %v3022, %v3208
  %3210 = vmatprep.mubr.f32.mxu0 0.0
  %3211 = vmatmul.mubr.f32.gmra.mxu0 %v2934
  %v3212 = vpop.f32.mrf.mxu0
  %v3213 = vadd.f32 %v3018, %v3212
  %v3214 = vpop.f32.mrf.mxu0
  %v3215 = vadd.f32 %v3022, %v3214
  %3216 = vmatprep.mubr.f32.mxu0 0.0
  %3217 = vmatmul.mubr.f32.gmra.mxu0 %v2935
  %v3218 = vpop.f32.mrf.mxu0
  %v3219 = vadd.f32 %v3018, %v3218
  %v3220 = vpop.f32.mrf.mxu0
  %v3221 = vadd.f32 %v3022, %v3220
  %3222 = vmatprep.mubr.f32.mxu0 0.0
  %3223 = vmatmul.mubr.f32.gmra.mxu0 %v2936
  %v3224 = vpop.f32.mrf.mxu0
  %v3225 = vadd.f32 %v3018, %v3224
  %v3226 = vpop.f32.mrf.mxu0
  %v3227 = vadd.f32 %v3022, %v3226
  %3228 = vmatprep.mubr.f32.mxu0 0.0
  %3229 = vmatmul.mubr.f32.gmra.mxu0 %v2937
  %v3230 = vpop.f32.mrf.mxu0
  %v3231 = vadd.f32 %v3018, %v3230
  %v3232 = vpop.f32.mrf.mxu0
  %v3233 = vadd.f32 %v3022, %v3232
  %3234 = vmatprep.mubr.f32.mxu0 0.0
  %3235 = vmatmul.mubr.f32.gmra.mxu0 %v2938
  %v3236 = vpop.f32.mrf.mxu0
  %v3237 = vadd.f32 %v3018, %v3236
  %v3238 = vpop.f32.mrf.mxu0
  %v3239 = vadd.f32 %v3022, %v3238
  %3240 = vmatprep.mubr.f32.mxu0 0.0
  %3241 = vmatmul.mubr.f32.gmra.mxu0 %v2939
  %v3242 = vpop.f32.mrf.mxu0
  %v3243 = vadd.f32 %v3018, %v3242
  %v3244 = vpop.f32.mrf.mxu0
  %v3245 = vadd.f32 %v3022, %v3244
  %3246 = vmatprep.mubr.f32.mxu0 0.0
  %3247 = vmatmul.mubr.f32.gmra.mxu0 %v2940
  %v3248 = vpop.f32.mrf.mxu0
  %v3249 = vadd.f32 %v3018, %v3248
  %v3250 = vpop.f32.mrf.mxu0
  %v3251 = vadd.f32 %v3022, %v3250
  %3252 = vdwg.mxu0
  %v3253 = vsel %vm1471, %v3094, %v3136
  %v3254 = vsel %vm1472, %v3096, %v3138
  %v3255 = vsel %vm1473, %v3207, %v3249
  %v3256 = vsel %vm1474, %v3209, %v3251
  %v3257 = vsel %vm1471, %v3100, %v3130
  %v3258 = vsel %vm1472, %v3102, %v3132
  %v3259 = vsel %vm1473, %v3213, %v3243
  %v3260 = vsel %vm1474, %v3215, %v3245
  %v3261 = vsel %vm1471, %v3106, %v3124
  %v3262 = vsel %vm1472, %v3108, %v3126
  %v3263 = vsel %vm1473, %v3219, %v3237
  %v3264 = vsel %vm1474, %v3221, %v3239
  %v3265 = vsel %vm1471, %v3112, %v3118
  %v3266 = vsel %vm1472, %v3114, %v3120
  %v3267 = vsel %vm1473, %v3225, %v3231
  %v3268 = vsel %vm1474, %v3227, %v3233
  %v3269 = vsel %vm1471, %v3118, %v3112
  %v3270 = vsel %vm1472, %v3120, %v3114
  %v3271 = vsel %vm1473, %v3231, %v3225
  %v3272 = vsel %vm1474, %v3233, %v3227
  %v3273 = vsel %vm1471, %v3124, %v3106
  %v3274 = vsel %vm1472, %v3126, %v3108
  %v3275 = vsel %vm1473, %v3237, %v3219
  %v3276 = vsel %vm1474, %v3239, %v3221
  %v3277 = vsel %vm1471, %v3130, %v3100
  %v3278 = vsel %vm1472, %v3132, %v3102
  %v3279 = vsel %vm1473, %v3243, %v3213
  %v3280 = vsel %vm1474, %v3245, %v3215
  %v3281 = vsel %vm1471, %v3136, %v3094
  %v3282 = vsel %vm1472, %v3138, %v3096
  %v3283 = vsel %vm1473, %v3249, %v3207
  %v3284 = vsel %vm1474, %v3251, %v3209
  %v3285 = vld [vmem:[%s8] sm:$0xff]
  %v3286 = vld [vmem:[%s8 + $0x8] sm:$0xff]
  %v3287 = vld [vmem:[%s8 + $0x10] sm:$0xff]
  %v3288 = vld [vmem:[%s8 + $0x18] sm:$0xff]
  %v3289 = vld [vmem:[%s8 + $0x20] sm:$0xff]
  %v3290 = vld [vmem:[%s8 + $0x28] sm:$0xff]
  %v3291 = vld [vmem:[%s8 + $0x30] sm:$0xff]
  %v3292 = vld [vmem:[%s8 + $0x38] sm:$0xff]
  %v3293 = vld [vmem:[%s8 + $0x40] sm:$0xff]
  %v3294 = vld [vmem:[%s8 + $0x48] sm:$0xff]
  %v3295 = vld [vmem:[%s8 + $0x50] sm:$0xff]
  %v3296 = vld [vmem:[%s8 + $0x58] sm:$0xff]
  %v3297 = vld [vmem:[%s8 + $0x60] sm:$0xff]
  %v3298 = vld [vmem:[%s8 + $0x68] sm:$0xff]
  %v3299 = vld [vmem:[%s8 + $0x70] sm:$0xff]
  %v3300 = vld [vmem:[%s8 + $0x78] sm:$0xff]
  %v3301 = vld [vmem:[%s8 + $0x80] sm:$0xff]
  %v3302 = vld [vmem:[%s8 + $0x88] sm:$0xff]
  %v3303 = vld [vmem:[%s8 + $0x90] sm:$0xff]
  %v3304 = vld [vmem:[%s8 + $0x98] sm:$0xff]
  %v3305 = vld [vmem:[%s8 + $0xa0] sm:$0xff]
  %v3306 = vld [vmem:[%s8 + $0xa8] sm:$0xff]
  %v3307 = vld [vmem:[%s8 + $0xb0] sm:$0xff]
  %v3308 = vld [vmem:[%s8 + $0xb8] sm:$0xff]
  %v3309 = vld [vmem:[%s8 + $0xc0] sm:$0xff]
  %v3310 = vld [vmem:[%s8 + $0xc8] sm:$0xff]
  %v3311 = vld [vmem:[%s8 + $0xd0] sm:$0xff]
  %v3312 = vld [vmem:[%s8 + $0xd8] sm:$0xff]
  %v3313 = vld [vmem:[%s8 + $0xe0] sm:$0xff]
  %v3314 = vld [vmem:[%s8 + $0xe8] sm:$0xff]
  %v3315 = vld [vmem:[%s8 + $0xf0] sm:$0xff]
  %v3316 = vld [vmem:[%s8 + $0xf8] sm:$0xff]
  %v3317 = vld [vmem:[%s8 + $0x100] sm:$0xff]
  %v3318 = vld [vmem:[%s8 + $0x108] sm:$0xff]
  %v3319 = vld [vmem:[%s8 + $0x110] sm:$0xff]
  %v3320 = vld [vmem:[%s8 + $0x118] sm:$0xff]
  %v3321 = vld [vmem:[%s8 + $0x120] sm:$0xff]
  %v3322 = vld [vmem:[%s8 + $0x128] sm:$0xff]
  %v3323 = vld [vmem:[%s8 + $0x130] sm:$0xff]
  %v3324 = vld [vmem:[%s8 + $0x138] sm:$0xff]
  %v3325 = vld [vmem:[%s8 + $0x140] sm:$0xff]
  %v3326 = vld [vmem:[%s8 + $0x148] sm:$0xff]
  %v3327 = vld [vmem:[%s8 + $0x150] sm:$0xff]
  %v3328 = vld [vmem:[%s8 + $0x158] sm:$0xff]
  %v3329 = vld [vmem:[%s8 + $0x160] sm:$0xff]
  %v3330 = vld [vmem:[%s8 + $0x168] sm:$0xff]
  %v3331 = vld [vmem:[%s8 + $0x170] sm:$0xff]
  %v3332 = vld [vmem:[%s8 + $0x178] sm:$0xff]
  %v3333 = vld [vmem:[%s8 + $0x180] sm:$0xff]
  %v3334 = vld [vmem:[%s8 + $0x188] sm:$0xff]
  %v3335 = vld [vmem:[%s8 + $0x190] sm:$0xff]
  %v3336 = vld [vmem:[%s8 + $0x198] sm:$0xff]
  %v3337 = vld [vmem:[%s8 + $0x1a0] sm:$0xff]
  %v3338 = vld [vmem:[%s8 + $0x1a8] sm:$0xff]
  %v3339 = vld [vmem:[%s8 + $0x1b0] sm:$0xff]
  %v3340 = vld [vmem:[%s8 + $0x1b8] sm:$0xff]
  %v3341 = vld [vmem:[%s8 + $0x1c0] sm:$0xff]
  %v3342 = vld [vmem:[%s8 + $0x1c8] sm:$0xff]
  %v3343 = vld [vmem:[%s8 + $0x1d0] sm:$0xff]
  %v3344 = vld [vmem:[%s8 + $0x1d8] sm:$0xff]
  %v3345 = vld [vmem:[%s8 + $0x1e0] sm:$0xff]
  %v3346 = vld [vmem:[%s8 + $0x1e8] sm:$0xff]
  %v3347 = vld [vmem:[%s8 + $0x1f0] sm:$0xff]
  %v3348 = vld [vmem:[%s8 + $0x1f8] sm:$0xff]
  %3349 = vmatprep.subr.mxu0 %v3346
  %3350 = vmatpush1.msra.mxu0 %v3345
  %3351 = vmatprep.subr.mxu0 %v3342
  %3352 = vmatpush1.msra.mxu0 %v3341
  %3353 = vmatprep.subr.mxu0 %v3338
  %3354 = vmatpush1.msra.mxu0 %v3337
  %3355 = vmatprep.subr.mxu0 %v3334
  %3356 = vmatpush1.msra.mxu0 %v3333
  %3357 = vmatprep.subr.mxu0 %v3330
  %3358 = vmatpush1.msra.mxu0 %v3329
  %3359 = vmatprep.subr.mxu0 %v3326
  %3360 = vmatpush1.msra.mxu0 %v3325
  %3361 = vmatprep.subr.mxu0 %v3322
  %3362 = vmatpush1.msra.mxu0 %v3321
  %3363 = vmatprep.subr.mxu0 %v3318
  %3364 = vmatpush1.msra.mxu0 %v3317
  %3365 = vmatprep.subr.mxu0 %v3314
  %3366 = vmatpush1.msra.mxu0 %v3313
  %3367 = vmatprep.subr.mxu0 %v3310
  %3368 = vmatpush1.msra.mxu0 %v3309
  %3369 = vmatprep.subr.mxu0 %v3306
  %3370 = vmatpush1.msra.mxu0 %v3305
  %3371 = vmatprep.subr.mxu0 %v3302
  %3372 = vmatpush1.msra.mxu0 %v3301
  %3373 = vmatprep.subr.mxu0 %v3298
  %3374 = vmatpush1.msra.mxu0 %v3297
  %3375 = vmatprep.subr.mxu0 %v3294
  %3376 = vmatpush1.msra.mxu0 %v3293
  %3377 = vmatprep.subr.mxu0 %v3290
  %3378 = vmatpush1.msra.mxu0 %v3289
  %3379 = vmatprep.subr.mxu0 %v3286
  %3380 = vmatpush1.msra.mxu0 %v3285
  %3381 = vmatprep.subr.mxu0 0.0
  %3382 = vmatpush2.msra.mxu0 0.0
  %3383 = vmatprep.subr.mxu0 0.0
  %3384 = vmatpush2.msra.mxu0 0.0
  %3385 = vmatprep.subr.mxu0 0.0
  %3386 = vmatpush2.msra.mxu0 0.0
  %3387 = vmatprep.subr.mxu0 0.0
  %3388 = vmatpush2.msra.mxu0 0.0
  %3389 = vmatprep.subr.mxu0 0.0
  %3390 = vmatpush2.msra.mxu0 0.0
  %3391 = vmatprep.subr.mxu0 0.0
  %3392 = vmatpush2.msra.mxu0 0.0
  %3393 = vmatprep.subr.mxu0 0.0
  %3394 = vmatpush2.msra.mxu0 0.0
  %3395 = vmatprep.subr.mxu0 0.0
  %3396 = vmatpush2.msra.mxu0 0.0
  %3397 = vmatprep.subr.mxu0 0.0
  %3398 = vmatpush2.msra.mxu0 0.0
  %3399 = vmatprep.subr.mxu0 0.0
  %3400 = vmatpush2.msra.mxu0 0.0
  %3401 = vmatprep.subr.mxu0 0.0
  %3402 = vmatpush2.msra.mxu0 0.0
  %3403 = vmatprep.subr.mxu0 0.0
  %3404 = vmatpush2.msra.mxu0 0.0
  %3405 = vmatprep.subr.mxu0 0.0
  %3406 = vmatpush2.msra.mxu0 0.0
  %3407 = vmatprep.subr.mxu0 0.0
  %3408 = vmatpush2.msra.mxu0 0.0
  %3409 = vmatprep.subr.mxu0 0.0
  %3410 = vmatpush2.msra.mxu0 0.0
  %3411 = vmatprep.subr.mxu0 0.0
  %3412 = vmatpush2.msra.mxu0 0.0
  %3413 = vmatprep.mubr.f32.mxu0 0.0
  %3414 = vmatmul.mubr.f32.gmra.mxu0 0.0
  %v3415 = vpop.f32.mrf.mxu0
  %v3416 = vadd.f32 0.0, %v3415
  %v3417 = vpop.f32.mrf.mxu0
  %v3418 = vadd.f32 0.0, %v3417
  %3419 = vdwg.mxu0
  %3420 = vmatprep.subr.mxu0 %v3348
  %3421 = vmatpush1.msra.mxu0 %v3347
  %3422 = vmatprep.subr.mxu0 %v3344
  %3423 = vmatpush1.msra.mxu0 %v3343
  %3424 = vmatprep.subr.mxu0 %v3340
  %3425 = vmatpush1.msra.mxu0 %v3339
  %3426 = vmatprep.subr.mxu0 %v3336
  %3427 = vmatpush1.msra.mxu0 %v3335
  %3428 = vmatprep.subr.mxu0 %v3332
  %3429 = vmatpush1.msra.mxu0 %v3331
  %3430 = vmatprep.subr.mxu0 %v3328
  %3431 = vmatpush1.msra.mxu0 %v3327
  %3432 = vmatprep.subr.mxu0 %v3324
  %3433 = vmatpush1.msra.mxu0 %v3323
  %3434 = vmatprep.subr.mxu0 %v3320
  %3435 = vmatpush1.msra.mxu0 %v3319
  %3436 = vmatprep.subr.mxu0 %v3316
  %3437 = vmatpush1.msra.mxu0 %v3315
  %3438 = vmatprep.subr.mxu0 %v3312
  %3439 = vmatpush1.msra.mxu0 %v3311
  %3440 = vmatprep.subr.mxu0 %v3308
  %3441 = vmatpush1.msra.mxu0 %v3307
  %3442 = vmatprep.subr.mxu0 %v3304
  %3443 = vmatpush1.msra.mxu0 %v3303
  %3444 = vmatprep.subr.mxu0 %v3300
  %3445 = vmatpush1.msra.mxu0 %v3299
  %3446 = vmatprep.subr.mxu0 %v3296
  %3447 = vmatpush1.msra.mxu0 %v3295
  %3448 = vmatprep.subr.mxu0 %v3292
  %3449 = vmatpush1.msra.mxu0 %v3291
  %3450 = vmatprep.subr.mxu0 %v3288
  %3451 = vmatpush1.msra.mxu0 %v3287
  %3452 = vmatprep.subr.mxu0 0.0
  %3453 = vmatpush2.msra.mxu0 0.0
  %3454 = vmatprep.subr.mxu0 0.0
  %3455 = vmatpush2.msra.mxu0 0.0
  %3456 = vmatprep.subr.mxu0 0.0
  %3457 = vmatpush2.msra.mxu0 0.0
  %3458 = vmatprep.subr.mxu0 0.0
  %3459 = vmatpush2.msra.mxu0 0.0
  %3460 = vmatprep.subr.mxu0 0.0
  %3461 = vmatpush2.msra.mxu0 0.0
  %3462 = vmatprep.subr.mxu0 0.0
  %3463 = vmatpush2.msra.mxu0 0.0
  %3464 = vmatprep.subr.mxu0 0.0
  %3465 = vmatpush2.msra.mxu0 0.0
  %3466 = vmatprep.subr.mxu0 0.0
  %3467 = vmatpush2.msra.mxu0 0.0
  %3468 = vmatprep.subr.mxu0 0.0
  %3469 = vmatpush2.msra.mxu0 0.0
  %3470 = vmatprep.subr.mxu0 0.0
  %3471 = vmatpush2.msra.mxu0 0.0
  %3472 = vmatprep.subr.mxu0 0.0
  %3473 = vmatpush2.msra.mxu0 0.0
  %3474 = vmatprep.subr.mxu0 0.0
  %3475 = vmatpush2.msra.mxu0 0.0
  %3476 = vmatprep.subr.mxu0 0.0
  %3477 = vmatpush2.msra.mxu0 0.0
  %3478 = vmatprep.subr.mxu0 0.0
  %3479 = vmatpush2.msra.mxu0 0.0
  %3480 = vmatprep.subr.mxu0 0.0
  %3481 = vmatpush2.msra.mxu0 0.0
  %3482 = vmatprep.subr.mxu0 0.0
  %3483 = vmatpush2.msra.mxu0 0.0
  %3484 = vmatprep.mubr.f32.mxu0 0.0
  %3485 = vmatmul.mubr.f32.gmra.mxu0 0.0
  %v3486 = vpop.f32.mrf.mxu0
  %v3487 = vadd.f32 0.0, %v3486
  %v3488 = vpop.f32.mrf.mxu0
  %v3489 = vadd.f32 0.0, %v3488
  %3490 = vdwg.mxu0
  %v3491 = vadd.f32 %v3253, %v3416
  %v3492 = vadd.f32 %v3254, %v3418
  %v3493 = vadd.f32 %v3255, %v3487
  %v3494 = vadd.f32 %v3256, %v3489
  %v3495 = vxor.u32 %v3491, 2147483648
  %v3496 = vxor.u32 %v3492, 2147483648
  %v3497 = vxor.u32 %v3493, 2147483648
  %v3498 = vmul.f32 %v3495, 1.442695
  %v3499 = vpow.pop %v3498
  %v3500 = vmul.f32 %v3496, 1.442695
  %v3501 = vpow.pop %v3500
  %v3502 = vmul.f32 %v3497, 1.442695
  %v3503 = vpow.pop %v3502
  %v3504 = vadd.f32 %v3499, 1.0
  %v3505 = vadd.f32 %v3501, 1.0
  %v3506 = vadd.f32 %v3503, 1.0
  %v3507 = vrcp.pop %v3504
  %v3508 = vmul.f32 1.0, %v3507
  %v3509 = vrcp.pop %v3505
  %v3510 = vmul.f32 1.0, %v3509
  %v3511 = vrcp.pop %v3506
  %v3512 = vmul.f32 1.0, %v3511
  %v3513 = vtanh.pop %v3494
  %v3514 = vmul.f32 %v3510, 0.0
  %v3515 = vmul.f32 %v3508, %v3513
  %v3516 = vadd.f32 %v3514, %v3515
  %v3517 = vtanh.pop %v3516
  %v3518 = vmul.f32 %v3512, %v3517
  %3519 = vmatprep.subr.mxu0 %v3346
  %3520 = vmatpush1.msra.mxu0 %v3345
  %3521 = vmatprep.subr.mxu0 %v3342
  %3522 = vmatpush1.msra.mxu0 %v3341
  %3523 = vmatprep.subr.mxu0 %v3338
  %3524 = vmatpush1.msra.mxu0 %v3337
  %3525 = vmatprep.subr.mxu0 %v3334
  %3526 = vmatpush1.msra.mxu0 %v3333
  %3527 = vmatprep.subr.mxu0 %v3330
  %3528 = vmatpush1.msra.mxu0 %v3329
  %3529 = vmatprep.subr.mxu0 %v3326
  %3530 = vmatpush1.msra.mxu0 %v3325
  %3531 = vmatprep.subr.mxu0 %v3322
  %3532 = vmatpush1.msra.mxu0 %v3321
  %3533 = vmatprep.subr.mxu0 %v3318
  %3534 = vmatpush1.msra.mxu0 %v3317
  %3535 = vmatprep.subr.mxu0 %v3314
  %3536 = vmatpush1.msra.mxu0 %v3313
  %3537 = vmatprep.subr.mxu0 %v3310
  %3538 = vmatpush1.msra.mxu0 %v3309
  %3539 = vmatprep.subr.mxu0 %v3306
  %3540 = vmatpush1.msra.mxu0 %v3305
  %3541 = vmatprep.subr.mxu0 %v3302
  %3542 = vmatpush1.msra.mxu0 %v3301
  %3543 = vmatprep.subr.mxu0 %v3298
  %3544 = vmatpush1.msra.mxu0 %v3297
  %3545 = vmatprep.subr.mxu0 %v3294
  %3546 = vmatpush1.msra.mxu0 %v3293
  %3547 = vmatprep.subr.mxu0 %v3290
  %3548 = vmatpush1.msra.mxu0 %v3289
  %3549 = vmatprep.subr.mxu0 %v3286
  %3550 = vmatpush1.msra.mxu0 %v3285
  %3551 = vmatprep.subr.mxu0 0.0
  %3552 = vmatpush2.msra.mxu0 0.0
  %3553 = vmatprep.subr.mxu0 0.0
  %3554 = vmatpush2.msra.mxu0 0.0
  %3555 = vmatprep.subr.mxu0 0.0
  %3556 = vmatpush2.msra.mxu0 0.0
  %3557 = vmatprep.subr.mxu0 0.0
  %3558 = vmatpush2.msra.mxu0 0.0
  %3559 = vmatprep.subr.mxu0 0.0
  %3560 = vmatpush2.msra.mxu0 0.0
  %3561 = vmatprep.subr.mxu0 0.0
  %3562 = vmatpush2.msra.mxu0 0.0
  %3563 = vmatprep.subr.mxu0 0.0
  %3564 = vmatpush2.msra.mxu0 0.0
  %3565 = vmatprep.subr.mxu0 0.0
  %3566 = vmatpush2.msra.mxu0 0.0
  %3567 = vmatprep.subr.mxu0 0.0
  %3568 = vmatpush2.msra.mxu0 0.0
  %3569 = vmatprep.subr.mxu0 0.0
  %3570 = vmatpush2.msra.mxu0 0.0
  %3571 = vmatprep.subr.mxu0 0.0
  %3572 = vmatpush2.msra.mxu0 0.0
  %3573 = vmatprep.subr.mxu0 0.0
  %3574 = vmatpush2.msra.mxu0 0.0
  %3575 = vmatprep.subr.mxu0 0.0
  %3576 = vmatpush2.msra.mxu0 0.0
  %3577 = vmatprep.subr.mxu0 0.0
  %3578 = vmatpush2.msra.mxu0 0.0
  %3579 = vmatprep.subr.mxu0 0.0
  %3580 = vmatpush2.msra.mxu0 0.0
  %3581 = vmatprep.subr.mxu0 0.0
  %3582 = vmatpush2.msra.mxu0 0.0
  %3583 = vmatprep.mubr.f32.mxu0 0.0
  %3584 = vmatmul.mubr.f32.gmra.mxu0 %v3518
  %v3585 = vpop.f32.mrf.mxu0
  %v3586 = vadd.f32 0.0, %v3585
  %v3587 = vpop.f32.mrf.mxu0
  %v3588 = vadd.f32 0.0, %v3587
  %3589 = vdwg.mxu0
  %3590 = vmatprep.subr.mxu0 %v3348
  %3591 = vmatpush1.msra.mxu0 %v3347
  %3592 = vmatprep.subr.mxu0 %v3344
  %3593 = vmatpush1.msra.mxu0 %v3343
  %3594 = vmatprep.subr.mxu0 %v3340
  %3595 = vmatpush1.msra.mxu0 %v3339
  %3596 = vmatprep.subr.mxu0 %v3336
  %3597 = vmatpush1.msra.mxu0 %v3335
  %3598 = vmatprep.subr.mxu0 %v3332
  %3599 = vmatpush1.msra.mxu0 %v3331
  %3600 = vmatprep.subr.mxu0 %v3328
  %3601 = vmatpush1.msra.mxu0 %v3327
  %3602 = vmatprep.subr.mxu0 %v3324
  %3603 = vmatpush1.msra.mxu0 %v3323
  %3604 = vmatprep.subr.mxu0 %v3320
  %3605 = vmatpush1.msra.mxu0 %v3319
  %3606 = vmatprep.subr.mxu0 %v3316
  %3607 = vmatpush1.msra.mxu0 %v3315
  %3608 = vmatprep.subr.mxu0 %v3312
  %3609 = vmatpush1.msra.mxu0 %v3311
  %3610 = vmatprep.subr.mxu0 %v3308
  %3611 = vmatpush1.msra.mxu0 %v3307
  %3612 = vmatprep.subr.mxu0 %v3304
  %3613 = vmatpush1.msra.mxu0 %v3303
  %3614 = vmatprep.subr.mxu0 %v3300
  %3615 = vmatpush1.msra.mxu0 %v3299
  %3616 = vmatprep.subr.mxu0 %v3296
  %3617 = vmatpush1.msra.mxu0 %v3295
  %3618 = vmatprep.subr.mxu0 %v3292
  %3619 = vmatpush1.msra.mxu0 %v3291
  %3620 = vmatprep.subr.mxu0 %v3288
  %3621 = vmatpush1.msra.mxu0 %v3287
  %3622 = vmatprep.subr.mxu0 0.0
  %3623 = vmatpush2.msra.mxu0 0.0
  %3624 = vmatprep.subr.mxu0 0.0
  %3625 = vmatpush2.msra.mxu0 0.0
  %3626 = vmatprep.subr.mxu0 0.0
  %3627 = vmatpush2.msra.mxu0 0.0
  %3628 = vmatprep.subr.mxu0 0.0
  %3629 = vmatpush2.msra.mxu0 0.0
  %3630 = vmatprep.subr.mxu0 0.0
  %3631 = vmatpush2.msra.mxu0 0.0
  %3632 = vmatprep.subr.mxu0 0.0
  %3633 = vmatpush2.msra.mxu0 0.0
  %3634 = vmatprep.subr.mxu0 0.0
  %3635 = vmatpush2.msra.mxu0 0.0
  %3636 = vmatprep.subr.mxu0 0.0
  %3637 = vmatpush2.msra.mxu0 0.0
  %3638 = vmatprep.subr.mxu0 0.0
  %3639 = vmatpush2.msra.mxu0 0.0
  %3640 = vmatprep.subr.mxu0 0.0
  %3641 = vmatpush2.msra.mxu0 0.0
  %3642 = vmatprep.subr.mxu0 0.0
  %3643 = vmatpush2.msra.mxu0 0.0
  %3644 = vmatprep.subr.mxu0 0.0
  %3645 = vmatpush2.msra.mxu0 0.0
  %3646 = vmatprep.subr.mxu0 0.0
  %3647 = vmatpush2.msra.mxu0 0.0
  %3648 = vmatprep.subr.mxu0 0.0
  %3649 = vmatpush2.msra.mxu0 0.0
  %3650 = vmatprep.subr.mxu0 0.0
  %3651 = vmatpush2.msra.mxu0 0.0
  %3652 = vmatprep.subr.mxu0 0.0
  %3653 = vmatpush2.msra.mxu0 0.0
  %3654 = vmatprep.mubr.f32.mxu0 0.0
  %3655 = vmatmul.mubr.f32.gmra.mxu0 %v3518
  %v3656 = vpop.f32.mrf.mxu0
  %v3657 = vadd.f32 0.0, %v3656
  %v3658 = vpop.f32.mrf.mxu0
  %v3659 = vadd.f32 0.0, %v3658
  %3660 = vdwg.mxu0
  %v3661 = vadd.f32 %v3257, %v3586
  %v3662 = vadd.f32 %v3258, %v3588
  %v3663 = vadd.f32 %v3259, %v3657
  %v3664 = vadd.f32 %v3260, %v3659
  %v3665 = vxor.u32 %v3661, 2147483648
  %v3666 = vxor.u32 %v3662, 2147483648
  %v3667 = vxor.u32 %v3663, 2147483648
  %v3668 = vmul.f32 %v3665, 1.442695
  %v3669 = vpow.pop %v3668
  %v3670 = vmul.f32 %v3666, 1.442695
  %v3671 = vpow.pop %v3670
  %v3672 = vmul.f32 %v3667, 1.442695
  %v3673 = vpow.pop %v3672
  %v3674 = vadd.f32 %v3669, 1.0
  %v3675 = vadd.f32 %v3671, 1.0
  %v3676 = vadd.f32 %v3673, 1.0
  %v3677 = vrcp.pop %v3674
  %v3678 = vmul.f32 1.0, %v3677
  %v3679 = vrcp.pop %v3675
  %v3680 = vmul.f32 1.0, %v3679
  %v3681 = vrcp.pop %v3676
  %v3682 = vmul.f32 1.0, %v3681
  %v3683 = vtanh.pop %v3664
  %v3684 = vmul.f32 %v3680, %v3516
  %v3685 = vmul.f32 %v3678, %v3683
  %v3686 = vadd.f32 %v3684, %v3685
  %v3687 = vtanh.pop %v3686
  %v3688 = vmul.f32 %v3682, %v3687
  %3689 = vmatprep.subr.mxu0 %v3346
  %3690 = vmatpush1.msra.mxu0 %v3345
  %3691 = vmatprep.subr.mxu0 %v3342
  %3692 = vmatpush1.msra.mxu0 %v3341
  %3693 = vmatprep.subr.mxu0 %v3338
  %3694 = vmatpush1.msra.mxu0 %v3337
  %3695 = vmatprep.subr.mxu0 %v3334
  %3696 = vmatpush1.msra.mxu0 %v3333
  %3697 = vmatprep.subr.mxu0 %v3330
  %3698 = vmatpush1.msra.mxu0 %v3329
  %3699 = vmatprep.subr.mxu0 %v3326
  %3700 = vmatpush1.msra.mxu0 %v3325
  %3701 = vmatprep.subr.mxu0 %v3322
  %3702 = vmatpush1.msra.mxu0 %v3321
  %3703 = vmatprep.subr.mxu0 %v3318
  %3704 = vmatpush1.msra.mxu0 %v3317
  %3705 = vmatprep.subr.mxu0 %v3314
  %3706 = vmatpush1.msra.mxu0 %v3313
  %3707 = vmatprep.subr.mxu0 %v3310
  %3708 = vmatpush1.msra.mxu0 %v3309
  %3709 = vmatprep.subr.mxu0 %v3306
  %3710 = vmatpush1.msra.mxu0 %v3305
  %3711 = vmatprep.subr.mxu0 %v3302
  %3712 = vmatpush1.msra.mxu0 %v3301
  %3713 = vmatprep.subr.mxu0 %v3298
  %3714 = vmatpush1.msra.mxu0 %v3297
  %3715 = vmatprep.subr.mxu0 %v3294
  %3716 = vmatpush1.msra.mxu0 %v3293
  %3717 = vmatprep.subr.mxu0 %v3290
  %3718 = vmatpush1.msra.mxu0 %v3289
  %3719 = vmatprep.subr.mxu0 %v3286
  %3720 = vmatpush1.msra.mxu0 %v3285
  %3721 = vmatprep.subr.mxu0 0.0
  %3722 = vmatpush2.msra.mxu0 0.0
  %3723 = vmatprep.subr.mxu0 0.0
  %3724 = vmatpush2.msra.mxu0 0.0
  %3725 = vmatprep.subr.mxu0 0.0
  %3726 = vmatpush2.msra.mxu0 0.0
  %3727 = vmatprep.subr.mxu0 0.0
  %3728 = vmatpush2.msra.mxu0 0.0
  %3729 = vmatprep.subr.mxu0 0.0
  %3730 = vmatpush2.msra.mxu0 0.0
  %3731 = vmatprep.subr.mxu0 0.0
  %3732 = vmatpush2.msra.mxu0 0.0
  %3733 = vmatprep.subr.mxu0 0.0
  %3734 = vmatpush2.msra.mxu0 0.0
  %3735 = vmatprep.subr.mxu0 0.0
  %3736 = vmatpush2.msra.mxu0 0.0
  %3737 = vmatprep.subr.mxu0 0.0
  %3738 = vmatpush2.msra.mxu0 0.0
  %3739 = vmatprep.subr.mxu0 0.0
  %3740 = vmatpush2.msra.mxu0 0.0
  %3741 = vmatprep.subr.mxu0 0.0
  %3742 = vmatpush2.msra.mxu0 0.0
  %3743 = vmatprep.subr.mxu0 0.0
  %3744 = vmatpush2.msra.mxu0 0.0
  %3745 = vmatprep.subr.mxu0 0.0
  %3746 = vmatpush2.msra.mxu0 0.0
  %3747 = vmatprep.subr.mxu0 0.0
  %3748 = vmatpush2.msra.mxu0 0.0
  %3749 = vmatprep.subr.mxu0 0.0
  %3750 = vmatpush2.msra.mxu0 0.0
  %3751 = vmatprep.subr.mxu0 0.0
  %3752 = vmatpush2.msra.mxu0 0.0
  %3753 = vmatprep.mubr.f32.mxu0 0.0
  %3754 = vmatmul.mubr.f32.gmra.mxu0 %v3688
  %v3755 = vpop.f32.mrf.mxu0
  %v3756 = vadd.f32 0.0, %v3755
  %v3757 = vpop.f32.mrf.mxu0
  %v3758 = vadd.f32 0.0, %v3757
  %3759 = vdwg.mxu0
  %3760 = vmatprep.subr.mxu0 %v3348
  %3761 = vmatpush1.msra.mxu0 %v3347
  %3762 = vmatprep.subr.mxu0 %v3344
  %3763 = vmatpush1.msra.mxu0 %v3343
  %3764 = vmatprep.subr.mxu0 %v3340
  %3765 = vmatpush1.msra.mxu0 %v3339
  %3766 = vmatprep.subr.mxu0 %v3336
  %3767 = vmatpush1.msra.mxu0 %v3335
  %3768 = vmatprep.subr.mxu0 %v3332
  %3769 = vmatpush1.msra.mxu0 %v3331
  %3770 = vmatprep.subr.mxu0 %v3328
  %3771 = vmatpush1.msra.mxu0 %v3327
  %3772 = vmatprep.subr.mxu0 %v3324
  %3773 = vmatpush1.msra.mxu0 %v3323
  %3774 = vmatprep.subr.mxu0 %v3320
  %3775 = vmatpush1.msra.mxu0 %v3319
  %3776 = vmatprep.subr.mxu0 %v3316
  %3777 = vmatpush1.msra.mxu0 %v3315
  %3778 = vmatprep.subr.mxu0 %v3312
  %3779 = vmatpush1.msra.mxu0 %v3311
  %3780 = vmatprep.subr.mxu0 %v3308
  %3781 = vmatpush1.msra.mxu0 %v3307
  %3782 = vmatprep.subr.mxu0 %v3304
  %3783 = vmatpush1.msra.mxu0 %v3303
  %3784 = vmatprep.subr.mxu0 %v3300
  %3785 = vmatpush1.msra.mxu0 %v3299
  %3786 = vmatprep.subr.mxu0 %v3296
  %3787 = vmatpush1.msra.mxu0 %v3295
  %3788 = vmatprep.subr.mxu0 %v3292
  %3789 = vmatpush1.msra.mxu0 %v3291
  %3790 = vmatprep.subr.mxu0 %v3288
  %3791 = vmatpush1.msra.mxu0 %v3287
  %3792 = vmatprep.subr.mxu0 0.0
  %3793 = vmatpush2.msra.mxu0 0.0
  %3794 = vmatprep.subr.mxu0 0.0
  %3795 = vmatpush2.msra.mxu0 0.0
  %3796 = vmatprep.subr.mxu0 0.0
  %3797 = vmatpush2.msra.mxu0 0.0
  %3798 = vmatprep.subr.mxu0 0.0
  %3799 = vmatpush2.msra.mxu0 0.0
  %3800 = vmatprep.subr.mxu0 0.0
  %3801 = vmatpush2.msra.mxu0 0.0
  %3802 = vmatprep.subr.mxu0 0.0
  %3803 = vmatpush2.msra.mxu0 0.0
  %3804 = vmatprep.subr.mxu0 0.0
  %3805 = vmatpush2.msra.mxu0 0.0
  %3806 = vmatprep.subr.mxu0 0.0
  %3807 = vmatpush2.msra.mxu0 0.0
  %3808 = vmatprep.subr.mxu0 0.0
  %3809 = vmatpush2.msra.mxu0 0.0
  %3810 = vmatprep.subr.mxu0 0.0
  %3811 = vmatpush2.msra.mxu0 0.0
  %3812 = vmatprep.subr.mxu0 0.0
  %3813 = vmatpush2.msra.mxu0 0.0
  %3814 = vmatprep.subr.mxu0 0.0
  %3815 = vmatpush2.msra.mxu0 0.0
  %3816 = vmatprep.subr.mxu0 0.0
  %3817 = vmatpush2.msra.mxu0 0.0
  %3818 = vmatprep.subr.mxu0 0.0
  %3819 = vmatpush2.msra.mxu0 0.0
  %3820 = vmatprep.subr.mxu0 0.0
  %3821 = vmatpush2.msra.mxu0 0.0
  %3822 = vmatprep.subr.mxu0 0.0
  %3823 = vmatpush2.msra.mxu0 0.0
  %3824 = vmatprep.mubr.f32.mxu0 0.0
  %3825 = vmatmul.mubr.f32.gmra.mxu0 %v3688
  %v3826 = vpop.f32.mrf.mxu0
  %v3827 = vadd.f32 0.0, %v3826
  %v3828 = vpop.f32.mrf.mxu0
  %v3829 = vadd.f32 0.0, %v3828
  %3830 = vdwg.mxu0
  %v3831 = vadd.f32 %v3261, %v3756
  %v3832 = vadd.f32 %v3262, %v3758
  %v3833 = vadd.f32 %v3263, %v3827
  %v3834 = vadd.f32 %v3264, %v3829
  %v3835 = vxor.u32 %v3831, 2147483648
  %v3836 = vxor.u32 %v3832, 2147483648
  %v3837 = vxor.u32 %v3833, 2147483648
  %v3838 = vmul.f32 %v3835, 1.442695
  %v3839 = vpow.pop %v3838
  %v3840 = vmul.f32 %v3836, 1.442695
  %v3841 = vpow.pop %v3840
  %v3842 = vmul.f32 %v3837, 1.442695
  %v3843 = vpow.pop %v3842
  %v3844 = vadd.f32 %v3839, 1.0
  %v3845 = vadd.f32 %v3841, 1.0
  %v3846 = vadd.f32 %v3843, 1.0
  %v3847 = vrcp.pop %v3844
  %v3848 = vmul.f32 1.0, %v3847
  %v3849 = vrcp.pop %v3845
  %v3850 = vmul.f32 1.0, %v3849
  %v3851 = vrcp.pop %v3846
  %v3852 = vmul.f32 1.0, %v3851
  %v3853 = vtanh.pop %v3834
  %v3854 = vmul.f32 %v3850, %v3686
  %v3855 = vmul.f32 %v3848, %v3853
  %v3856 = vadd.f32 %v3854, %v3855
  %v3857 = vtanh.pop %v3856
  %v3858 = vmul.f32 %v3852, %v3857
  %3859 = vmatprep.subr.mxu0 %v3346
  %3860 = vmatpush1.msra.mxu0 %v3345
  %3861 = vmatprep.subr.mxu0 %v3342
  %3862 = vmatpush1.msra.mxu0 %v3341
  %3863 = vmatprep.subr.mxu0 %v3338
  %3864 = vmatpush1.msra.mxu0 %v3337
  %3865 = vmatprep.subr.mxu0 %v3334
  %3866 = vmatpush1.msra.mxu0 %v3333
  %3867 = vmatprep.subr.mxu0 %v3330
  %3868 = vmatpush1.msra.mxu0 %v3329
  %3869 = vmatprep.subr.mxu0 %v3326
  %3870 = vmatpush1.msra.mxu0 %v3325
  %3871 = vmatprep.subr.mxu0 %v3322
  %3872 = vmatpush1.msra.mxu0 %v3321
  %3873 = vmatprep.subr.mxu0 %v3318
  %3874 = vmatpush1.msra.mxu0 %v3317
  %3875 = vmatprep.subr.mxu0 %v3314
  %3876 = vmatpush1.msra.mxu0 %v3313
  %3877 = vmatprep.subr.mxu0 %v3310
  %3878 = vmatpush1.msra.mxu0 %v3309
  %3879 = vmatprep.subr.mxu0 %v3306
  %3880 = vmatpush1.msra.mxu0 %v3305
  %3881 = vmatprep.subr.mxu0 %v3302
  %3882 = vmatpush1.msra.mxu0 %v3301
  %3883 = vmatprep.subr.mxu0 %v3298
  %3884 = vmatpush1.msra.mxu0 %v3297
  %3885 = vmatprep.subr.mxu0 %v3294
  %3886 = vmatpush1.msra.mxu0 %v3293
  %3887 = vmatprep.subr.mxu0 %v3290
  %3888 = vmatpush1.msra.mxu0 %v3289
  %3889 = vmatprep.subr.mxu0 %v3286
  %3890 = vmatpush1.msra.mxu0 %v3285
  %3891 = vmatprep.subr.mxu0 0.0
  %3892 = vmatpush2.msra.mxu0 0.0
  %3893 = vmatprep.subr.mxu0 0.0
  %3894 = vmatpush2.msra.mxu0 0.0
  %3895 = vmatprep.subr.mxu0 0.0
  %3896 = vmatpush2.msra.mxu0 0.0
  %3897 = vmatprep.subr.mxu0 0.0
  %3898 = vmatpush2.msra.mxu0 0.0
  %3899 = vmatprep.subr.mxu0 0.0
  %3900 = vmatpush2.msra.mxu0 0.0
  %3901 = vmatprep.subr.mxu0 0.0
  %3902 = vmatpush2.msra.mxu0 0.0
  %3903 = vmatprep.subr.mxu0 0.0
  %3904 = vmatpush2.msra.mxu0 0.0
  %3905 = vmatprep.subr.mxu0 0.0
  %3906 = vmatpush2.msra.mxu0 0.0
  %3907 = vmatprep.subr.mxu0 0.0
  %3908 = vmatpush2.msra.mxu0 0.0
  %3909 = vmatprep.subr.mxu0 0.0
  %3910 = vmatpush2.msra.mxu0 0.0
  %3911 = vmatprep.subr.mxu0 0.0
  %3912 = vmatpush2.msra.mxu0 0.0
  %3913 = vmatprep.subr.mxu0 0.0
  %3914 = vmatpush2.msra.mxu0 0.0
  %3915 = vmatprep.subr.mxu0 0.0
  %3916 = vmatpush2.msra.mxu0 0.0
  %3917 = vmatprep.subr.mxu0 0.0
  %3918 = vmatpush2.msra.mxu0 0.0
  %3919 = vmatprep.subr.mxu0 0.0
  %3920 = vmatpush2.msra.mxu0 0.0
  %3921 = vmatprep.subr.mxu0 0.0
  %3922 = vmatpush2.msra.mxu0 0.0
  %3923 = vmatprep.mubr.f32.mxu0 0.0
  %3924 = vmatmul.mubr.f32.gmra.mxu0 %v3858
  %v3925 = vpop.f32.mrf.mxu0
  %v3926 = vadd.f32 0.0, %v3925
  %v3927 = vpop.f32.mrf.mxu0
  %v3928 = vadd.f32 0.0, %v3927
  %3929 = vdwg.mxu0
  %3930 = vmatprep.subr.mxu0 %v3348
  %3931 = vmatpush1.msra.mxu0 %v3347
  %3932 = vmatprep.subr.mxu0 %v3344
  %3933 = vmatpush1.msra.mxu0 %v3343
  %3934 = vmatprep.subr.mxu0 %v3340
  %3935 = vmatpush1.msra.mxu0 %v3339
  %3936 = vmatprep.subr.mxu0 %v3336
  %3937 = vmatpush1.msra.mxu0 %v3335
  %3938 = vmatprep.subr.mxu0 %v3332
  %3939 = vmatpush1.msra.mxu0 %v3331
  %3940 = vmatprep.subr.mxu0 %v3328
  %3941 = vmatpush1.msra.mxu0 %v3327
  %3942 = vmatprep.subr.mxu0 %v3324
  %3943 = vmatpush1.msra.mxu0 %v3323
  %3944 = vmatprep.subr.mxu0 %v3320
  %3945 = vmatpush1.msra.mxu0 %v3319
  %3946 = vmatprep.subr.mxu0 %v3316
  %3947 = vmatpush1.msra.mxu0 %v3315
  %3948 = vmatprep.subr.mxu0 %v3312
  %3949 = vmatpush1.msra.mxu0 %v3311
  %3950 = vmatprep.subr.mxu0 %v3308
  %3951 = vmatpush1.msra.mxu0 %v3307
  %3952 = vmatprep.subr.mxu0 %v3304
  %3953 = vmatpush1.msra.mxu0 %v3303
  %3954 = vmatprep.subr.mxu0 %v3300
  %3955 = vmatpush1.msra.mxu0 %v3299
  %3956 = vmatprep.subr.mxu0 %v3296
  %3957 = vmatpush1.msra.mxu0 %v3295
  %3958 = vmatprep.subr.mxu0 %v3292
  %3959 = vmatpush1.msra.mxu0 %v3291
  %3960 = vmatprep.subr.mxu0 %v3288
  %3961 = vmatpush1.msra.mxu0 %v3287
  %3962 = vmatprep.subr.mxu0 0.0
  %3963 = vmatpush2.msra.mxu0 0.0
  %3964 = vmatprep.subr.mxu0 0.0
  %3965 = vmatpush2.msra.mxu0 0.0
  %3966 = vmatprep.subr.mxu0 0.0
  %3967 = vmatpush2.msra.mxu0 0.0
  %3968 = vmatprep.subr.mxu0 0.0
  %3969 = vmatpush2.msra.mxu0 0.0
  %3970 = vmatprep.subr.mxu0 0.0
  %3971 = vmatpush2.msra.mxu0 0.0
  %3972 = vmatprep.subr.mxu0 0.0
  %3973 = vmatpush2.msra.mxu0 0.0
  %3974 = vmatprep.subr.mxu0 0.0
  %3975 = vmatpush2.msra.mxu0 0.0
  %3976 = vmatprep.subr.mxu0 0.0
  %3977 = vmatpush2.msra.mxu0 0.0
  %3978 = vmatprep.subr.mxu0 0.0
  %3979 = vmatpush2.msra.mxu0 0.0
  %3980 = vmatprep.subr.mxu0 0.0
  %3981 = vmatpush2.msra.mxu0 0.0
  %3982 = vmatprep.subr.mxu0 0.0
  %3983 = vmatpush2.msra.mxu0 0.0
  %3984 = vmatprep.subr.mxu0 0.0
  %3985 = vmatpush2.msra.mxu0 0.0
  %3986 = vmatprep.subr.mxu0 0.0
  %3987 = vmatpush2.msra.mxu0 0.0
  %3988 = vmatprep.subr.mxu0 0.0
  %3989 = vmatpush2.msra.mxu0 0.0
  %3990 = vmatprep.subr.mxu0 0.0
  %3991 = vmatpush2.msra.mxu0 0.0
  %3992 = vmatprep.subr.mxu0 0.0
  %3993 = vmatpush2.msra.mxu0 0.0
  %3994 = vmatprep.mubr.f32.mxu0 0.0
  %3995 = vmatmul.mubr.f32.gmra.mxu0 %v3858
  %v3996 = vpop.f32.mrf.mxu0
  %v3997 = vadd.f32 0.0, %v3996
  %v3998 = vpop.f32.mrf.mxu0
  %v3999 = vadd.f32 0.0, %v3998
  %4000 = vdwg.mxu0
  %v4001 = vadd.f32 %v3265, %v3926
  %v4002 = vadd.f32 %v3266, %v3928
  %v4003 = vadd.f32 %v3267, %v3997
  %v4004 = vadd.f32 %v3268, %v3999
  %v4005 = vxor.u32 %v4001, 2147483648
  %v4006 = vxor.u32 %v4002, 2147483648
  %v4007 = vxor.u32 %v4003, 2147483648
  %v4008 = vmul.f32 %v4005, 1.442695
  %v4009 = vpow.pop %v4008
  %v4010 = vmul.f32 %v4006, 1.442695
  %v4011 = vpow.pop %v4010
  %v4012 = vmul.f32 %v4007, 1.442695
  %v4013 = vpow.pop %v4012
  %v4014 = vadd.f32 %v4009, 1.0
  %v4015 = vadd.f32 %v4011, 1.0
  %v4016 = vadd.f32 %v4013, 1.0
  %v4017 = vrcp.pop %v4014
  %v4018 = vmul.f32 1.0, %v4017
  %v4019 = vrcp.pop %v4015
  %v4020 = vmul.f32 1.0, %v4019
  %v4021 = vrcp.pop %v4016
  %v4022 = vmul.f32 1.0, %v4021
  %v4023 = vtanh.pop %v4004
  %v4024 = vmul.f32 %v4020, %v3856
  %v4025 = vmul.f32 %v4018, %v4023
  %v4026 = vadd.f32 %v4024, %v4025
  %v4027 = vtanh.pop %v4026
  %v4028 = vmul.f32 %v4022, %v4027
  %4029 = vmatprep.subr.mxu0 %v3346
  %4030 = vmatpush1.msra.mxu0 %v3345
  %4031 = vmatprep.subr.mxu0 %v3342
  %4032 = vmatpush1.msra.mxu0 %v3341
  %4033 = vmatprep.subr.mxu0 %v3338
  %4034 = vmatpush1.msra.mxu0 %v3337
  %4035 = vmatprep.subr.mxu0 %v3334
  %4036 = vmatpush1.msra.mxu0 %v3333
  %4037 = vmatprep.subr.mxu0 %v3330
  %4038 = vmatpush1.msra.mxu0 %v3329
  %4039 = vmatprep.subr.mxu0 %v3326
  %4040 = vmatpush1.msra.mxu0 %v3325
  %4041 = vmatprep.subr.mxu0 %v3322
  %4042 = vmatpush1.msra.mxu0 %v3321
  %4043 = vmatprep.subr.mxu0 %v3318
  %4044 = vmatpush1.msra.mxu0 %v3317
  %4045 = vmatprep.subr.mxu0 %v3314
  %4046 = vmatpush1.msra.mxu0 %v3313
  %4047 = vmatprep.subr.mxu0 %v3310
  %4048 = vmatpush1.msra.mxu0 %v3309
  %4049 = vmatprep.subr.mxu0 %v3306
  %4050 = vmatpush1.msra.mxu0 %v3305
  %4051 = vmatprep.subr.mxu0 %v3302
  %4052 = vmatpush1.msra.mxu0 %v3301
  %4053 = vmatprep.subr.mxu0 %v3298
  %4054 = vmatpush1.msra.mxu0 %v3297
  %4055 = vmatprep.subr.mxu0 %v3294
  %4056 = vmatpush1.msra.mxu0 %v3293
  %4057 = vmatprep.subr.mxu0 %v3290
  %4058 = vmatpush1.msra.mxu0 %v3289
  %4059 = vmatprep.subr.mxu0 %v3286
  %4060 = vmatpush1.msra.mxu0 %v3285
  %4061 = vmatprep.subr.mxu0 0.0
  %4062 = vmatpush2.msra.mxu0 0.0
  %4063 = vmatprep.subr.mxu0 0.0
  %4064 = vmatpush2.msra.mxu0 0.0
  %4065 = vmatprep.subr.mxu0 0.0
  %4066 = vmatpush2.msra.mxu0 0.0
  %4067 = vmatprep.subr.mxu0 0.0
  %4068 = vmatpush2.msra.mxu0 0.0
  %4069 = vmatprep.subr.mxu0 0.0
  %4070 = vmatpush2.msra.mxu0 0.0
  %4071 = vmatprep.subr.mxu0 0.0
  %4072 = vmatpush2.msra.mxu0 0.0
  %4073 = vmatprep.subr.mxu0 0.0
  %4074 = vmatpush2.msra.mxu0 0.0
  %4075 = vmatprep.subr.mxu0 0.0
  %4076 = vmatpush2.msra.mxu0 0.0
  %4077 = vmatprep.subr.mxu0 0.0
  %4078 = vmatpush2.msra.mxu0 0.0
  %4079 = vmatprep.subr.mxu0 0.0
  %4080 = vmatpush2.msra.mxu0 0.0
  %4081 = vmatprep.subr.mxu0 0.0
  %4082 = vmatpush2.msra.mxu0 0.0
  %4083 = vmatprep.subr.mxu0 0.0
  %4084 = vmatpush2.msra.mxu0 0.0
  %4085 = vmatprep.subr.mxu0 0.0
  %4086 = vmatpush2.msra.mxu0 0.0
  %4087 = vmatprep.subr.mxu0 0.0
  %4088 = vmatpush2.msra.mxu0 0.0
  %4089 = vmatprep.subr.mxu0 0.0
  %4090 = vmatpush2.msra.mxu0 0.0
  %4091 = vmatprep.subr.mxu0 0.0
  %4092 = vmatpush2.msra.mxu0 0.0
  %4093 = vmatprep.mubr.f32.mxu0 0.0
  %4094 = vmatmul.mubr.f32.gmra.mxu0 %v4028
  %v4095 = vpop.f32.mrf.mxu0
  %v4096 = vadd.f32 0.0, %v4095
  %v4097 = vpop.f32.mrf.mxu0
  %v4098 = vadd.f32 0.0, %v4097
  %4099 = vdwg.mxu0
  %4100 = vmatprep.subr.mxu0 %v3348
  %4101 = vmatpush1.msra.mxu0 %v3347
  %4102 = vmatprep.subr.mxu0 %v3344
  %4103 = vmatpush1.msra.mxu0 %v3343
  %4104 = vmatprep.subr.mxu0 %v3340
  %4105 = vmatpush1.msra.mxu0 %v3339
  %4106 = vmatprep.subr.mxu0 %v3336
  %4107 = vmatpush1.msra.mxu0 %v3335
  %4108 = vmatprep.subr.mxu0 %v3332
  %4109 = vmatpush1.msra.mxu0 %v3331
  %4110 = vmatprep.subr.mxu0 %v3328
  %4111 = vmatpush1.msra.mxu0 %v3327
  %4112 = vmatprep.subr.mxu0 %v3324
  %4113 = vmatpush1.msra.mxu0 %v3323
  %4114 = vmatprep.subr.mxu0 %v3320
  %4115 = vmatpush1.msra.mxu0 %v3319
  %4116 = vmatprep.subr.mxu0 %v3316
  %4117 = vmatpush1.msra.mxu0 %v3315
  %4118 = vmatprep.subr.mxu0 %v3312
  %4119 = vmatpush1.msra.mxu0 %v3311
  %4120 = vmatprep.subr.mxu0 %v3308
  %4121 = vmatpush1.msra.mxu0 %v3307
  %4122 = vmatprep.subr.mxu0 %v3304
  %4123 = vmatpush1.msra.mxu0 %v3303
  %4124 = vmatprep.subr.mxu0 %v3300
  %4125 = vmatpush1.msra.mxu0 %v3299
  %4126 = vmatprep.subr.mxu0 %v3296
  %4127 = vmatpush1.msra.mxu0 %v3295
  %4128 = vmatprep.subr.mxu0 %v3292
  %4129 = vmatpush1.msra.mxu0 %v3291
  %4130 = vmatprep.subr.mxu0 %v3288
  %4131 = vmatpush1.msra.mxu0 %v3287
  %4132 = vmatprep.subr.mxu0 0.0
  %4133 = vmatpush2.msra.mxu0 0.0
  %4134 = vmatprep.subr.mxu0 0.0
  %4135 = vmatpush2.msra.mxu0 0.0
  %4136 = vmatprep.subr.mxu0 0.0
  %4137 = vmatpush2.msra.mxu0 0.0
  %4138 = vmatprep.subr.mxu0 0.0
  %4139 = vmatpush2.msra.mxu0 0.0
  %4140 = vmatprep.subr.mxu0 0.0
  %4141 = vmatpush2.msra.mxu0 0.0
  %4142 = vmatprep.subr.mxu0 0.0
  %4143 = vmatpush2.msra.mxu0 0.0
  %4144 = vmatprep.subr.mxu0 0.0
  %4145 = vmatpush2.msra.mxu0 0.0
  %4146 = vmatprep.subr.mxu0 0.0
  %4147 = vmatpush2.msra.mxu0 0.0
  %4148 = vmatprep.subr.mxu0 0.0
  %4149 = vmatpush2.msra.mxu0 0.0
  %4150 = vmatprep.subr.mxu0 0.0
  %4151 = vmatpush2.msra.mxu0 0.0
  %4152 = vmatprep.subr.mxu0 0.0
  %4153 = vmatpush2.msra.mxu0 0.0
  %4154 = vmatprep.subr.mxu0 0.0
  %4155 = vmatpush2.msra.mxu0 0.0
  %4156 = vmatprep.subr.mxu0 0.0
  %4157 = vmatpush2.msra.mxu0 0.0
  %4158 = vmatprep.subr.mxu0 0.0
  %4159 = vmatpush2.msra.mxu0 0.0
  %4160 = vmatprep.subr.mxu0 0.0
  %4161 = vmatpush2.msra.mxu0 0.0
  %4162 = vmatprep.subr.mxu0 0.0
  %4163 = vmatpush2.msra.mxu0 0.0
  %4164 = vmatprep.mubr.f32.mxu0 0.0
  %4165 = vmatmul.mubr.f32.gmra.mxu0 %v4028
  %v4166 = vpop.f32.mrf.mxu0
  %v4167 = vadd.f32 0.0, %v4166
  %v4168 = vpop.f32.mrf.mxu0
  %v4169 = vadd.f32 0.0, %v4168
  %4170 = vdwg.mxu0
  %v4171 = vadd.f32 %v3269, %v4096
  %v4172 = vadd.f32 %v3270, %v4098
  %v4173 = vadd.f32 %v3271, %v4167
  %v4174 = vadd.f32 %v3272, %v4169
  %v4175 = vxor.u32 %v4171, 2147483648
  %v4176 = vxor.u32 %v4172, 2147483648
  %v4177 = vxor.u32 %v4173, 2147483648
  %v4178 = vmul.f32 %v4175, 1.442695
  %v4179 = vpow.pop %v4178
  %v4180 = vmul.f32 %v4176, 1.442695
  %v4181 = vpow.pop %v4180
  %v4182 = vmul.f32 %v4177, 1.442695
  %v4183 = vpow.pop %v4182
  %v4184 = vadd.f32 %v4179, 1.0
  %v4185 = vadd.f32 %v4181, 1.0
  %v4186 = vadd.f32 %v4183, 1.0
  %v4187 = vrcp.pop %v4184
  %v4188 = vmul.f32 1.0, %v4187
  %v4189 = vrcp.pop %v4185
  %v4190 = vmul.f32 1.0, %v4189
  %v4191 = vrcp.pop %v4186
  %v4192 = vmul.f32 1.0, %v4191
  %v4193 = vtanh.pop %v4174
  %v4194 = vmul.f32 %v4190, %v4026
  %v4195 = vmul.f32 %v4188, %v4193
  %v4196 = vadd.f32 %v4194, %v4195
  %v4197 = vtanh.pop %v4196
  %v4198 = vmul.f32 %v4192, %v4197
  %4199 = vmatprep.subr.mxu0 %v3346
  %4200 = vmatpush1.msra.mxu0 %v3345
  %4201 = vmatprep.subr.mxu0 %v3342
  %4202 = vmatpush1.msra.mxu0 %v3341
  %4203 = vmatprep.subr.mxu0 %v3338
  %4204 = vmatpush1.msra.mxu0 %v3337
  %4205 = vmatprep.subr.mxu0 %v3334
  %4206 = vmatpush1.msra.mxu0 %v3333
  %4207 = vmatprep.subr.mxu0 %v3330
  %4208 = vmatpush1.msra.mxu0 %v3329
  %4209 = vmatprep.subr.mxu0 %v3326
  %4210 = vmatpush1.msra.mxu0 %v3325
  %4211 = vmatprep.subr.mxu0 %v3322
  %4212 = vmatpush1.msra.mxu0 %v3321
  %4213 = vmatprep.subr.mxu0 %v3318
  %4214 = vmatpush1.msra.mxu0 %v3317
  %4215 = vmatprep.subr.mxu0 %v3314
  %4216 = vmatpush1.msra.mxu0 %v3313
  %4217 = vmatprep.subr.mxu0 %v3310
  %4218 = vmatpush1.msra.mxu0 %v3309
  %4219 = vmatprep.subr.mxu0 %v3306
  %4220 = vmatpush1.msra.mxu0 %v3305
  %4221 = vmatprep.subr.mxu0 %v3302
  %4222 = vmatpush1.msra.mxu0 %v3301
  %4223 = vmatprep.subr.mxu0 %v3298
  %4224 = vmatpush1.msra.mxu0 %v3297
  %4225 = vmatprep.subr.mxu0 %v3294
  %4226 = vmatpush1.msra.mxu0 %v3293
  %4227 = vmatprep.subr.mxu0 %v3290
  %4228 = vmatpush1.msra.mxu0 %v3289
  %4229 = vmatprep.subr.mxu0 %v3286
  %4230 = vmatpush1.msra.mxu0 %v3285
  %4231 = vmatprep.subr.mxu0 0.0
  %4232 = vmatpush2.msra.mxu0 0.0
  %4233 = vmatprep.subr.mxu0 0.0
  %4234 = vmatpush2.msra.mxu0 0.0
  %4235 = vmatprep.subr.mxu0 0.0
  %4236 = vmatpush2.msra.mxu0 0.0
  %4237 = vmatprep.subr.mxu0 0.0
  %4238 = vmatpush2.msra.mxu0 0.0
  %4239 = vmatprep.subr.mxu0 0.0
  %4240 = vmatpush2.msra.mxu0 0.0
  %4241 = vmatprep.subr.mxu0 0.0
  %4242 = vmatpush2.msra.mxu0 0.0
  %4243 = vmatprep.subr.mxu0 0.0
  %4244 = vmatpush2.msra.mxu0 0.0
  %4245 = vmatprep.subr.mxu0 0.0
  %4246 = vmatpush2.msra.mxu0 0.0
  %4247 = vmatprep.subr.mxu0 0.0
  %4248 = vmatpush2.msra.mxu0 0.0
  %4249 = vmatprep.subr.mxu0 0.0
  %4250 = vmatpush2.msra.mxu0 0.0
  %4251 = vmatprep.subr.mxu0 0.0
  %4252 = vmatpush2.msra.mxu0 0.0
  %4253 = vmatprep.subr.mxu0 0.0
  %4254 = vmatpush2.msra.mxu0 0.0
  %4255 = vmatprep.subr.mxu0 0.0
  %4256 = vmatpush2.msra.mxu0 0.0
  %4257 = vmatprep.subr.mxu0 0.0
  %4258 = vmatpush2.msra.mxu0 0.0
  %4259 = vmatprep.subr.mxu0 0.0
  %4260 = vmatpush2.msra.mxu0 0.0
  %4261 = vmatprep.subr.mxu0 0.0
  %4262 = vmatpush2.msra.mxu0 0.0
  %4263 = vmatprep.mubr.f32.mxu0 0.0
  %4264 = vmatmul.mubr.f32.gmra.mxu0 %v4198
  %v4265 = vpop.f32.mrf.mxu0
  %v4266 = vadd.f32 0.0, %v4265
  %v4267 = vpop.f32.mrf.mxu0
  %v4268 = vadd.f32 0.0, %v4267
  %4269 = vdwg.mxu0
  %4270 = vmatprep.subr.mxu0 %v3348
  %4271 = vmatpush1.msra.mxu0 %v3347
  %4272 = vmatprep.subr.mxu0 %v3344
  %4273 = vmatpush1.msra.mxu0 %v3343
  %4274 = vmatprep.subr.mxu0 %v3340
  %4275 = vmatpush1.msra.mxu0 %v3339
  %4276 = vmatprep.subr.mxu0 %v3336
  %4277 = vmatpush1.msra.mxu0 %v3335
  %4278 = vmatprep.subr.mxu0 %v3332
  %4279 = vmatpush1.msra.mxu0 %v3331
  %4280 = vmatprep.subr.mxu0 %v3328
  %4281 = vmatpush1.msra.mxu0 %v3327
  %4282 = vmatprep.subr.mxu0 %v3324
  %4283 = vmatpush1.msra.mxu0 %v3323
  %4284 = vmatprep.subr.mxu0 %v3320
  %4285 = vmatpush1.msra.mxu0 %v3319
  %4286 = vmatprep.subr.mxu0 %v3316
  %4287 = vmatpush1.msra.mxu0 %v3315
  %4288 = vmatprep.subr.mxu0 %v3312
  %4289 = vmatpush1.msra.mxu0 %v3311
  %4290 = vmatprep.subr.mxu0 %v3308
  %4291 = vmatpush1.msra.mxu0 %v3307
  %4292 = vmatprep.subr.mxu0 %v3304
  %4293 = vmatpush1.msra.mxu0 %v3303
  %4294 = vmatprep.subr.mxu0 %v3300
  %4295 = vmatpush1.msra.mxu0 %v3299
  %4296 = vmatprep.subr.mxu0 %v3296
  %4297 = vmatpush1.msra.mxu0 %v3295
  %4298 = vmatprep.subr.mxu0 %v3292
  %4299 = vmatpush1.msra.mxu0 %v3291
  %4300 = vmatprep.subr.mxu0 %v3288
  %4301 = vmatpush1.msra.mxu0 %v3287
  %4302 = vmatprep.subr.mxu0 0.0
  %4303 = vmatpush2.msra.mxu0 0.0
  %4304 = vmatprep.subr.mxu0 0.0
  %4305 = vmatpush2.msra.mxu0 0.0
  %4306 = vmatprep.subr.mxu0 0.0
  %4307 = vmatpush2.msra.mxu0 0.0
  %4308 = vmatprep.subr.mxu0 0.0
  %4309 = vmatpush2.msra.mxu0 0.0
  %4310 = vmatprep.subr.mxu0 0.0
  %4311 = vmatpush2.msra.mxu0 0.0
  %4312 = vmatprep.subr.mxu0 0.0
  %4313 = vmatpush2.msra.mxu0 0.0
  %4314 = vmatprep.subr.mxu0 0.0
  %4315 = vmatpush2.msra.mxu0 0.0
  %4316 = vmatprep.subr.mxu0 0.0
  %4317 = vmatpush2.msra.mxu0 0.0
  %4318 = vmatprep.subr.mxu0 0.0
  %4319 = vmatpush2.msra.mxu0 0.0
  %4320 = vmatprep.subr.mxu0 0.0
  %4321 = vmatpush2.msra.mxu0 0.0
  %4322 = vmatprep.subr.mxu0 0.0
  %4323 = vmatpush2.msra.mxu0 0.0
  %4324 = vmatprep.subr.mxu0 0.0
  %4325 = vmatpush2.msra.mxu0 0.0
  %4326 = vmatprep.subr.mxu0 0.0
  %4327 = vmatpush2.msra.mxu0 0.0
  %4328 = vmatprep.subr.mxu0 0.0
  %4329 = vmatpush2.msra.mxu0 0.0
  %4330 = vmatprep.subr.mxu0 0.0
  %4331 = vmatpush2.msra.mxu0 0.0
  %4332 = vmatprep.subr.mxu0 0.0
  %4333 = vmatpush2.msra.mxu0 0.0
  %4334 = vmatprep.mubr.f32.mxu0 0.0
  %4335 = vmatmul.mubr.f32.gmra.mxu0 %v4198
  %v4336 = vpop.f32.mrf.mxu0
  %v4337 = vadd.f32 0.0, %v4336
  %v4338 = vpop.f32.mrf.mxu0
  %v4339 = vadd.f32 0.0, %v4338
  %4340 = vdwg.mxu0
  %v4341 = vadd.f32 %v3273, %v4266
  %v4342 = vadd.f32 %v3274, %v4268
  %v4343 = vadd.f32 %v3275, %v4337
  %v4344 = vadd.f32 %v3276, %v4339
  %v4345 = vxor.u32 %v4341, 2147483648
  %v4346 = vxor.u32 %v4342, 2147483648
  %v4347 = vxor.u32 %v4343, 2147483648
  %v4348 = vmul.f32 %v4345, 1.442695
  %v4349 = vpow.pop %v4348
  %v4350 = vmul.f32 %v4346, 1.442695
  %v4351 = vpow.pop %v4350
  %v4352 = vmul.f32 %v4347, 1.442695
  %v4353 = vpow.pop %v4352
  %v4354 = vadd.f32 %v4349, 1.0
  %v4355 = vadd.f32 %v4351, 1.0
  %v4356 = vadd.f32 %v4353, 1.0
  %v4357 = vrcp.pop %v4354
  %v4358 = vmul.f32 1.0, %v4357
  %v4359 = vrcp.pop %v4355
  %v4360 = vmul.f32 1.0, %v4359
  %v4361 = vrcp.pop %v4356
  %v4362 = vmul.f32 1.0, %v4361
  %v4363 = vtanh.pop %v4344
  %v4364 = vmul.f32 %v4360, %v4196
  %v4365 = vmul.f32 %v4358, %v4363
  %v4366 = vadd.f32 %v4364, %v4365
  %v4367 = vtanh.pop %v4366
  %v4368 = vmul.f32 %v4362, %v4367
  %4369 = vmatprep.subr.mxu0 %v3346
  %4370 = vmatpush1.msra.mxu0 %v3345
  %4371 = vmatprep.subr.mxu0 %v3342
  %4372 = vmatpush1.msra.mxu0 %v3341
  %4373 = vmatprep.subr.mxu0 %v3338
  %4374 = vmatpush1.msra.mxu0 %v3337
  %4375 = vmatprep.subr.mxu0 %v3334
  %4376 = vmatpush1.msra.mxu0 %v3333
  %4377 = vmatprep.subr.mxu0 %v3330
  %4378 = vmatpush1.msra.mxu0 %v3329
  %4379 = vmatprep.subr.mxu0 %v3326
  %4380 = vmatpush1.msra.mxu0 %v3325
  %4381 = vmatprep.subr.mxu0 %v3322
  %4382 = vmatpush1.msra.mxu0 %v3321
  %4383 = vmatprep.subr.mxu0 %v3318
  %4384 = vmatpush1.msra.mxu0 %v3317
  %4385 = vmatprep.subr.mxu0 %v3314
  %4386 = vmatpush1.msra.mxu0 %v3313
  %4387 = vmatprep.subr.mxu0 %v3310
  %4388 = vmatpush1.msra.mxu0 %v3309
  %4389 = vmatprep.subr.mxu0 %v3306
  %4390 = vmatpush1.msra.mxu0 %v3305
  %4391 = vmatprep.subr.mxu0 %v3302
  %4392 = vmatpush1.msra.mxu0 %v3301
  %4393 = vmatprep.subr.mxu0 %v3298
  %4394 = vmatpush1.msra.mxu0 %v3297
  %4395 = vmatprep.subr.mxu0 %v3294
  %4396 = vmatpush1.msra.mxu0 %v3293
  %4397 = vmatprep.subr.mxu0 %v3290
  %4398 = vmatpush1.msra.mxu0 %v3289
  %4399 = vmatprep.subr.mxu0 %v3286
  %4400 = vmatpush1.msra.mxu0 %v3285
  %4401 = vmatprep.subr.mxu0 0.0
  %4402 = vmatpush2.msra.mxu0 0.0
  %4403 = vmatprep.subr.mxu0 0.0
  %4404 = vmatpush2.msra.mxu0 0.0
  %4405 = vmatprep.subr.mxu0 0.0
  %4406 = vmatpush2.msra.mxu0 0.0
  %4407 = vmatprep.subr.mxu0 0.0
  %4408 = vmatpush2.msra.mxu0 0.0
  %4409 = vmatprep.subr.mxu0 0.0
  %4410 = vmatpush2.msra.mxu0 0.0
  %4411 = vmatprep.subr.mxu0 0.0
  %4412 = vmatpush2.msra.mxu0 0.0
  %4413 = vmatprep.subr.mxu0 0.0
  %4414 = vmatpush2.msra.mxu0 0.0
  %4415 = vmatprep.subr.mxu0 0.0
  %4416 = vmatpush2.msra.mxu0 0.0
  %4417 = vmatprep.subr.mxu0 0.0
  %4418 = vmatpush2.msra.mxu0 0.0
  %4419 = vmatprep.subr.mxu0 0.0
  %4420 = vmatpush2.msra.mxu0 0.0
  %4421 = vmatprep.subr.mxu0 0.0
  %4422 = vmatpush2.msra.mxu0 0.0
  %4423 = vmatprep.subr.mxu0 0.0
  %4424 = vmatpush2.msra.mxu0 0.0
  %4425 = vmatprep.subr.mxu0 0.0
  %4426 = vmatpush2.msra.mxu0 0.0
  %4427 = vmatprep.subr.mxu0 0.0
  %4428 = vmatpush2.msra.mxu0 0.0
  %4429 = vmatprep.subr.mxu0 0.0
  %4430 = vmatpush2.msra.mxu0 0.0
  %4431 = vmatprep.subr.mxu0 0.0
  %4432 = vmatpush2.msra.mxu0 0.0
  %4433 = vmatprep.mubr.f32.mxu0 0.0
  %4434 = vmatmul.mubr.f32.gmra.mxu0 %v4368
  %v4435 = vpop.f32.mrf.mxu0
  %v4436 = vadd.f32 0.0, %v4435
  %v4437 = vpop.f32.mrf.mxu0
  %v4438 = vadd.f32 0.0, %v4437
  %4439 = vdwg.mxu0
  %4440 = vmatprep.subr.mxu0 %v3348
  %4441 = vmatpush1.msra.mxu0 %v3347
  %4442 = vmatprep.subr.mxu0 %v3344
  %4443 = vmatpush1.msra.mxu0 %v3343
  %4444 = vmatprep.subr.mxu0 %v3340
  %4445 = vmatpush1.msra.mxu0 %v3339
  %4446 = vmatprep.subr.mxu0 %v3336
  %4447 = vmatpush1.msra.mxu0 %v3335
  %4448 = vmatprep.subr.mxu0 %v3332
  %4449 = vmatpush1.msra.mxu0 %v3331
  %4450 = vmatprep.subr.mxu0 %v3328
  %4451 = vmatpush1.msra.mxu0 %v3327
  %4452 = vmatprep.subr.mxu0 %v3324
  %4453 = vmatpush1.msra.mxu0 %v3323
  %4454 = vmatprep.subr.mxu0 %v3320
  %4455 = vmatpush1.msra.mxu0 %v3319
  %4456 = vmatprep.subr.mxu0 %v3316
  %4457 = vmatpush1.msra.mxu0 %v3315
  %4458 = vmatprep.subr.mxu0 %v3312
  %4459 = vmatpush1.msra.mxu0 %v3311
  %4460 = vmatprep.subr.mxu0 %v3308
  %4461 = vmatpush1.msra.mxu0 %v3307
  %4462 = vmatprep.subr.mxu0 %v3304
  %4463 = vmatpush1.msra.mxu0 %v3303
  %4464 = vmatprep.subr.mxu0 %v3300
  %4465 = vmatpush1.msra.mxu0 %v3299
  %4466 = vmatprep.subr.mxu0 %v3296
  %4467 = vmatpush1.msra.mxu0 %v3295
  %4468 = vmatprep.subr.mxu0 %v3292
  %4469 = vmatpush1.msra.mxu0 %v3291
  %4470 = vmatprep.subr.mxu0 %v3288
  %4471 = vmatpush1.msra.mxu0 %v3287
  %4472 = vmatprep.subr.mxu0 0.0
  %4473 = vmatpush2.msra.mxu0 0.0
  %4474 = vmatprep.subr.mxu0 0.0
  %4475 = vmatpush2.msra.mxu0 0.0
  %4476 = vmatprep.subr.mxu0 0.0
  %4477 = vmatpush2.msra.mxu0 0.0
  %4478 = vmatprep.subr.mxu0 0.0
  %4479 = vmatpush2.msra.mxu0 0.0
  %4480 = vmatprep.subr.mxu0 0.0
  %4481 = vmatpush2.msra.mxu0 0.0
  %4482 = vmatprep.subr.mxu0 0.0
  %4483 = vmatpush2.msra.mxu0 0.0
  %4484 = vmatprep.subr.mxu0 0.0
  %4485 = vmatpush2.msra.mxu0 0.0
  %4486 = vmatprep.subr.mxu0 0.0
  %4487 = vmatpush2.msra.mxu0 0.0
  %4488 = vmatprep.subr.mxu0 0.0
  %4489 = vmatpush2.msra.mxu0 0.0
  %4490 = vmatprep.subr.mxu0 0.0
  %4491 = vmatpush2.msra.mxu0 0.0
  %4492 = vmatprep.subr.mxu0 0.0
  %4493 = vmatpush2.msra.mxu0 0.0
  %4494 = vmatprep.subr.mxu0 0.0
  %4495 = vmatpush2.msra.mxu0 0.0
  %4496 = vmatprep.subr.mxu0 0.0
  %4497 = vmatpush2.msra.mxu0 0.0
  %4498 = vmatprep.subr.mxu0 0.0
  %4499 = vmatpush2.msra.mxu0 0.0
  %4500 = vmatprep.subr.mxu0 0.0
  %4501 = vmatpush2.msra.mxu0 0.0
  %4502 = vmatprep.subr.mxu0 0.0
  %4503 = vmatpush2.msra.mxu0 0.0
  %4504 = vmatprep.mubr.f32.mxu0 0.0
  %4505 = vmatmul.mubr.f32.gmra.mxu0 %v4368
  %v4506 = vpop.f32.mrf.mxu0
  %v4507 = vadd.f32 0.0, %v4506
  %v4508 = vpop.f32.mrf.mxu0
  %v4509 = vadd.f32 0.0, %v4508
  %4510 = vdwg.mxu0
  %v4511 = vadd.f32 %v3277, %v4436
  %v4512 = vadd.f32 %v3278, %v4438
  %v4513 = vadd.f32 %v3279, %v4507
  %v4514 = vadd.f32 %v3280, %v4509
  %v4515 = vxor.u32 %v4511, 2147483648
  %v4516 = vxor.u32 %v4512, 2147483648
  %v4517 = vxor.u32 %v4513, 2147483648
  %v4518 = vmul.f32 %v4515, 1.442695
  %v4519 = vpow.pop %v4518
  %v4520 = vmul.f32 %v4516, 1.442695
  %v4521 = vpow.pop %v4520
  %v4522 = vmul.f32 %v4517, 1.442695
  %v4523 = vpow.pop %v4522
  %v4524 = vadd.f32 %v4519, 1.0
  %v4525 = vadd.f32 %v4521, 1.0
  %v4526 = vadd.f32 %v4523, 1.0
  %v4527 = vrcp.pop %v4524
  %v4528 = vmul.f32 1.0, %v4527
  %v4529 = vrcp.pop %v4525
  %v4530 = vmul.f32 1.0, %v4529
  %v4531 = vrcp.pop %v4526
  %v4532 = vmul.f32 1.0, %v4531
  %v4533 = vtanh.pop %v4514
  %v4534 = vmul.f32 %v4530, %v4366
  %v4535 = vmul.f32 %v4528, %v4533
  %v4536 = vadd.f32 %v4534, %v4535
  %v4537 = vtanh.pop %v4536
  %v4538 = vmul.f32 %v4532, %v4537
  %4539 = vmatprep.subr.mxu0 %v3346
  %4540 = vmatpush1.msra.mxu0 %v3345
  %4541 = vmatprep.subr.mxu0 %v3342
  %4542 = vmatpush1.msra.mxu0 %v3341
  %4543 = vmatprep.subr.mxu0 %v3338
  %4544 = vmatpush1.msra.mxu0 %v3337
  %4545 = vmatprep.subr.mxu0 %v3334
  %4546 = vmatpush1.msra.mxu0 %v3333
  %4547 = vmatprep.subr.mxu0 %v3330
  %4548 = vmatpush1.msra.mxu0 %v3329
  %4549 = vmatprep.subr.mxu0 %v3326
  %4550 = vmatpush1.msra.mxu0 %v3325
  %4551 = vmatprep.subr.mxu0 %v3322
  %4552 = vmatpush1.msra.mxu0 %v3321
  %4553 = vmatprep.subr.mxu0 %v3318
  %4554 = vmatpush1.msra.mxu0 %v3317
  %4555 = vmatprep.subr.mxu0 %v3314
  %4556 = vmatpush1.msra.mxu0 %v3313
  %4557 = vmatprep.subr.mxu0 %v3310
  %4558 = vmatpush1.msra.mxu0 %v3309
  %4559 = vmatprep.subr.mxu0 %v3306
  %4560 = vmatpush1.msra.mxu0 %v3305
  %4561 = vmatprep.subr.mxu0 %v3302
  %4562 = vmatpush1.msra.mxu0 %v3301
  %4563 = vmatprep.subr.mxu0 %v3298
  %4564 = vmatpush1.msra.mxu0 %v3297
  %4565 = vmatprep.subr.mxu0 %v3294
  %4566 = vmatpush1.msra.mxu0 %v3293
  %4567 = vmatprep.subr.mxu0 %v3290
  %4568 = vmatpush1.msra.mxu0 %v3289
  %4569 = vmatprep.subr.mxu0 %v3286
  %4570 = vmatpush1.msra.mxu0 %v3285
  %4571 = vmatprep.subr.mxu0 0.0
  %4572 = vmatpush2.msra.mxu0 0.0
  %4573 = vmatprep.subr.mxu0 0.0
  %4574 = vmatpush2.msra.mxu0 0.0
  %4575 = vmatprep.subr.mxu0 0.0
  %4576 = vmatpush2.msra.mxu0 0.0
  %4577 = vmatprep.subr.mxu0 0.0
  %4578 = vmatpush2.msra.mxu0 0.0
  %4579 = vmatprep.subr.mxu0 0.0
  %4580 = vmatpush2.msra.mxu0 0.0
  %4581 = vmatprep.subr.mxu0 0.0
  %4582 = vmatpush2.msra.mxu0 0.0
  %4583 = vmatprep.subr.mxu0 0.0
  %4584 = vmatpush2.msra.mxu0 0.0
  %4585 = vmatprep.subr.mxu0 0.0
  %4586 = vmatpush2.msra.mxu0 0.0
  %4587 = vmatprep.subr.mxu0 0.0
  %4588 = vmatpush2.msra.mxu0 0.0
  %4589 = vmatprep.subr.mxu0 0.0
  %4590 = vmatpush2.msra.mxu0 0.0
  %4591 = vmatprep.subr.mxu0 0.0
  %4592 = vmatpush2.msra.mxu0 0.0
  %4593 = vmatprep.subr.mxu0 0.0
  %4594 = vmatpush2.msra.mxu0 0.0
  %4595 = vmatprep.subr.mxu0 0.0
  %4596 = vmatpush2.msra.mxu0 0.0
  %4597 = vmatprep.subr.mxu0 0.0
  %4598 = vmatpush2.msra.mxu0 0.0
  %4599 = vmatprep.subr.mxu0 0.0
  %4600 = vmatpush2.msra.mxu0 0.0
  %4601 = vmatprep.subr.mxu0 0.0
  %4602 = vmatpush2.msra.mxu0 0.0
  %4603 = vmatprep.mubr.f32.mxu0 0.0
  %4604 = vmatmul.mubr.f32.gmra.mxu0 %v4538
  %v4605 = vpop.f32.mrf.mxu0
  %v4606 = vadd.f32 0.0, %v4605
  %v4607 = vpop.f32.mrf.mxu0
  %v4608 = vadd.f32 0.0, %v4607
  %4609 = vdwg.mxu0
  %4610 = vmatprep.subr.mxu0 %v3348
  %4611 = vmatpush1.msra.mxu0 %v3347
  %4612 = vmatprep.subr.mxu0 %v3344
  %4613 = vmatpush1.msra.mxu0 %v3343
  %4614 = vmatprep.subr.mxu0 %v3340
  %4615 = vmatpush1.msra.mxu0 %v3339
  %4616 = vmatprep.subr.mxu0 %v3336
  %4617 = vmatpush1.msra.mxu0 %v3335
  %4618 = vmatprep.subr.mxu0 %v3332
  %4619 = vmatpush1.msra.mxu0 %v3331
  %4620 = vmatprep.subr.mxu0 %v3328
  %4621 = vmatpush1.msra.mxu0 %v3327
  %4622 = vmatprep.subr.mxu0 %v3324
  %4623 = vmatpush1.msra.mxu0 %v3323
  %4624 = vmatprep.subr.mxu0 %v3320
  %4625 = vmatpush1.msra.mxu0 %v3319
  %4626 = vmatprep.subr.mxu0 %v3316
  %4627 = vmatpush1.msra.mxu0 %v3315
  %4628 = vmatprep.subr.mxu0 %v3312
  %4629 = vmatpush1.msra.mxu0 %v3311
  %4630 = vmatprep.subr.mxu0 %v3308
  %4631 = vmatpush1.msra.mxu0 %v3307
  %4632 = vmatprep.subr.mxu0 %v3304
  %4633 = vmatpush1.msra.mxu0 %v3303
  %4634 = vmatprep.subr.mxu0 %v3300
  %4635 = vmatpush1.msra.mxu0 %v3299
  %4636 = vmatprep.subr.mxu0 %v3296
  %4637 = vmatpush1.msra.mxu0 %v3295
  %4638 = vmatprep.subr.mxu0 %v3292
  %4639 = vmatpush1.msra.mxu0 %v3291
  %4640 = vmatprep.subr.mxu0 %v3288
  %4641 = vmatpush1.msra.mxu0 %v3287
  %4642 = vmatprep.subr.mxu0 0.0
  %4643 = vmatpush2.msra.mxu0 0.0
  %4644 = vmatprep.subr.mxu0 0.0
  %4645 = vmatpush2.msra.mxu0 0.0
  %4646 = vmatprep.subr.mxu0 0.0
  %4647 = vmatpush2.msra.mxu0 0.0
  %4648 = vmatprep.subr.mxu0 0.0
  %4649 = vmatpush2.msra.mxu0 0.0
  %4650 = vmatprep.subr.mxu0 0.0
  %4651 = vmatpush2.msra.mxu0 0.0
  %4652 = vmatprep.subr.mxu0 0.0
  %4653 = vmatpush2.msra.mxu0 0.0
  %4654 = vmatprep.subr.mxu0 0.0
  %4655 = vmatpush2.msra.mxu0 0.0
  %4656 = vmatprep.subr.mxu0 0.0
  %4657 = vmatpush2.msra.mxu0 0.0
  %4658 = vmatprep.subr.mxu0 0.0
  %4659 = vmatpush2.msra.mxu0 0.0
  %4660 = vmatprep.subr.mxu0 0.0
  %4661 = vmatpush2.msra.mxu0 0.0
  %4662 = vmatprep.subr.mxu0 0.0
  %4663 = vmatpush2.msra.mxu0 0.0
  %4664 = vmatprep.subr.mxu0 0.0
  %4665 = vmatpush2.msra.mxu0 0.0
  %4666 = vmatprep.subr.mxu0 0.0
  %4667 = vmatpush2.msra.mxu0 0.0
  %4668 = vmatprep.subr.mxu0 0.0
  %4669 = vmatpush2.msra.mxu0 0.0
  %4670 = vmatprep.subr.mxu0 0.0
  %4671 = vmatpush2.msra.mxu0 0.0
  %4672 = vmatprep.subr.mxu0 0.0
  %4673 = vmatpush2.msra.mxu0 0.0
  %4674 = vmatprep.mubr.f32.mxu0 0.0
  %4675 = vmatmul.mubr.f32.gmra.mxu0 %v4538
  %v4676 = vpop.f32.mrf.mxu0
  %v4677 = vadd.f32 0.0, %v4676
  %v4678 = vpop.f32.mrf.mxu0
  %v4679 = vadd.f32 0.0, %v4678
  %4680 = vdwg.mxu0
  %v4681 = vadd.f32 %v3281, %v4606
  %v4682 = vadd.f32 %v3282, %v4608
  %v4683 = vadd.f32 %v3283, %v4677
  %v4684 = vadd.f32 %v3284, %v4679
  %v4685 = vxor.u32 %v4681, 2147483648
  %v4686 = vxor.u32 %v4682, 2147483648
  %v4687 = vxor.u32 %v4683, 2147483648
  %v4688 = vmul.f32 %v4685, 1.442695
  %v4689 = vpow.pop %v4688
  %v4690 = vmul.f32 %v4686, 1.442695
  %v4691 = vpow.pop %v4690
  %v4692 = vmul.f32 %v4687, 1.442695
  %v4693 = vpow.pop %v4692
  %v4694 = vadd.f32 %v4689, 1.0
  %v4695 = vadd.f32 %v4691, 1.0
  %v4696 = vadd.f32 %v4693, 1.0
  %v4697 = vrcp.pop %v4694
  %v4698 = vmul.f32 1.0, %v4697
  %v4699 = vrcp.pop %v4695
  %v4700 = vmul.f32 1.0, %v4699
  %v4701 = vrcp.pop %v4696
  %v4702 = vmul.f32 1.0, %v4701
  %v4703 = vtanh.pop %v4684
  %v4704 = vmul.f32 %v4700, %v4536
  %v4705 = vmul.f32 %v4698, %v4703
  %v4706 = vadd.f32 %v4704, %v4705
  %v4707 = vtanh.pop %v4706
  %v4708 = vmul.f32 %v4702, %v4707
  %4709 = vst [vmem:[%s11] sm:$0xff] %v4708
  // Predicated region
  $region42: #{_lambda_.1} parent=0 // pred_check
    _
  $region43: #{_lambda_.1} parent=0 // pred_check_branch
    %4711 = sbr.rel (0) target = $region45
  $region44: #{_lambda_.1} parent=0 // pred_region
    _
  $region45: #{_lambda_.1} parent=0 // pred_fallthru
    _
  // Predicated region
  $region46: #{_lambda_.1} parent=0 // pred_check
    _
  $region47: #{_lambda_.1} parent=0 // pred_check_branch
    %4713 = sbr.rel (0) target = $region49
  $region48: #{_lambda_.1} parent=0 // pred_region
    _
  $region49: #{_lambda_.1} parent=0 // pred_fallthru
    _
  // Predicated region
  $region50: #{_lambda_.1} parent=0 // pred_check
    _
  $region51: #{_lambda_.1} parent=0 // pred_check_branch
    %4715 = sbr.rel (0) target = $region53
  $region52: #{_lambda_.1} parent=0 // pred_region
    _
  $region53: #{_lambda_.1} parent=0 // pred_fallthru
    _
  // Predicated region
  $region54: #{_lambda_.1} parent=0 // pred_check
    _
  $region55: #{_lambda_.1} parent=0 // pred_check_branch
    %4717 = sbr.rel (0) target = $region57
  $region56: #{_lambda_.1} parent=0 // pred_region
    _
  $region57: #{_lambda_.1} parent=0 // pred_fallthru
    _

</llo_original>
